<compile_context>
chip_gen: v5e
topology: v5e:2x2
jax: 0.10.0
libtpu: 0.0.40
codegen_flags: <defaults>
</compile_context>

<pallas_src>
import functools

import jax
import jax.numpy as jnp
from jax.experimental import pallas as pl
from jax.experimental.pallas import tpu as pltpu


def _attn_kernel(x_ref, wint_ref, woutt_ref, pack_ref, o_ref, attn_scr, *,
                 batch_block, seq, num_heads, eps, approx_recip):
    """One grid step: self-attention + residual + LayerNorm for `batch_block`
    batch elements, operating on a (batch_block*seq, E) activation slab."""
    E = x_ref.shape[-1]
    hd = E // num_heads
    cdtype = wint_ref.dtype            # MXU operand dtype (bf16 fast / f32 exact)
    rows = batch_block * seq

    x = x_ref[...]                     # (rows, E) f32, kept for the residual
    x_c = x.astype(cdtype)

    # Packed small params: row 0 = b_in (3E); rows 1..3 = b_out/gamma/beta
    # zero-padded to 3E.
    pack = pack_ref[...]               # (4, 3E) f32
    b_in = pack[0:1, :]                # (1, 3E)
    b_out = pack[1:2, :E]              # (1, E)
    gamma = pack[2:3, :E]              # (1, E)
    beta = pack[3:4, :E]               # (1, E)

    # ---- fused QKV projection: one (rows, E) @ (E, 3E) matmul, f32 accum ----
    # (1/sqrt(hd) already folded into the Q columns of W_in^T and b_in.)
    qkv = jnp.dot(x_c, wint_ref[...],
                  preferred_element_type=jnp.float32) + b_in
    qkv = qkv.reshape(batch_block, seq, 3 * E)
    q = qkv[:, :, :E]
    k = qkv[:, :, E:2 * E]
    v = qkv[:, :, 2 * E:]

    # ---- per-head attention; heads scattered into one (rows, E) scratch -----
    # TODO(synk): KV-tiled online-softmax for large S (see header comment).
    for h in range(num_heads):
        sl = slice(h * hd, (h + 1) * hd)
        qh = q[:, :, sl].astype(cdtype)                # (Bt, S, hd)
        kh = k[:, :, sl].astype(cdtype)                # (Bt, S, hd)
        vh = v[:, :, sl].astype(cdtype)                # (Bt, S, hd)

        s = jnp.einsum('bqd,bkd->bqk', qh, kh,
                       preferred_element_type=jnp.float32)        # (Bt, S, S)
        s = s - jnp.max(s, axis=-1, keepdims=True)
        p = jnp.exp(s)
        p = p * pl.reciprocal(jnp.sum(p, axis=-1, keepdims=True),
                              approx=approx_recip)

        a_h = jnp.einsum('bqk,bkd->bqd', p.astype(cdtype), vh,
                         preferred_element_type=jnp.float32)      # (Bt, S, hd)
        attn_scr[:, sl] = a_h.reshape(rows, hd)

    # ---- single output projection: one K=E matmul instead of H K=hd ones ----
    out = jnp.dot(attn_scr[...].astype(cdtype), woutt_ref[...],
                  preferred_element_type=jnp.float32) + b_out     # (rows, E)

    # ---- residual + LayerNorm over the embedding axis (all f32) -------------
    y = out + x
    mean = jnp.mean(y, axis=-1, keepdims=True)
    centered = y - mean
    var = jnp.mean(centered * centered, axis=-1, keepdims=True)
    y_norm = centered * jax.lax.rsqrt(var + eps)
    o_ref[...] = (y_norm * gamma + beta).astype(o_ref.dtype)


def _num_parallel_cores():
    """TensorCores that dimension_semantics='parallel' can shard work across."""
    try:
        kind = jax.devices()[0].device_kind.lower()
    except Exception:
        return 1
    # v5e / v6e ("lite") are single-TensorCore: the grid is a serial loop there.
    if ("lite" in kind) or ("v5e" in kind) or ("v6e" in kind):
        return 1
    # v7x has 2 TCs; v2/v3/v4/v5p megacore also shard parallel grid axes.
    if any(t in kind for t in ("v7", "v4", "v5p", "v3", "v2")):
        return 2
    return 1


def _pick_batch_block(batch):
    """Generation-aware batch tiling (per perf review):
    single-TC chips -> one fat grid step (batch_block = B); multi-core chips ->
    the largest divisor of B that yields >= num_cores grid steps."""
    cores = _num_parallel_cores()
    if cores <= 1 or batch < 2:
        return batch
    for d in range(batch // cores, 0, -1):
        if batch % d == 0:
            return d
    return 1


def transformer_attention_pallas(x_nchw, params, num_heads, *, eps=1e-5,
                                 compute_dtype=jnp.bfloat16, batch_block=None):
    B, C, H, W = x_nchw.shape
    S, E = H * W, C
    assert E % num_heads == 0
    hd = E // num_heads
    if batch_block is None:
        batch_block = _pick_batch_block(B)
    assert B % batch_block == 0
    grid = (B // batch_block,)
    rows = batch_block * S

    # NCHW -> (B*S, E): batch folded into the matmul M dimension.
    # (Kept f32 I/O; at large S on v5e consider bf16 I/O to halve HBM bytes.)
    x_2d = jnp.transpose(x_nchw.reshape(B, C, S), (0, 2, 1)).reshape(B * S, E)
    x_2d = x_2d.astype(jnp.float32)

    # One-time wrapper-side weight prep: pre-transpose, fold the 1/sqrt(hd)
    # softmax scale into the Q columns of W_in^T / Q third of b_in, cast the
    # weight matrices once to the MXU operand dtype.
    scale = 1.0 / float(hd) ** 0.5
    q_scale = jnp.concatenate([jnp.full((E,), scale, jnp.float32),
                               jnp.ones((2 * E,), jnp.float32)])
    w_in_t = (jnp.transpose(params["in_proj_weight"]).astype(jnp.float32)
              * q_scale[None, :]).astype(compute_dtype)                       # (E, 3E)
    w_out_t = jnp.transpose(params["out_proj_weight"]).astype(compute_dtype)  # (E, E)
    b_in = params["in_proj_bias"].astype(jnp.float32) * q_scale               # (3E,)

    # Pack the tiny per-lane vectors into a single (4, 3E) f32 array.
    def _pad(v):
        return jnp.concatenate([v.astype(jnp.float32),
                                jnp.zeros((2 * E,), jnp.float32)])
    pack = jnp.stack([b_in,
                      _pad(params["out_proj_bias"]),
                      _pad(params["ln_weight"]),
                      _pad(params["ln_bias"])], axis=0)                        # (4, 3E)

    kernel = functools.partial(
        _attn_kernel, batch_block=batch_block, seq=S, num_heads=num_heads,
        eps=eps, approx_recip=(compute_dtype != jnp.float32))

    out_2d = pl.pallas_call(
        kernel,
        out_shape=jax.ShapeDtypeStruct((B * S, E), jnp.float32),
        grid_spec=pltpu.PrefetchScalarGridSpec(
            num_scalar_prefetch=0,
            grid=grid,
            in_specs=[
                pl.BlockSpec((rows, E), lambda i: (i, 0)),        # x slab
                pl.BlockSpec((E, 3 * E), lambda i: (0, 0)),       # W_in^T (scaled)
                pl.BlockSpec((E, E), lambda i: (0, 0)),           # W_out^T
                pl.BlockSpec((4, 3 * E), lambda i: (0, 0)),       # packed params
            ],
            out_specs=pl.BlockSpec((rows, E), lambda i: (i, 0)),
            scratch_shapes=[pltpu.VMEM((rows, E), jnp.float32)],  # head assembly
        ),
        compiler_params=pltpu.CompilerParams(
            dimension_semantics=("parallel",)),
    )(x_2d, w_in_t, w_out_t, pack)

    # (B*S, E) -> (B, C, H, W)
    return jnp.transpose(out_2d.reshape(B, S, E), (0, 2, 1)).reshape(B, C, H, W)


def _reference(x_nchw, params, num_heads, eps=1e-5):
    """Pure-JAX reference mirroring nn.MultiheadAttention + LayerNorm."""
    B, C, H, W = x_nchw.shape
    S, E = H * W, C
    hd = E // num_heads
    x = jnp.transpose(x_nchw.reshape(B, C, S), (0, 2, 1)).astype(jnp.float32)  # (B,S,E)
    w_in, b_in = params["in_proj_weight"], params["in_proj_bias"]
    qkv = jnp.einsum("bse,fe->bsf", x, w_in) + b_in
    q, k, v = qkv[..., :E], qkv[..., E:2 * E], qkv[..., 2 * E:]

    def split(t):
        return t.reshape(B, S, num_heads, hd).transpose(0, 2, 1, 3)
    q, k, v = split(q) / jnp.sqrt(hd), split(k), split(v)
    s = jnp.einsum("bhqd,bhkd->bhqk", q, k)
    p = jax.nn.softmax(s, axis=-1)
    a = jnp.einsum("bhqk,bhkd->bhqd", p, v).transpose(0, 2, 1, 3).reshape(B, S, E)
    out = jnp.einsum("bse,fe->bsf", a, params["out_proj_weight"]) + params["out_proj_bias"]
    y = out + x
    mean = jnp.mean(y, axis=-1, keepdims=True)
    var = jnp.mean((y - mean) ** 2, axis=-1, keepdims=True)
    yn = (y - mean) / jnp.sqrt(var + eps)
    yn = yn * params["ln_weight"] + params["ln_bias"]
    return jnp.transpose(yn, (0, 2, 1)).reshape(B, C, H, W)


def make_params(key, embed_dim):
    k1, k2, k3, k4 = jax.random.split(key, 4)
    bound = 1.0 / (embed_dim ** 0.5)
    return {
        "in_proj_weight": jax.random.uniform(k1, (3 * embed_dim, embed_dim),
                                             jnp.float32, -bound, bound),
        "in_proj_bias": jax.random.uniform(k2, (3 * embed_dim,),
                                           jnp.float32, -bound, bound),
        "out_proj_weight": jax.random.uniform(k3, (embed_dim, embed_dim),
                                              jnp.float32, -bound, bound),
        "out_proj_bias": jax.random.uniform(k4, (embed_dim,),
                                            jnp.float32, -bound, bound),
        # PyTorch LayerNorm default init
        "ln_weight": jnp.ones((embed_dim,), jnp.float32),
        "ln_bias": jnp.zeros((embed_dim,), jnp.float32),
    }


if __name__ == "__main__":
    # Small shapes: batch=2, channels(embed_dim)=32, spatial 8x8 -> seq=64, heads=4.
    B, C, H, W = 2, 32, 8, 8
    NUM_HEADS = 4

    key = jax.random.PRNGKey(0)
    kx, kp = jax.random.split(key)
    x = jax.random.normal(kx, (B, C, H, W), dtype=jnp.float32)
    params = make_params(kp, C)

    ref = jax.block_until_ready(_reference(x, params, NUM_HEADS))

    # Exact-semantics path (f32 MXU operands): strict parity with the PyTorch math.
    out_f32 = jax.block_until_ready(
        transformer_attention_pallas(x, params, NUM_HEADS,
                                     compute_dtype=jnp.float32))
    assert out_f32.shape == (B, C, H, W)
    assert jnp.allclose(out_f32, ref, atol=2e-4, rtol=2e-4)

    # Fast path (bf16 MXU operands, f32 accumulation, approx softmax reciprocal).
    out_bf16 = jax.block_until_ready(
        transformer_attention_pallas(x, params, NUM_HEADS,
                                     compute_dtype=jnp.bfloat16))
    assert out_bf16.shape == (B, C, H, W)
    assert jnp.allclose(out_bf16, ref, atol=5e-3, rtol=5e-3)

    print("KERNEL_OK")
</pallas_src>

<mosaic_0001>
module attributes {stable_mosaic.version = 11 : i64} {
  func.func @_attn_kernel(%arg0: i32, %arg1: memref<128x32xf32, #tpu.memory_space<vmem>>, %arg2: memref<32x96xf32, #tpu.memory_space<vmem>>, %arg3: memref<32x32xf32, #tpu.memory_space<vmem>>, %arg4: memref<4x96xf32, #tpu.memory_space<vmem>>, %arg5: memref<128x32xf32, #tpu.memory_space<vmem>>, %arg6: memref<128x32xf32, #tpu.memory_space<vmem>>) attributes {dimension_semantics = [#tpu.dimension_semantics<parallel>], iteration_bounds = array<i64: 1>, scalar_prefetch = 0 : i64, scratch_operands = 1 : i64, tpu.core_type = #tpu.core_type<tc>, window_params = [{transform_indices = @transform_0, window_bounds = array<i64: 128, 32>}, {pipeline_mode = #tpu.pipeline_mode<synchronous>, transform_indices = @transform_1, window_bounds = array<i64: 32, 96>}, {pipeline_mode = #tpu.pipeline_mode<synchronous>, transform_indices = @transform_2, window_bounds = array<i64: 32, 32>}, {pipeline_mode = #tpu.pipeline_mode<synchronous>, transform_indices = @transform_3, window_bounds = array<i64: 4, 96>}, {transform_indices = @transform_4, window_bounds = array<i64: 128, 32>}]} {
    %c0 = arith.constant 0 : index
    %c0_0 = arith.constant 0 : index
    %0 = vector.load %arg1[%c0, %c0_0] : memref<128x32xf32, #tpu.memory_space<vmem>>, vector<128x32xf32>
    %c0_1 = arith.constant 0 : index
    %c0_2 = arith.constant 0 : index
    %1 = vector.load %arg4[%c0_1, %c0_2] : memref<4x96xf32, #tpu.memory_space<vmem>>, vector<4x96xf32>
    %2 = vector.extract_strided_slice %1 {offsets = [0, 0], sizes = [1, 96], strides = [1, 1]} : vector<4x96xf32> to vector<1x96xf32>
    %3 = vector.extract_strided_slice %1 {offsets = [1, 0], sizes = [1, 32], strides = [1, 1]} : vector<4x96xf32> to vector<1x32xf32>
    %4 = vector.extract_strided_slice %1 {offsets = [2, 0], sizes = [1, 32], strides = [1, 1]} : vector<4x96xf32> to vector<1x32xf32>
    %5 = vector.extract_strided_slice %1 {offsets = [3, 0], sizes = [1, 32], strides = [1, 1]} : vector<4x96xf32> to vector<1x32xf32>
    %c0_3 = arith.constant 0 : index
    %c0_4 = arith.constant 0 : index
    %6 = vector.load %arg2[%c0_3, %c0_4] : memref<32x96xf32, #tpu.memory_space<vmem>>, vector<32x96xf32>
    %cst = arith.constant dense<0.000000e+00> : vector<128x96xf32>
    %7 = tpu.matmul %0, %6, %cst {dimension_numbers = #tpu.dot_dimension_numbers<[1], [0], [0], [1], [0, 0, 1, 1], [], []>} : vector<128x32xf32>, vector<32x96xf32>, vector<128x96xf32> -> vector<128x96xf32>
    %8 = vector.broadcast %2 : vector<1x96xf32> to vector<128x96xf32>
    %9 = arith.addf %7, %8 : vector<128x96xf32>
    %10 = vector.shape_cast %9 : vector<128x96xf32> to vector<2x64x96xf32>
    %11 = vector.extract_strided_slice %10 {offsets = [0, 0, 0], sizes = [2, 64, 32], strides = [1, 1, 1]} : vector<2x64x96xf32> to vector<2x64x32xf32>
    %12 = vector.extract_strided_slice %10 {offsets = [0, 0, 32], sizes = [2, 64, 32], strides = [1, 1, 1]} : vector<2x64x96xf32> to vector<2x64x32xf32>
    %13 = vector.extract_strided_slice %10 {offsets = [0, 0, 64], sizes = [2, 64, 32], strides = [1, 1, 1]} : vector<2x64x96xf32> to vector<2x64x32xf32>
    %14 = vector.extract_strided_slice %11 {offsets = [0, 0, 0], sizes = [2, 64, 8], strides = [1, 1, 1]} : vector<2x64x32xf32> to vector<2x64x8xf32>
    %15 = vector.extract_strided_slice %12 {offsets = [0, 0, 0], sizes = [2, 64, 8], strides = [1, 1, 1]} : vector<2x64x32xf32> to vector<2x64x8xf32>
    %16 = vector.extract_strided_slice %13 {offsets = [0, 0, 0], sizes = [2, 64, 8], strides = [1, 1, 1]} : vector<2x64x32xf32> to vector<2x64x8xf32>
    "tpu.trace_start"() <{level = 10 : i32, message = "bqd,bkd->bqk"}> : () -> ()
    %cst_5 = arith.constant dense<0.000000e+00> : vector<2x64x64xf32>
    %17 = tpu.matmul %14, %15, %cst_5 {dimension_numbers = #tpu.dot_dimension_numbers<[2], [2], [1], [1], [0, 0, 0, 1, 1, 1], [0], [0]>} : vector<2x64x8xf32>, vector<2x64x8xf32>, vector<2x64x64xf32> -> vector<2x64x64xf32>
    "tpu.trace_stop"() : () -> ()
    %cst_6 = arith.constant dense<0xFF800000> : vector<2x64xf32>
    %18 = vector.multi_reduction <maximumf>, %17, %cst_6 [2] : vector<2x64x64xf32> to vector<2x64xf32>
    %19 = vector.shape_cast %18 : vector<2x64xf32> to vector<2x64x1xf32>
    %20 = vector.broadcast %19 : vector<2x64x1xf32> to vector<2x64x64xf32>
    %21 = arith.subf %17, %20 : vector<2x64x64xf32>
    %22 = math.exp %21 : vector<2x64x64xf32>
    %cst_7 = arith.constant dense<0.000000e+00> : vector<2x64xf32>
    %23 = vector.multi_reduction <add>, %22, %cst_7 [2] : vector<2x64x64xf32> to vector<2x64xf32>
    %24 = vector.shape_cast %23 : vector<2x64xf32> to vector<2x64x1xf32>
    %25 = tpu.reciprocal %24 : vector<2x64x1xf32> -> vector<2x64x1xf32>
    %26 = vector.broadcast %25 : vector<2x64x1xf32> to vector<2x64x64xf32>
    %27 = arith.mulf %22, %26 : vector<2x64x64xf32>
    "tpu.trace_start"() <{level = 10 : i32, message = "bqk,bkd->bqd"}> : () -> ()
    %cst_8 = arith.constant dense<0.000000e+00> : vector<2x64x8xf32>
    %28 = tpu.matmul %27, %16, %cst_8 {dimension_numbers = #tpu.dot_dimension_numbers<[2], [1], [1], [2], [0, 0, 0, 1, 1, 2], [0], [0]>} : vector<2x64x64xf32>, vector<2x64x8xf32>, vector<2x64x8xf32> -> vector<2x64x8xf32>
    "tpu.trace_stop"() : () -> ()
    %29 = vector.shape_cast %28 : vector<2x64x8xf32> to vector<128x8xf32>
    %c0_9 = arith.constant 0 : index
    %c0_10 = arith.constant 0 : index
    %30 = vector.load %arg6[%c0_9, %c0_10] : memref<128x32xf32, #tpu.memory_space<vmem>>, vector<128x8xf32>
    tpu.vector_store %arg6[%c0_9, %c0_10], %29 {strides = array<i32>} : memref<128x32xf32, #tpu.memory_space<vmem>>, vector<128x8xf32>,
    %31 = vector.extract_strided_slice %11 {offsets = [0, 0, 8], sizes = [2, 64, 8], strides = [1, 1, 1]} : vector<2x64x32xf32> to vector<2x64x8xf32>
    %32 = vector.extract_strided_slice %12 {offsets = [0, 0, 8], sizes = [2, 64, 8], strides = [1, 1, 1]} : vector<2x64x32xf32> to vector<2x64x8xf32>
    %33 = vector.extract_strided_slice %13 {offsets = [0, 0, 8], sizes = [2, 64, 8], strides = [1, 1, 1]} : vector<2x64x32xf32> to vector<2x64x8xf32>
    "tpu.trace_start"() <{level = 10 : i32, message = "bqd,bkd->bqk"}> : () -> ()
    %cst_11 = arith.constant dense<0.000000e+00> : vector<2x64x64xf32>
    %34 = tpu.matmul %31, %32, %cst_11 {dimension_numbers = #tpu.dot_dimension_numbers<[2], [2], [1], [1], [0, 0, 0, 1, 1, 1], [0], [0]>} : vector<2x64x8xf32>, vector<2x64x8xf32>, vector<2x64x64xf32> -> vector<2x64x64xf32>
    "tpu.trace_stop"() : () -> ()
    %cst_12 = arith.constant dense<0xFF800000> : vector<2x64xf32>
    %35 = vector.multi_reduction <maximumf>, %34, %cst_12 [2] : vector<2x64x64xf32> to vector<2x64xf32>
    %36 = vector.shape_cast %35 : vector<2x64xf32> to vector<2x64x1xf32>
    %37 = vector.broadcast %36 : vector<2x64x1xf32> to vector<2x64x64xf32>
    %38 = arith.subf %34, %37 : vector<2x64x64xf32>
    %39 = math.exp %38 : vector<2x64x64xf32>
    %cst_13 = arith.constant dense<0.000000e+00> : vector<2x64xf32>
    %40 = vector.multi_reduction <add>, %39, %cst_13 [2] : vector<2x64x64xf32> to vector<2x64xf32>
    %41 = vector.shape_cast %40 : vector<2x64xf32> to vector<2x64x1xf32>
    %42 = tpu.reciprocal %41 : vector<2x64x1xf32> -> vector<2x64x1xf32>
    %43 = vector.broadcast %42 : vector<2x64x1xf32> to vector<2x64x64xf32>
    %44 = arith.mulf %39, %43 : vector<2x64x64xf32>
    "tpu.trace_start"() <{level = 10 : i32, message = "bqk,bkd->bqd"}> : () -> ()
    %cst_14 = arith.constant dense<0.000000e+00> : vector<2x64x8xf32>
    %45 = tpu.matmul %44, %33, %cst_14 {dimension_numbers = #tpu.dot_dimension_numbers<[2], [1], [1], [2], [0, 0, 0, 1, 1, 2], [0], [0]>} : vector<2x64x64xf32>, vector<2x64x8xf32>, vector<2x64x8xf32> -> vector<2x64x8xf32>
    "tpu.trace_stop"() : () -> ()
    %46 = vector.shape_cast %45 : vector<2x64x8xf32> to vector<128x8xf32>
    %c0_15 = arith.constant 0 : index
    %c8 = arith.constant 8 : index
    %47 = vector.load %arg6[%c0_15, %c8] : memref<128x32xf32, #tpu.memory_space<vmem>>, vector<128x8xf32>
    tpu.vector_store %arg6[%c0_15, %c8], %46 {strides = array<i32>} : memref<128x32xf32, #tpu.memory_space<vmem>>, vector<128x8xf32>,
    %48 = vector.extract_strided_slice %11 {offsets = [0, 0, 16], sizes = [2, 64, 8], strides = [1, 1, 1]} : vector<2x64x32xf32> to vector<2x64x8xf32>
    %49 = vector.extract_strided_slice %12 {offsets = [0, 0, 16], sizes = [2, 64, 8], strides = [1, 1, 1]} : vector<2x64x32xf32> to vector<2x64x8xf32>
    %50 = vector.extract_strided_slice %13 {offsets = [0, 0, 16], sizes = [2, 64, 8], strides = [1, 1, 1]} : vector<2x64x32xf32> to vector<2x64x8xf32>
    "tpu.trace_start"() <{level = 10 : i32, message = "bqd,bkd->bqk"}> : () -> ()
    %cst_16 = arith.constant dense<0.000000e+00> : vector<2x64x64xf32>
    %51 = tpu.matmul %48, %49, %cst_16 {dimension_numbers = #tpu.dot_dimension_numbers<[2], [2], [1], [1], [0, 0, 0, 1, 1, 1], [0], [0]>} : vector<2x64x8xf32>, vector<2x64x8xf32>, vector<2x64x64xf32> -> vector<2x64x64xf32>
    "tpu.trace_stop"() : () -> ()
    %cst_17 = arith.constant dense<0xFF800000> : vector<2x64xf32>
    %52 = vector.multi_reduction <maximumf>, %51, %cst_17 [2] : vector<2x64x64xf32> to vector<2x64xf32>
    %53 = vector.shape_cast %52 : vector<2x64xf32> to vector<2x64x1xf32>
    %54 = vector.broadcast %53 : vector<2x64x1xf32> to vector<2x64x64xf32>
    %55 = arith.subf %51, %54 : vector<2x64x64xf32>
    %56 = math.exp %55 : vector<2x64x64xf32>
    %cst_18 = arith.constant dense<0.000000e+00> : vector<2x64xf32>
    %57 = vector.multi_reduction <add>, %56, %cst_18 [2] : vector<2x64x64xf32> to vector<2x64xf32>
    %58 = vector.shape_cast %57 : vector<2x64xf32> to vector<2x64x1xf32>
    %59 = tpu.reciprocal %58 : vector<2x64x1xf32> -> vector<2x64x1xf32>
    %60 = vector.broadcast %59 : vector<2x64x1xf32> to vector<2x64x64xf32>
    %61 = arith.mulf %56, %60 : vector<2x64x64xf32>
    "tpu.trace_start"() <{level = 10 : i32, message = "bqk,bkd->bqd"}> : () -> ()
    %cst_19 = arith.constant dense<0.000000e+00> : vector<2x64x8xf32>
    %62 = tpu.matmul %61, %50, %cst_19 {dimension_numbers = #tpu.dot_dimension_numbers<[2], [1], [1], [2], [0, 0, 0, 1, 1, 2], [0], [0]>} : vector<2x64x64xf32>, vector<2x64x8xf32>, vector<2x64x8xf32> -> vector<2x64x8xf32>
    "tpu.trace_stop"() : () -> ()
    %63 = vector.shape_cast %62 : vector<2x64x8xf32> to vector<128x8xf32>
    %c0_20 = arith.constant 0 : index
    %c16 = arith.constant 16 : index
    %64 = vector.load %arg6[%c0_20, %c16] : memref<128x32xf32, #tpu.memory_space<vmem>>, vector<128x8xf32>
    tpu.vector_store %arg6[%c0_20, %c16], %63 {strides = array<i32>} : memref<128x32xf32, #tpu.memory_space<vmem>>, vector<128x8xf32>,
    %65 = vector.extract_strided_slice %11 {offsets = [0, 0, 24], sizes = [2, 64, 8], strides = [1, 1, 1]} : vector<2x64x32xf32> to vector<2x64x8xf32>
    %66 = vector.extract_strided_slice %12 {offsets = [0, 0, 24], sizes = [2, 64, 8], strides = [1, 1, 1]} : vector<2x64x32xf32> to vector<2x64x8xf32>
    %67 = vector.extract_strided_slice %13 {offsets = [0, 0, 24], sizes = [2, 64, 8], strides = [1, 1, 1]} : vector<2x64x32xf32> to vector<2x64x8xf32>
    "tpu.trace_start"() <{level = 10 : i32, message = "bqd,bkd->bqk"}> : () -> ()
    %cst_21 = arith.constant dense<0.000000e+00> : vector<2x64x64xf32>
    %68 = tpu.matmul %65, %66, %cst_21 {dimension_numbers = #tpu.dot_dimension_numbers<[2], [2], [1], [1], [0, 0, 0, 1, 1, 1], [0], [0]>} : vector<2x64x8xf32>, vector<2x64x8xf32>, vector<2x64x64xf32> -> vector<2x64x64xf32>
    "tpu.trace_stop"() : () -> ()
    %cst_22 = arith.constant dense<0xFF800000> : vector<2x64xf32>
    %69 = vector.multi_reduction <maximumf>, %68, %cst_22 [2] : vector<2x64x64xf32> to vector<2x64xf32>
    %70 = vector.shape_cast %69 : vector<2x64xf32> to vector<2x64x1xf32>
    %71 = vector.broadcast %70 : vector<2x64x1xf32> to vector<2x64x64xf32>
    %72 = arith.subf %68, %71 : vector<2x64x64xf32>
    %73 = math.exp %72 : vector<2x64x64xf32>
    %cst_23 = arith.constant dense<0.000000e+00> : vector<2x64xf32>
    %74 = vector.multi_reduction <add>, %73, %cst_23 [2] : vector<2x64x64xf32> to vector<2x64xf32>
    %75 = vector.shape_cast %74 : vector<2x64xf32> to vector<2x64x1xf32>
    %76 = tpu.reciprocal %75 : vector<2x64x1xf32> -> vector<2x64x1xf32>
    %77 = vector.broadcast %76 : vector<2x64x1xf32> to vector<2x64x64xf32>
    %78 = arith.mulf %73, %77 : vector<2x64x64xf32>
    "tpu.trace_start"() <{level = 10 : i32, message = "bqk,bkd->bqd"}> : () -> ()
    %cst_24 = arith.constant dense<0.000000e+00> : vector<2x64x8xf32>
    %79 = tpu.matmul %78, %67, %cst_24 {dimension_numbers = #tpu.dot_dimension_numbers<[2], [1], [1], [2], [0, 0, 0, 1, 1, 2], [0], [0]>} : vector<2x64x64xf32>, vector<2x64x8xf32>, vector<2x64x8xf32> -> vector<2x64x8xf32>
    "tpu.trace_stop"() : () -> ()
    %80 = vector.shape_cast %79 : vector<2x64x8xf32> to vector<128x8xf32>
    %c0_25 = arith.constant 0 : index
    %c24 = arith.constant 24 : index
    %81 = vector.load %arg6[%c0_25, %c24] : memref<128x32xf32, #tpu.memory_space<vmem>>, vector<128x8xf32>
    tpu.vector_store %arg6[%c0_25, %c24], %80 {strides = array<i32>} : memref<128x32xf32, #tpu.memory_space<vmem>>, vector<128x8xf32>,
    %c0_26 = arith.constant 0 : index
    %c0_27 = arith.constant 0 : index
    %82 = vector.load %arg6[%c0_26, %c0_27] : memref<128x32xf32, #tpu.memory_space<vmem>>, vector<128x32xf32>
    %c0_28 = arith.constant 0 : index
    %c0_29 = arith.constant 0 : index
    %83 = vector.load %arg3[%c0_28, %c0_29] : memref<32x32xf32, #tpu.memory_space<vmem>>, vector<32x32xf32>
    %cst_30 = arith.constant dense<0.000000e+00> : vector<128x32xf32>
    %84 = tpu.matmul %82, %83, %cst_30 {dimension_numbers = #tpu.dot_dimension_numbers<[1], [0], [0], [1], [0, 0, 1, 1], [], []>} : vector<128x32xf32>, vector<32x32xf32>, vector<128x32xf32> -> vector<128x32xf32>
    %85 = vector.broadcast %3 : vector<1x32xf32> to vector<128x32xf32>
    %86 = arith.addf %84, %85 : vector<128x32xf32>
    %87 = arith.addf %86, %0 : vector<128x32xf32>
    %cst_31 = arith.constant dense<0.000000e+00> : vector<128xf32>
    %88 = vector.multi_reduction <add>, %87, %cst_31 [1] : vector<128x32xf32> to vector<128xf32>
    %89 = vector.shape_cast %88 : vector<128xf32> to vector<128x1xf32>
    %cst_32 = arith.constant 3.200000e+01 : f32
    %90 = vector.broadcast %cst_32 : f32 to vector<128x1xf32>
    %91 = arith.divf %89, %90 : vector<128x1xf32>
    %92 = vector.broadcast %91 : vector<128x1xf32> to vector<128x32xf32>
    %93 = arith.subf %87, %92 : vector<128x32xf32>
    %94 = arith.mulf %93, %93 : vector<128x32xf32>
    %cst_33 = arith.constant dense<0.000000e+00> : vector<128xf32>
    %95 = vector.multi_reduction <add>, %94, %cst_33 [1] : vector<128x32xf32> to vector<128xf32>
    %96 = vector.shape_cast %95 : vector<128xf32> to vector<128x1xf32>
    %cst_34 = arith.constant 3.200000e+01 : f32
    %97 = vector.broadcast %cst_34 : f32 to vector<128x1xf32>
    %98 = arith.divf %96, %97 : vector<128x1xf32>
    %cst_35 = arith.constant 9.99999974E-6 : f32
    %99 = vector.broadcast %cst_35 : f32 to vector<128x1xf32>
    %100 = arith.addf %98, %99 : vector<128x1xf32>
    %101 = math.rsqrt %100 : vector<128x1xf32>
    %102 = vector.broadcast %101 : vector<128x1xf32> to vector<128x32xf32>
    %103 = arith.mulf %93, %102 : vector<128x32xf32>
    %104 = vector.broadcast %4 : vector<1x32xf32> to vector<128x32xf32>
    %105 = arith.mulf %103, %104 : vector<128x32xf32>
    %106 = vector.broadcast %5 : vector<1x32xf32> to vector<128x32xf32>
    %107 = arith.addf %105, %106 : vector<128x32xf32>
    %c0_36 = arith.constant 0 : index
    %c0_37 = arith.constant 0 : index
    %108 = vector.load %arg5[%c0_36, %c0_37] : memref<128x32xf32, #tpu.memory_space<vmem>>, vector<128x32xf32>
    tpu.vector_store %arg5[%c0_36, %c0_37], %107 {strides = array<i32>} : memref<128x32xf32, #tpu.memory_space<vmem>>, vector<128x32xf32>,
    return
  }
  func.func @transform_0(%arg0: i32) -> (i32, i32) {
    %c0_i32 = arith.constant 0 : i32
    %c0_i32_0 = arith.constant 0 : i32
    return %arg0, %c0_i32 : i32, i32
  }
  func.func @transform_1(%arg0: i32) -> (i32, i32) {
    %c0_i32 = arith.constant 0 : i32
    %c0_i32_0 = arith.constant 0 : i32
    %c0_i32_1 = arith.constant 0 : i32
    return %c0_i32, %c0_i32_0 : i32, i32
  }
  func.func @transform_2(%arg0: i32) -> (i32, i32) {
    %c0_i32 = arith.constant 0 : i32
    %c0_i32_0 = arith.constant 0 : i32
    %c0_i32_1 = arith.constant 0 : i32
    return %c0_i32, %c0_i32_0 : i32, i32
  }
  func.func @transform_3(%arg0: i32) -> (i32, i32) {
    %c0_i32 = arith.constant 0 : i32
    %c0_i32_0 = arith.constant 0 : i32
    %c0_i32_1 = arith.constant 0 : i32
    return %c0_i32, %c0_i32_0 : i32, i32
  }
  func.func @transform_4(%arg0: i32) -> (i32, i32) {
    %c0_i32 = arith.constant 0 : i32
    %c0_i32_0 = arith.constant 0 : i32
    return %arg0, %c0_i32 : i32, i32
  }
}

</mosaic_0001>

<llo_original>
// kernel: tpu_custom_call.1
$region0: #{tpu_custom_call.1}
  #allocation0 [shape = 'u32[]', space=smem, size = 0x4, offset = 0x4, fixed_abs, tag = 'smem constant byte address 0x4 - core index']
  #allocation1 [shape = 'u32[72,128]{1,0:T(1,128)}', space=vmem, size = 0x9000, scoped, tag = 'internal scratch']
  #allocation2 [shape = 'f32[128,32]{1,0:T(8,128)}', space=vmem, size = 0x10000, scoped, tag = 'scratch operand']
  %s0 = inlined_call_operand.vmem [shape: f32[128,32], index: 0, kind: input, shape index: {}]
  %s1 = inlined_call_operand.vmem [shape: f32[32,96], index: 1, kind: input, shape index: {}]
  %s2 = inlined_call_operand.vmem [shape: f32[32,32], index: 2, kind: input, shape index: {}]
  %s3 = inlined_call_operand.vmem [shape: f32[4,96], index: 3, kind: input, shape index: {}]
  %s4 = inlined_call_operand.vmem [shape: f32[128,32], index: 4, kind: output, shape index: {}]
  %s5 = sld [smem:[#allocation0]]
  $region26: #{tpu_custom_call.1} parent=0
    _
  %s7 = ssub.s32 1, %s5
  %s8 = scalar_select 0, %s7, %s5
  // Predicated region
  $region2: #{tpu_custom_call.1} parent=0 // pred_check
    _
  $region3: #{tpu_custom_call.1} parent=0 // pred_check_branch
    %10 = sbr.rel (0) target = $region5
  $region4: #{tpu_custom_call.1} parent=0 // pred_region
    _
  $region5: #{tpu_custom_call.1} parent=0 // pred_fallthru
    _
  // Predicated region
  $region6: #{tpu_custom_call.1} parent=0 // pred_check
    _
  $region7: #{tpu_custom_call.1} parent=0 // pred_check_branch
    %12 = sbr.rel (0) target = $region9
  $region8: #{tpu_custom_call.1} parent=0 // pred_region
    _
  $region9: #{tpu_custom_call.1} parent=0 // pred_fallthru
    _
  // Predicated region
  $region10: #{tpu_custom_call.1} parent=0 // pred_check
    _
  $region11: #{tpu_custom_call.1} parent=0 // pred_check_branch
    %14 = sbr.rel (0) target = $region13
  $region12: #{tpu_custom_call.1} parent=0 // pred_region
    _
  $region13: #{tpu_custom_call.1} parent=0 // pred_fallthru
    _
  // Predicated region
  $region14: #{tpu_custom_call.1} parent=0 // pred_check
    _
  $region15: #{tpu_custom_call.1} parent=0 // pred_check_branch
    %16 = sbr.rel (0) target = $region17
  $region16: #{tpu_custom_call.1} parent=0 // pred_region
    _
  $region17: #{tpu_custom_call.1} parent=0 // pred_fallthru
    _
  %v17 = vld [vmem:[%s0] sm:$0xff]
  %v18 = vld [vmem:[%s0 + $0x8] sm:$0xff]
  %v19 = vld [vmem:[%s0 + $0x10] sm:$0xff]
  %v20 = vld [vmem:[%s0 + $0x18] sm:$0xff]
  %v21 = vld [vmem:[%s0 + $0x20] sm:$0xff]
  %v22 = vld [vmem:[%s0 + $0x28] sm:$0xff]
  %v23 = vld [vmem:[%s0 + $0x30] sm:$0xff]
  %v24 = vld [vmem:[%s0 + $0x38] sm:$0xff]
  %v25 = vld [vmem:[%s0 + $0x40] sm:$0xff]
  %v26 = vld [vmem:[%s0 + $0x48] sm:$0xff]
  %v27 = vld [vmem:[%s0 + $0x50] sm:$0xff]
  %v28 = vld [vmem:[%s0 + $0x58] sm:$0xff]
  %v29 = vld [vmem:[%s0 + $0x60] sm:$0xff]
  %v30 = vld [vmem:[%s0 + $0x68] sm:$0xff]
  %v31 = vld [vmem:[%s0 + $0x70] sm:$0xff]
  %v32 = vld [vmem:[%s0 + $0x78] sm:$0xff]
  %v33 = vld [vmem:[%s3] sm:$0xf]
  %v34 = vld [vmem:[%s1] sm:$0xff]
  %v35 = vld [vmem:[%s1 + $0x8] sm:$0xff]
  %v36 = vld [vmem:[%s1 + $0x10] sm:$0xff]
  %v37 = vld [vmem:[%s1 + $0x18] sm:$0xff]
  %v38 = vperm.slane %v33, 0
  %vm39 = vcmask 261120
  %v41 = vsel %vm39, %v17, 0
  %v44 = vsel %vm39, %v18, 0
  %v47 = vsel %vm39, %v19, 0
  %v50 = vsel %vm39, %v20, 0
  %v53 = vsel %vm39, %v21, 0
  %v56 = vsel %vm39, %v22, 0
  %v59 = vsel %vm39, %v23, 0
  %v62 = vsel %vm39, %v24, 0
  %v65 = vsel %vm39, %v25, 0
  %v68 = vsel %vm39, %v26, 0
  %v71 = vsel %vm39, %v27, 0
  %v74 = vsel %vm39, %v28, 0
  %v77 = vsel %vm39, %v29, 0
  %v80 = vsel %vm39, %v30, 0
  %v83 = vsel %vm39, %v31, 0
  %v86 = vsel %vm39, %v32, 0
  %88 = vmatpush.msra.mxu0 0.0
  %89 = vmatpush.msra.mxu0 0.0
  %90 = vmatpush.msra.mxu0 0.0
  %91 = vmatpush.msra.mxu0 0.0
  %92 = vmatpush.msra.mxu0 0.0
  %93 = vmatpush.msra.mxu0 0.0
  %94 = vmatpush.msra.mxu0 0.0
  %95 = vmatpush.msra.mxu0 0.0
  %96 = vmatpush.msra.mxu0 0.0
  %97 = vmatpush.msra.mxu0 0.0
  %98 = vmatpush.msra.mxu0 0.0
  %99 = vmatpush.msra.mxu0 0.0
  %100 = vmatpush.msra.mxu0 %v37
  %101 = vmatpush.msra.mxu0 %v36
  %102 = vmatpush.msra.mxu0 %v35
  %103 = vmatpush.msra.mxu0 %v34
  %104 = vmatmul.f32.gmra.mxu0 %v41
  %v105 = vpop.f32.mrf.mxu0
  %v106 = vadd.f32 %v38, %v105
  %107 = vmatmul.f32.gmra.mxu0 %v44
  %v108 = vpop.f32.mrf.mxu0
  %v109 = vadd.f32 %v38, %v108
  %110 = vmatmul.f32.gmra.mxu0 %v47
  %v111 = vpop.f32.mrf.mxu0
  %v112 = vadd.f32 %v38, %v111
  %113 = vmatmul.f32.gmra.mxu0 %v50
  %v114 = vpop.f32.mrf.mxu0
  %v115 = vadd.f32 %v38, %v114
  %116 = vmatmul.f32.gmra.mxu0 %v53
  %v117 = vpop.f32.mrf.mxu0
  %v118 = vadd.f32 %v38, %v117
  %119 = vmatmul.f32.gmra.mxu0 %v56
  %v120 = vpop.f32.mrf.mxu0
  %v121 = vadd.f32 %v38, %v120
  %122 = vmatmul.f32.gmra.mxu0 %v59
  %v123 = vpop.f32.mrf.mxu0
  %v124 = vadd.f32 %v38, %v123
  %125 = vmatmul.f32.gmra.mxu0 %v62
  %v126 = vpop.f32.mrf.mxu0
  %v127 = vadd.f32 %v38, %v126
  %128 = vmatmul.f32.gmra.mxu0 %v65
  %v129 = vpop.f32.mrf.mxu0
  %v130 = vadd.f32 %v38, %v129
  %131 = vmatmul.f32.gmra.mxu0 %v68
  %v132 = vpop.f32.mrf.mxu0
  %v133 = vadd.f32 %v38, %v132
  %134 = vmatmul.f32.gmra.mxu0 %v71
  %v135 = vpop.f32.mrf.mxu0
  %v136 = vadd.f32 %v38, %v135
  %137 = vmatmul.f32.gmra.mxu0 %v74
  %v138 = vpop.f32.mrf.mxu0
  %v139 = vadd.f32 %v38, %v138
  %140 = vmatmul.f32.gmra.mxu0 %v77
  %v141 = vpop.f32.mrf.mxu0
  %v142 = vadd.f32 %v38, %v141
  %143 = vmatmul.f32.gmra.mxu0 %v80
  %v144 = vpop.f32.mrf.mxu0
  %v145 = vadd.f32 %v38, %v144
  %146 = vmatmul.f32.gmra.mxu0 %v83
  %v147 = vpop.f32.mrf.mxu0
  %v148 = vadd.f32 %v38, %v147
  %149 = vmatmul.f32.gmra.mxu0 %v86
  %v150 = vpop.f32.mrf.mxu0
  %v151 = vadd.f32 %v38, %v150
  %152 = vdwg.mxu0
  %161 = vrot.lane.b32.xlu0 %v106, 96
  %v162 = vpop.permute.xlu0 %161
  %163 = vrot.lane.b32.xlu0 %v109, 96
  %v164 = vpop.permute.xlu0 %163
  %165 = vrot.lane.b32.xlu0 %v112, 96
  %v166 = vpop.permute.xlu0 %165
  %167 = vrot.lane.b32.xlu0 %v115, 96
  %v168 = vpop.permute.xlu0 %167
  %169 = vrot.lane.b32.xlu0 %v118, 96
  %v170 = vpop.permute.xlu0 %169
  %171 = vrot.lane.b32.xlu0 %v121, 96
  %v172 = vpop.permute.xlu0 %171
  %173 = vrot.lane.b32.xlu0 %v124, 96
  %v174 = vpop.permute.xlu0 %173
  %175 = vrot.lane.b32.xlu0 %v127, 96
  %v176 = vpop.permute.xlu0 %175
  %vm177 = vcmask 64512
  %v178 = vsel %vm177, %v106, 0
  %v180 = vsel %vm177, %v109, 0
  %v182 = vsel %vm177, %v112, 0
  %v184 = vsel %vm177, %v115, 0
  %v186 = vsel %vm177, %v118, 0
  %v188 = vsel %vm177, %v121, 0
  %v190 = vsel %vm177, %v124, 0
  %v192 = vsel %vm177, %v127, 0
  %v194 = vsel %vm177, %v162, 0
  %v196 = vsel %vm177, %v164, 0
  %v198 = vsel %vm177, %v166, 0
  %v200 = vsel %vm177, %v168, 0
  %v202 = vsel %vm177, %v170, 0
  %v204 = vsel %vm177, %v172, 0
  %v206 = vsel %vm177, %v174, 0
  %v208 = vsel %vm177, %v176, 0
  %210 = vmatpush.xpose.msra.mxu0 0.0
  %211 = vmatpush.xpose.msra.mxu0 0.0
  %212 = vmatpush.xpose.msra.mxu0 0.0
  %213 = vmatpush.xpose.msra.mxu0 0.0
  %214 = vmatpush.xpose.msra.mxu0 0.0
  %215 = vmatpush.xpose.msra.mxu0 0.0
  %216 = vmatpush.xpose.msra.mxu0 0.0
  %217 = vmatpush.xpose.msra.mxu0 0.0
  %218 = vmatpush.xpose.msra.mxu0 %v208
  %219 = vmatpush.xpose.msra.mxu0 %v206
  %220 = vmatpush.xpose.msra.mxu0 %v204
  %221 = vmatpush.xpose.msra.mxu0 %v202
  %222 = vmatpush.xpose.msra.mxu0 %v200
  %223 = vmatpush.xpose.msra.mxu0 %v198
  %224 = vmatpush.xpose.msra.mxu0 %v196
  %225 = vmatpush.xpose.msra.mxu0 %v194
  %226 = vmatmul.f32.gmra.mxu0 %v178
  %v227 = vpop.f32.mrf.mxu0
  %v228 = vadd.f32 0.0, %v227
  %229 = vmatmul.f32.gmra.mxu0 %v180
  %v230 = vpop.f32.mrf.mxu0
  %v231 = vadd.f32 0.0, %v230
  %232 = vmatmul.f32.gmra.mxu0 %v182
  %v233 = vpop.f32.mrf.mxu0
  %v234 = vadd.f32 0.0, %v233
  %235 = vmatmul.f32.gmra.mxu0 %v184
  %v236 = vpop.f32.mrf.mxu0
  %v237 = vadd.f32 0.0, %v236
  %238 = vmatmul.f32.gmra.mxu0 %v186
  %v239 = vpop.f32.mrf.mxu0
  %v240 = vadd.f32 0.0, %v239
  %241 = vmatmul.f32.gmra.mxu0 %v188
  %v242 = vpop.f32.mrf.mxu0
  %v243 = vadd.f32 0.0, %v242
  %244 = vmatmul.f32.gmra.mxu0 %v190
  %v245 = vpop.f32.mrf.mxu0
  %v246 = vadd.f32 0.0, %v245
  %247 = vmatmul.f32.gmra.mxu0 %v192
  %v248 = vpop.f32.mrf.mxu0
  %v249 = vadd.f32 0.0, %v248
  %250 = vdwg.mxu0
  %259 = vrot.lane.b32.xlu0 %v130, 96
  %v260 = vpop.permute.xlu0 %259
  %261 = vrot.lane.b32.xlu0 %v133, 96
  %v262 = vpop.permute.xlu0 %261
  %263 = vrot.lane.b32.xlu0 %v136, 96
  %v264 = vpop.permute.xlu0 %263
  %265 = vrot.lane.b32.xlu0 %v139, 96
  %v266 = vpop.permute.xlu0 %265
  %267 = vrot.lane.b32.xlu0 %v142, 96
  %v268 = vpop.permute.xlu0 %267
  %269 = vrot.lane.b32.xlu0 %v145, 96
  %v270 = vpop.permute.xlu0 %269
  %271 = vrot.lane.b32.xlu0 %v148, 96
  %v272 = vpop.permute.xlu0 %271
  %273 = vrot.lane.b32.xlu0 %v151, 96
  %v274 = vpop.permute.xlu0 %273
  %v275 = vsel %vm177, %v130, 0
  %v277 = vsel %vm177, %v133, 0
  %v279 = vsel %vm177, %v136, 0
  %v281 = vsel %vm177, %v139, 0
  %v283 = vsel %vm177, %v142, 0
  %v285 = vsel %vm177, %v145, 0
  %v287 = vsel %vm177, %v148, 0
  %v289 = vsel %vm177, %v151, 0
  %v291 = vsel %vm177, %v260, 0
  %v293 = vsel %vm177, %v262, 0
  %v295 = vsel %vm177, %v264, 0
  %v297 = vsel %vm177, %v266, 0
  %v299 = vsel %vm177, %v268, 0
  %v301 = vsel %vm177, %v270, 0
  %v303 = vsel %vm177, %v272, 0
  %v305 = vsel %vm177, %v274, 0
  %307 = vmatpush.xpose.msra.mxu0 0.0
  %308 = vmatpush.xpose.msra.mxu0 0.0
  %309 = vmatpush.xpose.msra.mxu0 0.0
  %310 = vmatpush.xpose.msra.mxu0 0.0
  %311 = vmatpush.xpose.msra.mxu0 0.0
  %312 = vmatpush.xpose.msra.mxu0 0.0
  %313 = vmatpush.xpose.msra.mxu0 0.0
  %314 = vmatpush.xpose.msra.mxu0 0.0
  %315 = vmatpush.xpose.msra.mxu0 %v305
  %316 = vmatpush.xpose.msra.mxu0 %v303
  %317 = vmatpush.xpose.msra.mxu0 %v301
  %318 = vmatpush.xpose.msra.mxu0 %v299
  %319 = vmatpush.xpose.msra.mxu0 %v297
  %320 = vmatpush.xpose.msra.mxu0 %v295
  %321 = vmatpush.xpose.msra.mxu0 %v293
  %322 = vmatpush.xpose.msra.mxu0 %v291
  %323 = vmatmul.f32.gmra.mxu0 %v275
  %v324 = vpop.f32.mrf.mxu0
  %v325 = vadd.f32 0.0, %v324
  %326 = vmatmul.f32.gmra.mxu0 %v277
  %v327 = vpop.f32.mrf.mxu0
  %v328 = vadd.f32 0.0, %v327
  %329 = vmatmul.f32.gmra.mxu0 %v279
  %v330 = vpop.f32.mrf.mxu0
  %v331 = vadd.f32 0.0, %v330
  %332 = vmatmul.f32.gmra.mxu0 %v281
  %v333 = vpop.f32.mrf.mxu0
  %v334 = vadd.f32 0.0, %v333
  %335 = vmatmul.f32.gmra.mxu0 %v283
  %v336 = vpop.f32.mrf.mxu0
  %v337 = vadd.f32 0.0, %v336
  %338 = vmatmul.f32.gmra.mxu0 %v285
  %v339 = vpop.f32.mrf.mxu0
  %v340 = vadd.f32 0.0, %v339
  %341 = vmatmul.f32.gmra.mxu0 %v287
  %v342 = vpop.f32.mrf.mxu0
  %v343 = vadd.f32 0.0, %v342
  %344 = vmatmul.f32.gmra.mxu0 %v289
  %v345 = vpop.f32.mrf.mxu0
  %v346 = vadd.f32 0.0, %v345
  %347 = vdwg.mxu0
  %vm348 = vcmask 523264
  %v349 = vsel %vm348, %v228, -inf
  %350 = vmax.xlane.f32.xlu0 %v349
  %v351 = vpop.xlane.xlu0 %350
  %v352 = vsel %vm348, %v231, -inf
  %353 = vmax.xlane.f32.xlu0 %v352
  %v354 = vpop.xlane.xlu0 %353
  %v355 = vsel %vm348, %v234, -inf
  %356 = vmax.xlane.f32.xlu0 %v355
  %v357 = vpop.xlane.xlu0 %356
  %v358 = vsel %vm348, %v237, -inf
  %359 = vmax.xlane.f32.xlu0 %v358
  %v360 = vpop.xlane.xlu0 %359
  %v361 = vsel %vm348, %v240, -inf
  %362 = vmax.xlane.f32.xlu0 %v361
  %v363 = vpop.xlane.xlu0 %362
  %v364 = vsel %vm348, %v243, -inf
  %365 = vmax.xlane.f32.xlu0 %v364
  %v366 = vpop.xlane.xlu0 %365
  %v367 = vsel %vm348, %v246, -inf
  %368 = vmax.xlane.f32.xlu0 %v367
  %v369 = vpop.xlane.xlu0 %368
  %v370 = vsel %vm348, %v249, -inf
  %371 = vmax.xlane.f32.xlu0 %v370
  %v372 = vpop.xlane.xlu0 %371
  %v373 = vsel %vm348, %v325, -inf
  %374 = vmax.xlane.f32.xlu0 %v373
  %v375 = vpop.xlane.xlu0 %374
  %v376 = vsel %vm348, %v328, -inf
  %377 = vmax.xlane.f32.xlu0 %v376
  %v378 = vpop.xlane.xlu0 %377
  %v379 = vsel %vm348, %v331, -inf
  %380 = vmax.xlane.f32.xlu0 %v379
  %v381 = vpop.xlane.xlu0 %380
  %v382 = vsel %vm348, %v334, -inf
  %383 = vmax.xlane.f32.xlu0 %v382
  %v384 = vpop.xlane.xlu0 %383
  %v385 = vsel %vm348, %v337, -inf
  %386 = vmax.xlane.f32.xlu0 %v385
  %v387 = vpop.xlane.xlu0 %386
  %v388 = vsel %vm348, %v340, -inf
  %389 = vmax.xlane.f32.xlu0 %v388
  %v390 = vpop.xlane.xlu0 %389
  %v391 = vsel %vm348, %v343, -inf
  %392 = vmax.xlane.f32.xlu0 %v391
  %v393 = vpop.xlane.xlu0 %392
  %v394 = vsel %vm348, %v346, -inf
  %395 = vmax.xlane.f32.xlu0 %v394
  %v396 = vpop.xlane.xlu0 %395
  %v397 = vsub.f32 %v228, %v351
  %v398 = vsub.f32 %v231, %v354
  %v399 = vsub.f32 %v234, %v357
  %v400 = vsub.f32 %v237, %v360
  %v401 = vsub.f32 %v240, %v363
  %v402 = vsub.f32 %v243, %v366
  %v403 = vsub.f32 %v246, %v369
  %v404 = vsub.f32 %v249, %v372
  %v405 = vsub.f32 %v325, %v375
  %v406 = vsub.f32 %v328, %v378
  %v407 = vsub.f32 %v331, %v381
  %v408 = vsub.f32 %v334, %v384
  %v409 = vsub.f32 %v337, %v387
  %v410 = vsub.f32 %v340, %v390
  %v411 = vsub.f32 %v343, %v393
  %v412 = vsub.f32 %v346, %v396
  %v413 = vmul.f32 %v397, 1.442695
  %v414 = vpow.pop %v413
  %v415 = vmul.f32 %v398, 1.442695
  %v416 = vpow.pop %v415
  %v417 = vmul.f32 %v399, 1.442695
  %v418 = vpow.pop %v417
  %v419 = vmul.f32 %v400, 1.442695
  %v420 = vpow.pop %v419
  %v421 = vmul.f32 %v401, 1.442695
  %v422 = vpow.pop %v421
  %v423 = vmul.f32 %v402, 1.442695
  %v424 = vpow.pop %v423
  %v425 = vmul.f32 %v403, 1.442695
  %v426 = vpow.pop %v425
  %v427 = vmul.f32 %v404, 1.442695
  %v428 = vpow.pop %v427
  %v429 = vmul.f32 %v405, 1.442695
  %v430 = vpow.pop %v429
  %v431 = vmul.f32 %v406, 1.442695
  %v432 = vpow.pop %v431
  %v433 = vmul.f32 %v407, 1.442695
  %v434 = vpow.pop %v433
  %v435 = vmul.f32 %v408, 1.442695
  %v436 = vpow.pop %v435
  %v437 = vmul.f32 %v409, 1.442695
  %v438 = vpow.pop %v437
  %v439 = vmul.f32 %v410, 1.442695
  %v440 = vpow.pop %v439
  %v441 = vmul.f32 %v411, 1.442695
  %v442 = vpow.pop %v441
  %v443 = vmul.f32 %v412, 1.442695
  %v444 = vpow.pop %v443
  %v445 = vsel %vm348, %v414, 0.0
  %446 = vadd.xlane.f32.xlu0 %v445
  %v447 = vpop.xlane.xlu0 %446
  %v448 = vsel %vm348, %v416, 0.0
  %449 = vadd.xlane.f32.xlu0 %v448
  %v450 = vpop.xlane.xlu0 %449
  %v451 = vsel %vm348, %v418, 0.0
  %452 = vadd.xlane.f32.xlu0 %v451
  %v453 = vpop.xlane.xlu0 %452
  %v454 = vsel %vm348, %v420, 0.0
  %455 = vadd.xlane.f32.xlu0 %v454
  %v456 = vpop.xlane.xlu0 %455
  %v457 = vsel %vm348, %v422, 0.0
  %458 = vadd.xlane.f32.xlu0 %v457
  %v459 = vpop.xlane.xlu0 %458
  %v460 = vsel %vm348, %v424, 0.0
  %461 = vadd.xlane.f32.xlu0 %v460
  %v462 = vpop.xlane.xlu0 %461
  %v463 = vsel %vm348, %v426, 0.0
  %464 = vadd.xlane.f32.xlu0 %v463
  %v465 = vpop.xlane.xlu0 %464
  %v466 = vsel %vm348, %v428, 0.0
  %467 = vadd.xlane.f32.xlu0 %v466
  %v468 = vpop.xlane.xlu0 %467
  %v469 = vsel %vm348, %v430, 0.0
  %470 = vadd.xlane.f32.xlu0 %v469
  %v471 = vpop.xlane.xlu0 %470
  %v472 = vsel %vm348, %v432, 0.0
  %473 = vadd.xlane.f32.xlu0 %v472
  %v474 = vpop.xlane.xlu0 %473
  %v475 = vsel %vm348, %v434, 0.0
  %476 = vadd.xlane.f32.xlu0 %v475
  %v477 = vpop.xlane.xlu0 %476
  %v478 = vsel %vm348, %v436, 0.0
  %479 = vadd.xlane.f32.xlu0 %v478
  %v480 = vpop.xlane.xlu0 %479
  %v481 = vsel %vm348, %v438, 0.0
  %482 = vadd.xlane.f32.xlu0 %v481
  %v483 = vpop.xlane.xlu0 %482
  %v484 = vsel %vm348, %v440, 0.0
  %485 = vadd.xlane.f32.xlu0 %v484
  %v486 = vpop.xlane.xlu0 %485
  %v487 = vsel %vm348, %v442, 0.0
  %488 = vadd.xlane.f32.xlu0 %v487
  %v489 = vpop.xlane.xlu0 %488
  %v490 = vsel %vm348, %v444, 0.0
  %491 = vadd.xlane.f32.xlu0 %v490
  %v492 = vpop.xlane.xlu0 %491
  %v493 = vrcp.pop %v447
  %v494 = vmul.f32 %v447, %v493
  %v495 = vsub.f32 1.0, %v494
  %v496 = vmul.f32 %v493, %v495
  %v497 = vadd.f32 %v493, %v496
  %vm498 = vweird.f32 %v447
  %vm499 = vweird.f32 %v493
  %vm500 = vmor %vm498, %vm499
  %v501 = vsel %vm500, %v493, %v497
  %v502 = vand.u32 2147483647, %v447
  %vm503 = vcmp.eq.f32.partialorder %v502, 8.507059e+37
  %v504 = vand.u32 %v447, 2147483648
  %v505 = vor.u32 1.1754944e-38, %v504
  %v506 = vsel %vm503, %v505, %v501
  %v507 = vrcp.pop %v450
  %v508 = vmul.f32 %v450, %v507
  %v509 = vsub.f32 1.0, %v508
  %v510 = vmul.f32 %v507, %v509
  %v511 = vadd.f32 %v507, %v510
  %vm512 = vweird.f32 %v450
  %vm513 = vweird.f32 %v507
  %vm514 = vmor %vm512, %vm513
  %v515 = vsel %vm514, %v507, %v511
  %v516 = vand.u32 2147483647, %v450
  %vm517 = vcmp.eq.f32.partialorder %v516, 8.507059e+37
  %v518 = vand.u32 %v450, 2147483648
  %v519 = vor.u32 1.1754944e-38, %v518
  %v520 = vsel %vm517, %v519, %v515
  %v521 = vrcp.pop %v453
  %v522 = vmul.f32 %v453, %v521
  %v523 = vsub.f32 1.0, %v522
  %v524 = vmul.f32 %v521, %v523
  %v525 = vadd.f32 %v521, %v524
  %vm526 = vweird.f32 %v453
  %vm527 = vweird.f32 %v521
  %vm528 = vmor %vm526, %vm527
  %v529 = vsel %vm528, %v521, %v525
  %v530 = vand.u32 2147483647, %v453
  %vm531 = vcmp.eq.f32.partialorder %v530, 8.507059e+37
  %v532 = vand.u32 %v453, 2147483648
  %v533 = vor.u32 1.1754944e-38, %v532
  %v534 = vsel %vm531, %v533, %v529
  %v535 = vrcp.pop %v456
  %v536 = vmul.f32 %v456, %v535
  %v537 = vsub.f32 1.0, %v536
  %v538 = vmul.f32 %v535, %v537
  %v539 = vadd.f32 %v535, %v538
  %vm540 = vweird.f32 %v456
  %vm541 = vweird.f32 %v535
  %vm542 = vmor %vm540, %vm541
  %v543 = vsel %vm542, %v535, %v539
  %v544 = vand.u32 2147483647, %v456
  %vm545 = vcmp.eq.f32.partialorder %v544, 8.507059e+37
  %v546 = vand.u32 %v456, 2147483648
  %v547 = vor.u32 1.1754944e-38, %v546
  %v548 = vsel %vm545, %v547, %v543
  %v549 = vrcp.pop %v459
  %v550 = vmul.f32 %v459, %v549
  %v551 = vsub.f32 1.0, %v550
  %v552 = vmul.f32 %v549, %v551
  %v553 = vadd.f32 %v549, %v552
  %vm554 = vweird.f32 %v459
  %vm555 = vweird.f32 %v549
  %vm556 = vmor %vm554, %vm555
  %v557 = vsel %vm556, %v549, %v553
  %v558 = vand.u32 2147483647, %v459
  %vm559 = vcmp.eq.f32.partialorder %v558, 8.507059e+37
  %v560 = vand.u32 %v459, 2147483648
  %v561 = vor.u32 1.1754944e-38, %v560
  %v562 = vsel %vm559, %v561, %v557
  %v563 = vrcp.pop %v462
  %v564 = vmul.f32 %v462, %v563
  %v565 = vsub.f32 1.0, %v564
  %v566 = vmul.f32 %v563, %v565
  %v567 = vadd.f32 %v563, %v566
  %vm568 = vweird.f32 %v462
  %vm569 = vweird.f32 %v563
  %vm570 = vmor %vm568, %vm569
  %v571 = vsel %vm570, %v563, %v567
  %v572 = vand.u32 2147483647, %v462
  %vm573 = vcmp.eq.f32.partialorder %v572, 8.507059e+37
  %v574 = vand.u32 %v462, 2147483648
  %v575 = vor.u32 1.1754944e-38, %v574
  %v576 = vsel %vm573, %v575, %v571
  %v577 = vrcp.pop %v465
  %v578 = vmul.f32 %v465, %v577
  %v579 = vsub.f32 1.0, %v578
  %v580 = vmul.f32 %v577, %v579
  %v581 = vadd.f32 %v577, %v580
  %vm582 = vweird.f32 %v465
  %vm583 = vweird.f32 %v577
  %vm584 = vmor %vm582, %vm583
  %v585 = vsel %vm584, %v577, %v581
  %v586 = vand.u32 2147483647, %v465
  %vm587 = vcmp.eq.f32.partialorder %v586, 8.507059e+37
  %v588 = vand.u32 %v465, 2147483648
  %v589 = vor.u32 1.1754944e-38, %v588
  %v590 = vsel %vm587, %v589, %v585
  %v591 = vrcp.pop %v468
  %v592 = vmul.f32 %v468, %v591
  %v593 = vsub.f32 1.0, %v592
  %v594 = vmul.f32 %v591, %v593
  %v595 = vadd.f32 %v591, %v594
  %vm596 = vweird.f32 %v468
  %vm597 = vweird.f32 %v591
  %vm598 = vmor %vm596, %vm597
  %v599 = vsel %vm598, %v591, %v595
  %v600 = vand.u32 2147483647, %v468
  %vm601 = vcmp.eq.f32.partialorder %v600, 8.507059e+37
  %v602 = vand.u32 %v468, 2147483648
  %v603 = vor.u32 1.1754944e-38, %v602
  %v604 = vsel %vm601, %v603, %v599
  %v605 = vrcp.pop %v471
  %v606 = vmul.f32 %v471, %v605
  %v607 = vsub.f32 1.0, %v606
  %v608 = vmul.f32 %v605, %v607
  %v609 = vadd.f32 %v605, %v608
  %vm610 = vweird.f32 %v471
  %vm611 = vweird.f32 %v605
  %vm612 = vmor %vm610, %vm611
  %v613 = vsel %vm612, %v605, %v609
  %v614 = vand.u32 2147483647, %v471
  %vm615 = vcmp.eq.f32.partialorder %v614, 8.507059e+37
  %v616 = vand.u32 %v471, 2147483648
  %v617 = vor.u32 1.1754944e-38, %v616
  %v618 = vsel %vm615, %v617, %v613
  %v619 = vrcp.pop %v474
  %v620 = vmul.f32 %v474, %v619
  %v621 = vsub.f32 1.0, %v620
  %v622 = vmul.f32 %v619, %v621
  %v623 = vadd.f32 %v619, %v622
  %vm624 = vweird.f32 %v474
  %vm625 = vweird.f32 %v619
  %vm626 = vmor %vm624, %vm625
  %v627 = vsel %vm626, %v619, %v623
  %v628 = vand.u32 2147483647, %v474
  %vm629 = vcmp.eq.f32.partialorder %v628, 8.507059e+37
  %v630 = vand.u32 %v474, 2147483648
  %v631 = vor.u32 1.1754944e-38, %v630
  %v632 = vsel %vm629, %v631, %v627
  %v633 = vrcp.pop %v477
  %v634 = vmul.f32 %v477, %v633
  %v635 = vsub.f32 1.0, %v634
  %v636 = vmul.f32 %v633, %v635
  %v637 = vadd.f32 %v633, %v636
  %vm638 = vweird.f32 %v477
  %vm639 = vweird.f32 %v633
  %vm640 = vmor %vm638, %vm639
  %v641 = vsel %vm640, %v633, %v637
  %v642 = vand.u32 2147483647, %v477
  %vm643 = vcmp.eq.f32.partialorder %v642, 8.507059e+37
  %v644 = vand.u32 %v477, 2147483648
  %v645 = vor.u32 1.1754944e-38, %v644
  %v646 = vsel %vm643, %v645, %v641
  %v647 = vrcp.pop %v480
  %v648 = vmul.f32 %v480, %v647
  %v649 = vsub.f32 1.0, %v648
  %v650 = vmul.f32 %v647, %v649
  %v651 = vadd.f32 %v647, %v650
  %vm652 = vweird.f32 %v480
  %vm653 = vweird.f32 %v647
  %vm654 = vmor %vm652, %vm653
  %v655 = vsel %vm654, %v647, %v651
  %v656 = vand.u32 2147483647, %v480
  %vm657 = vcmp.eq.f32.partialorder %v656, 8.507059e+37
  %v658 = vand.u32 %v480, 2147483648
  %v659 = vor.u32 1.1754944e-38, %v658
  %v660 = vsel %vm657, %v659, %v655
  %v661 = vrcp.pop %v483
  %v662 = vmul.f32 %v483, %v661
  %v663 = vsub.f32 1.0, %v662
  %v664 = vmul.f32 %v661, %v663
  %v665 = vadd.f32 %v661, %v664
  %vm666 = vweird.f32 %v483
  %vm667 = vweird.f32 %v661
  %vm668 = vmor %vm666, %vm667
  %v669 = vsel %vm668, %v661, %v665
  %v670 = vand.u32 2147483647, %v483
  %vm671 = vcmp.eq.f32.partialorder %v670, 8.507059e+37
  %v672 = vand.u32 %v483, 2147483648
  %v673 = vor.u32 1.1754944e-38, %v672
  %v674 = vsel %vm671, %v673, %v669
  %v675 = vrcp.pop %v486
  %v676 = vmul.f32 %v486, %v675
  %v677 = vsub.f32 1.0, %v676
  %v678 = vmul.f32 %v675, %v677
  %v679 = vadd.f32 %v675, %v678
  %vm680 = vweird.f32 %v486
  %vm681 = vweird.f32 %v675
  %vm682 = vmor %vm680, %vm681
  %v683 = vsel %vm682, %v675, %v679
  %v684 = vand.u32 2147483647, %v486
  %vm685 = vcmp.eq.f32.partialorder %v684, 8.507059e+37
  %v686 = vand.u32 %v486, 2147483648
  %v687 = vor.u32 1.1754944e-38, %v686
  %v688 = vsel %vm685, %v687, %v683
  %v689 = vrcp.pop %v489
  %v690 = vmul.f32 %v489, %v689
  %v691 = vsub.f32 1.0, %v690
  %v692 = vmul.f32 %v689, %v691
  %v693 = vadd.f32 %v689, %v692
  %vm694 = vweird.f32 %v489
  %vm695 = vweird.f32 %v689
  %vm696 = vmor %vm694, %vm695
  %v697 = vsel %vm696, %v689, %v693
  %v698 = vand.u32 2147483647, %v489
  %vm699 = vcmp.eq.f32.partialorder %v698, 8.507059e+37
  %v700 = vand.u32 %v489, 2147483648
  %v701 = vor.u32 1.1754944e-38, %v700
  %v702 = vsel %vm699, %v701, %v697
  %v703 = vrcp.pop %v492
  %v704 = vmul.f32 %v492, %v703
  %v705 = vsub.f32 1.0, %v704
  %v706 = vmul.f32 %v703, %v705
  %v707 = vadd.f32 %v703, %v706
  %vm708 = vweird.f32 %v492
  %vm709 = vweird.f32 %v703
  %vm710 = vmor %vm708, %vm709
  %v711 = vsel %vm710, %v703, %v707
  %v712 = vand.u32 2147483647, %v492
  %vm713 = vcmp.eq.f32.partialorder %v712, 8.507059e+37
  %v714 = vand.u32 %v492, 2147483648
  %v715 = vor.u32 1.1754944e-38, %v714
  %v716 = vsel %vm713, %v715, %v711
  %v717 = vmul.f32 %v414, %v506
  %v718 = vmul.f32 %v416, %v520
  %v719 = vmul.f32 %v418, %v534
  %v720 = vmul.f32 %v420, %v548
  %v721 = vmul.f32 %v422, %v562
  %v722 = vmul.f32 %v424, %v576
  %v723 = vmul.f32 %v426, %v590
  %v724 = vmul.f32 %v428, %v604
  %v725 = vmul.f32 %v430, %v618
  %v726 = vmul.f32 %v432, %v632
  %v727 = vmul.f32 %v434, %v646
  %v728 = vmul.f32 %v436, %v660
  %v729 = vmul.f32 %v438, %v674
  %v730 = vmul.f32 %v440, %v688
  %v731 = vmul.f32 %v442, %v702
  %v732 = vmul.f32 %v444, %v716
  %733 = vrot.lane.b32.xlu0 %v106, 64
  %v734 = vpop.permute.xlu0 %733
  %735 = vrot.lane.b32.xlu0 %v109, 64
  %v736 = vpop.permute.xlu0 %735
  %737 = vrot.lane.b32.xlu0 %v112, 64
  %v738 = vpop.permute.xlu0 %737
  %739 = vrot.lane.b32.xlu0 %v115, 64
  %v740 = vpop.permute.xlu0 %739
  %741 = vrot.lane.b32.xlu0 %v118, 64
  %v742 = vpop.permute.xlu0 %741
  %743 = vrot.lane.b32.xlu0 %v121, 64
  %v744 = vpop.permute.xlu0 %743
  %745 = vrot.lane.b32.xlu0 %v124, 64
  %v746 = vpop.permute.xlu0 %745
  %747 = vrot.lane.b32.xlu0 %v127, 64
  %v748 = vpop.permute.xlu0 %747
  %v758 = vsel %vm348, %v717, 0
  %v761 = vsel %vm348, %v718, 0
  %v764 = vsel %vm348, %v719, 0
  %v767 = vsel %vm348, %v720, 0
  %v770 = vsel %vm348, %v721, 0
  %v773 = vsel %vm348, %v722, 0
  %v776 = vsel %vm348, %v723, 0
  %v779 = vsel %vm348, %v724, 0
  %781 = vmatpush.msra.mxu0 0.0
  %782 = vmatpush.msra.mxu0 0.0
  %783 = vmatpush.msra.mxu0 0.0
  %784 = vmatpush.msra.mxu0 0.0
  %785 = vmatpush.msra.mxu0 0.0
  %786 = vmatpush.msra.mxu0 0.0
  %787 = vmatpush.msra.mxu0 0.0
  %788 = vmatpush.msra.mxu0 0.0
  %789 = vmatpush.msra.mxu0 %v748
  %790 = vmatpush.msra.mxu0 %v746
  %791 = vmatpush.msra.mxu0 %v744
  %792 = vmatpush.msra.mxu0 %v742
  %793 = vmatpush.msra.mxu0 %v740
  %794 = vmatpush.msra.mxu0 %v738
  %795 = vmatpush.msra.mxu0 %v736
  %796 = vmatpush.msra.mxu0 %v734
  %797 = vmatmul.f32.gmra.mxu0 %v758
  %v798 = vpop.f32.mrf.mxu0
  %v799 = vadd.f32 0.0, %v798
  %800 = vmatmul.f32.gmra.mxu0 %v761
  %v801 = vpop.f32.mrf.mxu0
  %v802 = vadd.f32 0.0, %v801
  %803 = vmatmul.f32.gmra.mxu0 %v764
  %v804 = vpop.f32.mrf.mxu0
  %v805 = vadd.f32 0.0, %v804
  %806 = vmatmul.f32.gmra.mxu0 %v767
  %v807 = vpop.f32.mrf.mxu0
  %v808 = vadd.f32 0.0, %v807
  %809 = vmatmul.f32.gmra.mxu0 %v770
  %v810 = vpop.f32.mrf.mxu0
  %v811 = vadd.f32 0.0, %v810
  %812 = vmatmul.f32.gmra.mxu0 %v773
  %v813 = vpop.f32.mrf.mxu0
  %v814 = vadd.f32 0.0, %v813
  %815 = vmatmul.f32.gmra.mxu0 %v776
  %v816 = vpop.f32.mrf.mxu0
  %v817 = vadd.f32 0.0, %v816
  %818 = vmatmul.f32.gmra.mxu0 %v779
  %v819 = vpop.f32.mrf.mxu0
  %v820 = vadd.f32 0.0, %v819
  %821 = vdwg.mxu0
  %822 = vrot.lane.b32.xlu0 %v130, 64
  %v823 = vpop.permute.xlu0 %822
  %824 = vrot.lane.b32.xlu0 %v133, 64
  %v825 = vpop.permute.xlu0 %824
  %826 = vrot.lane.b32.xlu0 %v136, 64
  %v827 = vpop.permute.xlu0 %826
  %828 = vrot.lane.b32.xlu0 %v139, 64
  %v829 = vpop.permute.xlu0 %828
  %830 = vrot.lane.b32.xlu0 %v142, 64
  %v831 = vpop.permute.xlu0 %830
  %832 = vrot.lane.b32.xlu0 %v145, 64
  %v833 = vpop.permute.xlu0 %832
  %834 = vrot.lane.b32.xlu0 %v148, 64
  %v835 = vpop.permute.xlu0 %834
  %836 = vrot.lane.b32.xlu0 %v151, 64
  %v837 = vpop.permute.xlu0 %836
  %v847 = vsel %vm348, %v725, 0
  %v850 = vsel %vm348, %v726, 0
  %v853 = vsel %vm348, %v727, 0
  %v856 = vsel %vm348, %v728, 0
  %v859 = vsel %vm348, %v729, 0
  %v862 = vsel %vm348, %v730, 0
  %v865 = vsel %vm348, %v731, 0
  %v868 = vsel %vm348, %v732, 0
  %870 = vmatpush.msra.mxu0 0.0
  %871 = vmatpush.msra.mxu0 0.0
  %872 = vmatpush.msra.mxu0 0.0
  %873 = vmatpush.msra.mxu0 0.0
  %874 = vmatpush.msra.mxu0 0.0
  %875 = vmatpush.msra.mxu0 0.0
  %876 = vmatpush.msra.mxu0 0.0
  %877 = vmatpush.msra.mxu0 0.0
  %878 = vmatpush.msra.mxu0 %v837
  %879 = vmatpush.msra.mxu0 %v835
  %880 = vmatpush.msra.mxu0 %v833
  %881 = vmatpush.msra.mxu0 %v831
  %882 = vmatpush.msra.mxu0 %v829
  %883 = vmatpush.msra.mxu0 %v827
  %884 = vmatpush.msra.mxu0 %v825
  %885 = vmatpush.msra.mxu0 %v823
  %886 = vmatmul.f32.gmra.mxu0 %v847
  %v887 = vpop.f32.mrf.mxu0
  %v888 = vadd.f32 0.0, %v887
  %889 = vmatmul.f32.gmra.mxu0 %v850
  %v890 = vpop.f32.mrf.mxu0
  %v891 = vadd.f32 0.0, %v890
  %892 = vmatmul.f32.gmra.mxu0 %v853
  %v893 = vpop.f32.mrf.mxu0
  %v894 = vadd.f32 0.0, %v893
  %895 = vmatmul.f32.gmra.mxu0 %v856
  %v896 = vpop.f32.mrf.mxu0
  %v897 = vadd.f32 0.0, %v896
  %898 = vmatmul.f32.gmra.mxu0 %v859
  %v899 = vpop.f32.mrf.mxu0
  %v900 = vadd.f32 0.0, %v899
  %901 = vmatmul.f32.gmra.mxu0 %v862
  %v902 = vpop.f32.mrf.mxu0
  %v903 = vadd.f32 0.0, %v902
  %904 = vmatmul.f32.gmra.mxu0 %v865
  %v905 = vpop.f32.mrf.mxu0
  %v906 = vadd.f32 0.0, %v905
  %907 = vmatmul.f32.gmra.mxu0 %v868
  %v908 = vpop.f32.mrf.mxu0
  %v909 = vadd.f32 0.0, %v908
  %910 = vdwg.mxu0
  %911 = vst.msk [vmem:[#allocation2] sm:$0xff] %vm177, %v799
  %912 = vst.msk [vmem:[#allocation2 + $0x8] sm:$0xff] %vm177, %v802
  %913 = vst.msk [vmem:[#allocation2 + $0x10] sm:$0xff] %vm177, %v805
  %914 = vst.msk [vmem:[#allocation2 + $0x18] sm:$0xff] %vm177, %v808
  %915 = vst.msk [vmem:[#allocation2 + $0x20] sm:$0xff] %vm177, %v811
  %916 = vst.msk [vmem:[#allocation2 + $0x28] sm:$0xff] %vm177, %v814
  %917 = vst.msk [vmem:[#allocation2 + $0x30] sm:$0xff] %vm177, %v817
  %918 = vst.msk [vmem:[#allocation2 + $0x38] sm:$0xff] %vm177, %v820
  %919 = vst.msk [vmem:[#allocation2 + $0x40] sm:$0xff] %vm177, %v888
  %920 = vst.msk [vmem:[#allocation2 + $0x48] sm:$0xff] %vm177, %v891
  %921 = vst.msk [vmem:[#allocation2 + $0x50] sm:$0xff] %vm177, %v894
  %922 = vst.msk [vmem:[#allocation2 + $0x58] sm:$0xff] %vm177, %v897
  %923 = vst.msk [vmem:[#allocation2 + $0x60] sm:$0xff] %vm177, %v900
  %924 = vst.msk [vmem:[#allocation2 + $0x68] sm:$0xff] %vm177, %v903
  %925 = vst.msk [vmem:[#allocation2 + $0x70] sm:$0xff] %vm177, %v906
  %926 = vst.msk [vmem:[#allocation2 + $0x78] sm:$0xff] %vm177, %v909
  %927 = vrot.lane.b32.xlu0 %v106, 120
  %v928 = vpop.permute.xlu0 %927
  %929 = vrot.lane.b32.xlu0 %v109, 120
  %v930 = vpop.permute.xlu0 %929
  %931 = vrot.lane.b32.xlu0 %v112, 120
  %v932 = vpop.permute.xlu0 %931
  %933 = vrot.lane.b32.xlu0 %v115, 120
  %v934 = vpop.permute.xlu0 %933
  %935 = vrot.lane.b32.xlu0 %v118, 120
  %v936 = vpop.permute.xlu0 %935
  %937 = vrot.lane.b32.xlu0 %v121, 120
  %v938 = vpop.permute.xlu0 %937
  %939 = vrot.lane.b32.xlu0 %v124, 120
  %v940 = vpop.permute.xlu0 %939
  %941 = vrot.lane.b32.xlu0 %v127, 120
  %v942 = vpop.permute.xlu0 %941
  %943 = vrot.lane.b32.xlu0 %v106, 88
  %v944 = vpop.permute.xlu0 %943
  %945 = vrot.lane.b32.xlu0 %v109, 88
  %v946 = vpop.permute.xlu0 %945
  %947 = vrot.lane.b32.xlu0 %v112, 88
  %v948 = vpop.permute.xlu0 %947
  %949 = vrot.lane.b32.xlu0 %v115, 88
  %v950 = vpop.permute.xlu0 %949
  %951 = vrot.lane.b32.xlu0 %v118, 88
  %v952 = vpop.permute.xlu0 %951
  %953 = vrot.lane.b32.xlu0 %v121, 88
  %v954 = vpop.permute.xlu0 %953
  %955 = vrot.lane.b32.xlu0 %v124, 88
  %v956 = vpop.permute.xlu0 %955
  %957 = vrot.lane.b32.xlu0 %v127, 88
  %v958 = vpop.permute.xlu0 %957
  %v959 = vsel %vm177, %v928, 0
  %v961 = vsel %vm177, %v930, 0
  %v963 = vsel %vm177, %v932, 0
  %v965 = vsel %vm177, %v934, 0
  %v967 = vsel %vm177, %v936, 0
  %v969 = vsel %vm177, %v938, 0
  %v971 = vsel %vm177, %v940, 0
  %v973 = vsel %vm177, %v942, 0
  %v975 = vsel %vm177, %v944, 0
  %v977 = vsel %vm177, %v946, 0
  %v979 = vsel %vm177, %v948, 0
  %v981 = vsel %vm177, %v950, 0
  %v983 = vsel %vm177, %v952, 0
  %v985 = vsel %vm177, %v954, 0
  %v987 = vsel %vm177, %v956, 0
  %v989 = vsel %vm177, %v958, 0
  %991 = vmatpush.xpose.msra.mxu0 0.0
  %992 = vmatpush.xpose.msra.mxu0 0.0
  %993 = vmatpush.xpose.msra.mxu0 0.0
  %994 = vmatpush.xpose.msra.mxu0 0.0
  %995 = vmatpush.xpose.msra.mxu0 0.0
  %996 = vmatpush.xpose.msra.mxu0 0.0
  %997 = vmatpush.xpose.msra.mxu0 0.0
  %998 = vmatpush.xpose.msra.mxu0 0.0
  %999 = vmatpush.xpose.msra.mxu0 %v989
  %1000 = vmatpush.xpose.msra.mxu0 %v987
  %1001 = vmatpush.xpose.msra.mxu0 %v985
  %1002 = vmatpush.xpose.msra.mxu0 %v983
  %1003 = vmatpush.xpose.msra.mxu0 %v981
  %1004 = vmatpush.xpose.msra.mxu0 %v979
  %1005 = vmatpush.xpose.msra.mxu0 %v977
  %1006 = vmatpush.xpose.msra.mxu0 %v975
  %1007 = vmatmul.f32.gmra.mxu0 %v959
  %v1008 = vpop.f32.mrf.mxu0
  %v1009 = vadd.f32 0.0, %v1008
  %1010 = vmatmul.f32.gmra.mxu0 %v961
  %v1011 = vpop.f32.mrf.mxu0
  %v1012 = vadd.f32 0.0, %v1011
  %1013 = vmatmul.f32.gmra.mxu0 %v963
  %v1014 = vpop.f32.mrf.mxu0
  %v1015 = vadd.f32 0.0, %v1014
  %1016 = vmatmul.f32.gmra.mxu0 %v965
  %v1017 = vpop.f32.mrf.mxu0
  %v1018 = vadd.f32 0.0, %v1017
  %1019 = vmatmul.f32.gmra.mxu0 %v967
  %v1020 = vpop.f32.mrf.mxu0
  %v1021 = vadd.f32 0.0, %v1020
  %1022 = vmatmul.f32.gmra.mxu0 %v969
  %v1023 = vpop.f32.mrf.mxu0
  %v1024 = vadd.f32 0.0, %v1023
  %1025 = vmatmul.f32.gmra.mxu0 %v971
  %v1026 = vpop.f32.mrf.mxu0
  %v1027 = vadd.f32 0.0, %v1026
  %1028 = vmatmul.f32.gmra.mxu0 %v973
  %v1029 = vpop.f32.mrf.mxu0
  %v1030 = vadd.f32 0.0, %v1029
  %1031 = vdwg.mxu0
  %1032 = vrot.lane.b32.xlu0 %v130, 120
  %v1033 = vpop.permute.xlu0 %1032
  %1034 = vrot.lane.b32.xlu0 %v133, 120
  %v1035 = vpop.permute.xlu0 %1034
  %1036 = vrot.lane.b32.xlu0 %v136, 120
  %v1037 = vpop.permute.xlu0 %1036
  %1038 = vrot.lane.b32.xlu0 %v139, 120
  %v1039 = vpop.permute.xlu0 %1038
  %1040 = vrot.lane.b32.xlu0 %v142, 120
  %v1041 = vpop.permute.xlu0 %1040
  %1042 = vrot.lane.b32.xlu0 %v145, 120
  %v1043 = vpop.permute.xlu0 %1042
  %1044 = vrot.lane.b32.xlu0 %v148, 120
  %v1045 = vpop.permute.xlu0 %1044
  %1046 = vrot.lane.b32.xlu0 %v151, 120
  %v1047 = vpop.permute.xlu0 %1046
  %1048 = vrot.lane.b32.xlu0 %v130, 88
  %v1049 = vpop.permute.xlu0 %1048
  %1050 = vrot.lane.b32.xlu0 %v133, 88
  %v1051 = vpop.permute.xlu0 %1050
  %1052 = vrot.lane.b32.xlu0 %v136, 88
  %v1053 = vpop.permute.xlu0 %1052
  %1054 = vrot.lane.b32.xlu0 %v139, 88
  %v1055 = vpop.permute.xlu0 %1054
  %1056 = vrot.lane.b32.xlu0 %v142, 88
  %v1057 = vpop.permute.xlu0 %1056
  %1058 = vrot.lane.b32.xlu0 %v145, 88
  %v1059 = vpop.permute.xlu0 %1058
  %1060 = vrot.lane.b32.xlu0 %v148, 88
  %v1061 = vpop.permute.xlu0 %1060
  %1062 = vrot.lane.b32.xlu0 %v151, 88
  %v1063 = vpop.permute.xlu0 %1062
  %v1064 = vsel %vm177, %v1033, 0
  %v1066 = vsel %vm177, %v1035, 0
  %v1068 = vsel %vm177, %v1037, 0
  %v1070 = vsel %vm177, %v1039, 0
  %v1072 = vsel %vm177, %v1041, 0
  %v1074 = vsel %vm177, %v1043, 0
  %v1076 = vsel %vm177, %v1045, 0
  %v1078 = vsel %vm177, %v1047, 0
  %v1080 = vsel %vm177, %v1049, 0
  %v1082 = vsel %vm177, %v1051, 0
  %v1084 = vsel %vm177, %v1053, 0
  %v1086 = vsel %vm177, %v1055, 0
  %v1088 = vsel %vm177, %v1057, 0
  %v1090 = vsel %vm177, %v1059, 0
  %v1092 = vsel %vm177, %v1061, 0
  %v1094 = vsel %vm177, %v1063, 0
  %1096 = vmatpush.xpose.msra.mxu0 0.0
  %1097 = vmatpush.xpose.msra.mxu0 0.0
  %1098 = vmatpush.xpose.msra.mxu0 0.0
  %1099 = vmatpush.xpose.msra.mxu0 0.0
  %1100 = vmatpush.xpose.msra.mxu0 0.0
  %1101 = vmatpush.xpose.msra.mxu0 0.0
  %1102 = vmatpush.xpose.msra.mxu0 0.0
  %1103 = vmatpush.xpose.msra.mxu0 0.0
  %1104 = vmatpush.xpose.msra.mxu0 %v1094
  %1105 = vmatpush.xpose.msra.mxu0 %v1092
  %1106 = vmatpush.xpose.msra.mxu0 %v1090
  %1107 = vmatpush.xpose.msra.mxu0 %v1088
  %1108 = vmatpush.xpose.msra.mxu0 %v1086
  %1109 = vmatpush.xpose.msra.mxu0 %v1084
  %1110 = vmatpush.xpose.msra.mxu0 %v1082
  %1111 = vmatpush.xpose.msra.mxu0 %v1080
  %1112 = vmatmul.f32.gmra.mxu0 %v1064
  %v1113 = vpop.f32.mrf.mxu0
  %v1114 = vadd.f32 0.0, %v1113
  %1115 = vmatmul.f32.gmra.mxu0 %v1066
  %v1116 = vpop.f32.mrf.mxu0
  %v1117 = vadd.f32 0.0, %v1116
  %1118 = vmatmul.f32.gmra.mxu0 %v1068
  %v1119 = vpop.f32.mrf.mxu0
  %v1120 = vadd.f32 0.0, %v1119
  %1121 = vmatmul.f32.gmra.mxu0 %v1070
  %v1122 = vpop.f32.mrf.mxu0
  %v1123 = vadd.f32 0.0, %v1122
  %1124 = vmatmul.f32.gmra.mxu0 %v1072
  %v1125 = vpop.f32.mrf.mxu0
  %v1126 = vadd.f32 0.0, %v1125
  %1127 = vmatmul.f32.gmra.mxu0 %v1074
  %v1128 = vpop.f32.mrf.mxu0
  %v1129 = vadd.f32 0.0, %v1128
  %1130 = vmatmul.f32.gmra.mxu0 %v1076
  %v1131 = vpop.f32.mrf.mxu0
  %v1132 = vadd.f32 0.0, %v1131
  %1133 = vmatmul.f32.gmra.mxu0 %v1078
  %v1134 = vpop.f32.mrf.mxu0
  %v1135 = vadd.f32 0.0, %v1134
  %1136 = vdwg.mxu0
  %v1137 = vsel %vm348, %v1009, -inf
  %1138 = vmax.xlane.f32.xlu0 %v1137
  %v1139 = vpop.xlane.xlu0 %1138
  %v1140 = vsel %vm348, %v1012, -inf
  %1141 = vmax.xlane.f32.xlu0 %v1140
  %v1142 = vpop.xlane.xlu0 %1141
  %v1143 = vsel %vm348, %v1015, -inf
  %1144 = vmax.xlane.f32.xlu0 %v1143
  %v1145 = vpop.xlane.xlu0 %1144
  %v1146 = vsel %vm348, %v1018, -inf
  %1147 = vmax.xlane.f32.xlu0 %v1146
  %v1148 = vpop.xlane.xlu0 %1147
  %v1149 = vsel %vm348, %v1021, -inf
  %1150 = vmax.xlane.f32.xlu0 %v1149
  %v1151 = vpop.xlane.xlu0 %1150
  %v1152 = vsel %vm348, %v1024, -inf
  %1153 = vmax.xlane.f32.xlu0 %v1152
  %v1154 = vpop.xlane.xlu0 %1153
  %v1155 = vsel %vm348, %v1027, -inf
  %1156 = vmax.xlane.f32.xlu0 %v1155
  %v1157 = vpop.xlane.xlu0 %1156
  %v1158 = vsel %vm348, %v1030, -inf
  %1159 = vmax.xlane.f32.xlu0 %v1158
  %v1160 = vpop.xlane.xlu0 %1159
  %v1161 = vsel %vm348, %v1114, -inf
  %1162 = vmax.xlane.f32.xlu0 %v1161
  %v1163 = vpop.xlane.xlu0 %1162
  %v1164 = vsel %vm348, %v1117, -inf
  %1165 = vmax.xlane.f32.xlu0 %v1164
  %v1166 = vpop.xlane.xlu0 %1165
  %v1167 = vsel %vm348, %v1120, -inf
  %1168 = vmax.xlane.f32.xlu0 %v1167
  %v1169 = vpop.xlane.xlu0 %1168
  %v1170 = vsel %vm348, %v1123, -inf
  %1171 = vmax.xlane.f32.xlu0 %v1170
  %v1172 = vpop.xlane.xlu0 %1171
  %v1173 = vsel %vm348, %v1126, -inf
  %1174 = vmax.xlane.f32.xlu0 %v1173
  %v1175 = vpop.xlane.xlu0 %1174
  %v1176 = vsel %vm348, %v1129, -inf
  %1177 = vmax.xlane.f32.xlu0 %v1176
  %v1178 = vpop.xlane.xlu0 %1177
  %v1179 = vsel %vm348, %v1132, -inf
  %1180 = vmax.xlane.f32.xlu0 %v1179
  %v1181 = vpop.xlane.xlu0 %1180
  %v1182 = vsel %vm348, %v1135, -inf
  %1183 = vmax.xlane.f32.xlu0 %v1182
  %v1184 = vpop.xlane.xlu0 %1183
  %v1185 = vsub.f32 %v1009, %v1139
  %v1186 = vsub.f32 %v1012, %v1142
  %v1187 = vsub.f32 %v1015, %v1145
  %v1188 = vsub.f32 %v1018, %v1148
  %v1189 = vsub.f32 %v1021, %v1151
  %v1190 = vsub.f32 %v1024, %v1154
  %v1191 = vsub.f32 %v1027, %v1157
  %v1192 = vsub.f32 %v1030, %v1160
  %v1193 = vsub.f32 %v1114, %v1163
  %v1194 = vsub.f32 %v1117, %v1166
  %v1195 = vsub.f32 %v1120, %v1169
  %v1196 = vsub.f32 %v1123, %v1172
  %v1197 = vsub.f32 %v1126, %v1175
  %v1198 = vsub.f32 %v1129, %v1178
  %v1199 = vsub.f32 %v1132, %v1181
  %v1200 = vsub.f32 %v1135, %v1184
  %v1201 = vmul.f32 %v1185, 1.442695
  %v1202 = vpow.pop %v1201
  %v1203 = vmul.f32 %v1186, 1.442695
  %v1204 = vpow.pop %v1203
  %v1205 = vmul.f32 %v1187, 1.442695
  %v1206 = vpow.pop %v1205
  %v1207 = vmul.f32 %v1188, 1.442695
  %v1208 = vpow.pop %v1207
  %v1209 = vmul.f32 %v1189, 1.442695
  %v1210 = vpow.pop %v1209
  %v1211 = vmul.f32 %v1190, 1.442695
  %v1212 = vpow.pop %v1211
  %v1213 = vmul.f32 %v1191, 1.442695
  %v1214 = vpow.pop %v1213
  %v1215 = vmul.f32 %v1192, 1.442695
  %v1216 = vpow.pop %v1215
  %v1217 = vmul.f32 %v1193, 1.442695
  %v1218 = vpow.pop %v1217
  %v1219 = vmul.f32 %v1194, 1.442695
  %v1220 = vpow.pop %v1219
  %v1221 = vmul.f32 %v1195, 1.442695
  %v1222 = vpow.pop %v1221
  %v1223 = vmul.f32 %v1196, 1.442695
  %v1224 = vpow.pop %v1223
  %v1225 = vmul.f32 %v1197, 1.442695
  %v1226 = vpow.pop %v1225
  %v1227 = vmul.f32 %v1198, 1.442695
  %v1228 = vpow.pop %v1227
  %v1229 = vmul.f32 %v1199, 1.442695
  %v1230 = vpow.pop %v1229
  %v1231 = vmul.f32 %v1200, 1.442695
  %v1232 = vpow.pop %v1231
  %v1233 = vsel %vm348, %v1202, 0.0
  %1234 = vadd.xlane.f32.xlu0 %v1233
  %v1235 = vpop.xlane.xlu0 %1234
  %v1236 = vsel %vm348, %v1204, 0.0
  %1237 = vadd.xlane.f32.xlu0 %v1236
  %v1238 = vpop.xlane.xlu0 %1237
  %v1239 = vsel %vm348, %v1206, 0.0
  %1240 = vadd.xlane.f32.xlu0 %v1239
  %v1241 = vpop.xlane.xlu0 %1240
  %v1242 = vsel %vm348, %v1208, 0.0
  %1243 = vadd.xlane.f32.xlu0 %v1242
  %v1244 = vpop.xlane.xlu0 %1243
  %v1245 = vsel %vm348, %v1210, 0.0
  %1246 = vadd.xlane.f32.xlu0 %v1245
  %v1247 = vpop.xlane.xlu0 %1246
  %v1248 = vsel %vm348, %v1212, 0.0
  %1249 = vadd.xlane.f32.xlu0 %v1248
  %v1250 = vpop.xlane.xlu0 %1249
  %v1251 = vsel %vm348, %v1214, 0.0
  %1252 = vadd.xlane.f32.xlu0 %v1251
  %v1253 = vpop.xlane.xlu0 %1252
  %v1254 = vsel %vm348, %v1216, 0.0
  %1255 = vadd.xlane.f32.xlu0 %v1254
  %v1256 = vpop.xlane.xlu0 %1255
  %v1257 = vsel %vm348, %v1218, 0.0
  %1258 = vadd.xlane.f32.xlu0 %v1257
  %v1259 = vpop.xlane.xlu0 %1258
  %v1260 = vsel %vm348, %v1220, 0.0
  %1261 = vadd.xlane.f32.xlu0 %v1260
  %v1262 = vpop.xlane.xlu0 %1261
  %v1263 = vsel %vm348, %v1222, 0.0
  %1264 = vadd.xlane.f32.xlu0 %v1263
  %v1265 = vpop.xlane.xlu0 %1264
  %v1266 = vsel %vm348, %v1224, 0.0
  %1267 = vadd.xlane.f32.xlu0 %v1266
  %v1268 = vpop.xlane.xlu0 %1267
  %v1269 = vsel %vm348, %v1226, 0.0
  %1270 = vadd.xlane.f32.xlu0 %v1269
  %v1271 = vpop.xlane.xlu0 %1270
  %v1272 = vsel %vm348, %v1228, 0.0
  %1273 = vadd.xlane.f32.xlu0 %v1272
  %v1274 = vpop.xlane.xlu0 %1273
  %v1275 = vsel %vm348, %v1230, 0.0
  %1276 = vadd.xlane.f32.xlu0 %v1275
  %v1277 = vpop.xlane.xlu0 %1276
  %v1278 = vsel %vm348, %v1232, 0.0
  %1279 = vadd.xlane.f32.xlu0 %v1278
  %v1280 = vpop.xlane.xlu0 %1279
  %v1281 = vrcp.pop %v1235
  %v1282 = vmul.f32 %v1235, %v1281
  %v1283 = vsub.f32 1.0, %v1282
  %v1284 = vmul.f32 %v1281, %v1283
  %v1285 = vadd.f32 %v1281, %v1284
  %vm1286 = vweird.f32 %v1235
  %vm1287 = vweird.f32 %v1281
  %vm1288 = vmor %vm1286, %vm1287
  %v1289 = vsel %vm1288, %v1281, %v1285
  %v1290 = vand.u32 2147483647, %v1235
  %vm1291 = vcmp.eq.f32.partialorder %v1290, 8.507059e+37
  %v1292 = vand.u32 %v1235, 2147483648
  %v1293 = vor.u32 1.1754944e-38, %v1292
  %v1294 = vsel %vm1291, %v1293, %v1289
  %v1295 = vrcp.pop %v1238
  %v1296 = vmul.f32 %v1238, %v1295
  %v1297 = vsub.f32 1.0, %v1296
  %v1298 = vmul.f32 %v1295, %v1297
  %v1299 = vadd.f32 %v1295, %v1298
  %vm1300 = vweird.f32 %v1238
  %vm1301 = vweird.f32 %v1295
  %vm1302 = vmor %vm1300, %vm1301
  %v1303 = vsel %vm1302, %v1295, %v1299
  %v1304 = vand.u32 2147483647, %v1238
  %vm1305 = vcmp.eq.f32.partialorder %v1304, 8.507059e+37
  %v1306 = vand.u32 %v1238, 2147483648
  %v1307 = vor.u32 1.1754944e-38, %v1306
  %v1308 = vsel %vm1305, %v1307, %v1303
  %v1309 = vrcp.pop %v1241
  %v1310 = vmul.f32 %v1241, %v1309
  %v1311 = vsub.f32 1.0, %v1310
  %v1312 = vmul.f32 %v1309, %v1311
  %v1313 = vadd.f32 %v1309, %v1312
  %vm1314 = vweird.f32 %v1241
  %vm1315 = vweird.f32 %v1309
  %vm1316 = vmor %vm1314, %vm1315
  %v1317 = vsel %vm1316, %v1309, %v1313
  %v1318 = vand.u32 2147483647, %v1241
  %vm1319 = vcmp.eq.f32.partialorder %v1318, 8.507059e+37
  %v1320 = vand.u32 %v1241, 2147483648
  %v1321 = vor.u32 1.1754944e-38, %v1320
  %v1322 = vsel %vm1319, %v1321, %v1317
  %v1323 = vrcp.pop %v1244
  %v1324 = vmul.f32 %v1244, %v1323
  %v1325 = vsub.f32 1.0, %v1324
  %v1326 = vmul.f32 %v1323, %v1325
  %v1327 = vadd.f32 %v1323, %v1326
  %vm1328 = vweird.f32 %v1244
  %vm1329 = vweird.f32 %v1323
  %vm1330 = vmor %vm1328, %vm1329
  %v1331 = vsel %vm1330, %v1323, %v1327
  %v1332 = vand.u32 2147483647, %v1244
  %vm1333 = vcmp.eq.f32.partialorder %v1332, 8.507059e+37
  %v1334 = vand.u32 %v1244, 2147483648
  %v1335 = vor.u32 1.1754944e-38, %v1334
  %v1336 = vsel %vm1333, %v1335, %v1331
  %v1337 = vrcp.pop %v1247
  %v1338 = vmul.f32 %v1247, %v1337
  %v1339 = vsub.f32 1.0, %v1338
  %v1340 = vmul.f32 %v1337, %v1339
  %v1341 = vadd.f32 %v1337, %v1340
  %vm1342 = vweird.f32 %v1247
  %vm1343 = vweird.f32 %v1337
  %vm1344 = vmor %vm1342, %vm1343
  %v1345 = vsel %vm1344, %v1337, %v1341
  %v1346 = vand.u32 2147483647, %v1247
  %vm1347 = vcmp.eq.f32.partialorder %v1346, 8.507059e+37
  %v1348 = vand.u32 %v1247, 2147483648
  %v1349 = vor.u32 1.1754944e-38, %v1348
  %v1350 = vsel %vm1347, %v1349, %v1345
  %v1351 = vrcp.pop %v1250
  %v1352 = vmul.f32 %v1250, %v1351
  %v1353 = vsub.f32 1.0, %v1352
  %v1354 = vmul.f32 %v1351, %v1353
  %v1355 = vadd.f32 %v1351, %v1354
  %vm1356 = vweird.f32 %v1250
  %vm1357 = vweird.f32 %v1351
  %vm1358 = vmor %vm1356, %vm1357
  %v1359 = vsel %vm1358, %v1351, %v1355
  %v1360 = vand.u32 2147483647, %v1250
  %vm1361 = vcmp.eq.f32.partialorder %v1360, 8.507059e+37
  %v1362 = vand.u32 %v1250, 2147483648
  %v1363 = vor.u32 1.1754944e-38, %v1362
  %v1364 = vsel %vm1361, %v1363, %v1359
  %v1365 = vrcp.pop %v1253
  %v1366 = vmul.f32 %v1253, %v1365
  %v1367 = vsub.f32 1.0, %v1366
  %v1368 = vmul.f32 %v1365, %v1367
  %v1369 = vadd.f32 %v1365, %v1368
  %vm1370 = vweird.f32 %v1253
  %vm1371 = vweird.f32 %v1365
  %vm1372 = vmor %vm1370, %vm1371
  %v1373 = vsel %vm1372, %v1365, %v1369
  %v1374 = vand.u32 2147483647, %v1253
  %vm1375 = vcmp.eq.f32.partialorder %v1374, 8.507059e+37
  %v1376 = vand.u32 %v1253, 2147483648
  %v1377 = vor.u32 1.1754944e-38, %v1376
  %v1378 = vsel %vm1375, %v1377, %v1373
  %v1379 = vrcp.pop %v1256
  %v1380 = vmul.f32 %v1256, %v1379
  %v1381 = vsub.f32 1.0, %v1380
  %v1382 = vmul.f32 %v1379, %v1381
  %v1383 = vadd.f32 %v1379, %v1382
  %vm1384 = vweird.f32 %v1256
  %vm1385 = vweird.f32 %v1379
  %vm1386 = vmor %vm1384, %vm1385
  %v1387 = vsel %vm1386, %v1379, %v1383
  %v1388 = vand.u32 2147483647, %v1256
  %vm1389 = vcmp.eq.f32.partialorder %v1388, 8.507059e+37
  %v1390 = vand.u32 %v1256, 2147483648
  %v1391 = vor.u32 1.1754944e-38, %v1390
  %v1392 = vsel %vm1389, %v1391, %v1387
  %v1393 = vrcp.pop %v1259
  %v1394 = vmul.f32 %v1259, %v1393
  %v1395 = vsub.f32 1.0, %v1394
  %v1396 = vmul.f32 %v1393, %v1395
  %v1397 = vadd.f32 %v1393, %v1396
  %vm1398 = vweird.f32 %v1259
  %vm1399 = vweird.f32 %v1393
  %vm1400 = vmor %vm1398, %vm1399
  %v1401 = vsel %vm1400, %v1393, %v1397
  %v1402 = vand.u32 2147483647, %v1259
  %vm1403 = vcmp.eq.f32.partialorder %v1402, 8.507059e+37
  %v1404 = vand.u32 %v1259, 2147483648
  %v1405 = vor.u32 1.1754944e-38, %v1404
  %v1406 = vsel %vm1403, %v1405, %v1401
  %v1407 = vrcp.pop %v1262
  %v1408 = vmul.f32 %v1262, %v1407
  %v1409 = vsub.f32 1.0, %v1408
  %v1410 = vmul.f32 %v1407, %v1409
  %v1411 = vadd.f32 %v1407, %v1410
  %vm1412 = vweird.f32 %v1262
  %vm1413 = vweird.f32 %v1407
  %vm1414 = vmor %vm1412, %vm1413
  %v1415 = vsel %vm1414, %v1407, %v1411
  %v1416 = vand.u32 2147483647, %v1262
  %vm1417 = vcmp.eq.f32.partialorder %v1416, 8.507059e+37
  %v1418 = vand.u32 %v1262, 2147483648
  %v1419 = vor.u32 1.1754944e-38, %v1418
  %v1420 = vsel %vm1417, %v1419, %v1415
  %v1421 = vrcp.pop %v1265
  %v1422 = vmul.f32 %v1265, %v1421
  %v1423 = vsub.f32 1.0, %v1422
  %v1424 = vmul.f32 %v1421, %v1423
  %v1425 = vadd.f32 %v1421, %v1424
  %vm1426 = vweird.f32 %v1265
  %vm1427 = vweird.f32 %v1421
  %vm1428 = vmor %vm1426, %vm1427
  %v1429 = vsel %vm1428, %v1421, %v1425
  %v1430 = vand.u32 2147483647, %v1265
  %vm1431 = vcmp.eq.f32.partialorder %v1430, 8.507059e+37
  %v1432 = vand.u32 %v1265, 2147483648
  %v1433 = vor.u32 1.1754944e-38, %v1432
  %v1434 = vsel %vm1431, %v1433, %v1429
  %v1435 = vrcp.pop %v1268
  %v1436 = vmul.f32 %v1268, %v1435
  %v1437 = vsub.f32 1.0, %v1436
  %v1438 = vmul.f32 %v1435, %v1437
  %v1439 = vadd.f32 %v1435, %v1438
  %vm1440 = vweird.f32 %v1268
  %vm1441 = vweird.f32 %v1435
  %vm1442 = vmor %vm1440, %vm1441
  %v1443 = vsel %vm1442, %v1435, %v1439
  %v1444 = vand.u32 2147483647, %v1268
  %vm1445 = vcmp.eq.f32.partialorder %v1444, 8.507059e+37
  %v1446 = vand.u32 %v1268, 2147483648
  %v1447 = vor.u32 1.1754944e-38, %v1446
  %v1448 = vsel %vm1445, %v1447, %v1443
  %v1449 = vrcp.pop %v1271
  %v1450 = vmul.f32 %v1271, %v1449
  %v1451 = vsub.f32 1.0, %v1450
  %v1452 = vmul.f32 %v1449, %v1451
  %v1453 = vadd.f32 %v1449, %v1452
  %vm1454 = vweird.f32 %v1271
  %vm1455 = vweird.f32 %v1449
  %vm1456 = vmor %vm1454, %vm1455
  %v1457 = vsel %vm1456, %v1449, %v1453
  %v1458 = vand.u32 2147483647, %v1271
  %vm1459 = vcmp.eq.f32.partialorder %v1458, 8.507059e+37
  %v1460 = vand.u32 %v1271, 2147483648
  %v1461 = vor.u32 1.1754944e-38, %v1460
  %v1462 = vsel %vm1459, %v1461, %v1457
  %v1463 = vrcp.pop %v1274
  %v1464 = vmul.f32 %v1274, %v1463
  %v1465 = vsub.f32 1.0, %v1464
  %v1466 = vmul.f32 %v1463, %v1465
  %v1467 = vadd.f32 %v1463, %v1466
  %vm1468 = vweird.f32 %v1274
  %vm1469 = vweird.f32 %v1463
  %vm1470 = vmor %vm1468, %vm1469
  %v1471 = vsel %vm1470, %v1463, %v1467
  %v1472 = vand.u32 2147483647, %v1274
  %vm1473 = vcmp.eq.f32.partialorder %v1472, 8.507059e+37
  %v1474 = vand.u32 %v1274, 2147483648
  %v1475 = vor.u32 1.1754944e-38, %v1474
  %v1476 = vsel %vm1473, %v1475, %v1471
  %v1477 = vrcp.pop %v1277
  %v1478 = vmul.f32 %v1277, %v1477
  %v1479 = vsub.f32 1.0, %v1478
  %v1480 = vmul.f32 %v1477, %v1479
  %v1481 = vadd.f32 %v1477, %v1480
  %vm1482 = vweird.f32 %v1277
  %vm1483 = vweird.f32 %v1477
  %vm1484 = vmor %vm1482, %vm1483
  %v1485 = vsel %vm1484, %v1477, %v1481
  %v1486 = vand.u32 2147483647, %v1277
  %vm1487 = vcmp.eq.f32.partialorder %v1486, 8.507059e+37
  %v1488 = vand.u32 %v1277, 2147483648
  %v1489 = vor.u32 1.1754944e-38, %v1488
  %v1490 = vsel %vm1487, %v1489, %v1485
  %v1491 = vrcp.pop %v1280
  %v1492 = vmul.f32 %v1280, %v1491
  %v1493 = vsub.f32 1.0, %v1492
  %v1494 = vmul.f32 %v1491, %v1493
  %v1495 = vadd.f32 %v1491, %v1494
  %vm1496 = vweird.f32 %v1280
  %vm1497 = vweird.f32 %v1491
  %vm1498 = vmor %vm1496, %vm1497
  %v1499 = vsel %vm1498, %v1491, %v1495
  %v1500 = vand.u32 2147483647, %v1280
  %vm1501 = vcmp.eq.f32.partialorder %v1500, 8.507059e+37
  %v1502 = vand.u32 %v1280, 2147483648
  %v1503 = vor.u32 1.1754944e-38, %v1502
  %v1504 = vsel %vm1501, %v1503, %v1499
  %v1505 = vmul.f32 %v1202, %v1294
  %v1506 = vmul.f32 %v1204, %v1308
  %v1507 = vmul.f32 %v1206, %v1322
  %v1508 = vmul.f32 %v1208, %v1336
  %v1509 = vmul.f32 %v1210, %v1350
  %v1510 = vmul.f32 %v1212, %v1364
  %v1511 = vmul.f32 %v1214, %v1378
  %v1512 = vmul.f32 %v1216, %v1392
  %v1513 = vmul.f32 %v1218, %v1406
  %v1514 = vmul.f32 %v1220, %v1420
  %v1515 = vmul.f32 %v1222, %v1434
  %v1516 = vmul.f32 %v1224, %v1448
  %v1517 = vmul.f32 %v1226, %v1462
  %v1518 = vmul.f32 %v1228, %v1476
  %v1519 = vmul.f32 %v1230, %v1490
  %v1520 = vmul.f32 %v1232, %v1504
  %1521 = vrot.lane.b32.xlu0 %v106, 56
  %v1522 = vpop.permute.xlu0 %1521
  %1523 = vrot.lane.b32.xlu0 %v109, 56
  %v1524 = vpop.permute.xlu0 %1523
  %1525 = vrot.lane.b32.xlu0 %v112, 56
  %v1526 = vpop.permute.xlu0 %1525
  %1527 = vrot.lane.b32.xlu0 %v115, 56
  %v1528 = vpop.permute.xlu0 %1527
  %1529 = vrot.lane.b32.xlu0 %v118, 56
  %v1530 = vpop.permute.xlu0 %1529
  %1531 = vrot.lane.b32.xlu0 %v121, 56
  %v1532 = vpop.permute.xlu0 %1531
  %1533 = vrot.lane.b32.xlu0 %v124, 56
  %v1534 = vpop.permute.xlu0 %1533
  %1535 = vrot.lane.b32.xlu0 %v127, 56
  %v1536 = vpop.permute.xlu0 %1535
  %v1546 = vsel %vm348, %v1505, 0
  %v1549 = vsel %vm348, %v1506, 0
  %v1552 = vsel %vm348, %v1507, 0
  %v1555 = vsel %vm348, %v1508, 0
  %v1558 = vsel %vm348, %v1509, 0
  %v1561 = vsel %vm348, %v1510, 0
  %v1564 = vsel %vm348, %v1511, 0
  %v1567 = vsel %vm348, %v1512, 0
  %1569 = vmatpush.msra.mxu0 0.0
  %1570 = vmatpush.msra.mxu0 0.0
  %1571 = vmatpush.msra.mxu0 0.0
  %1572 = vmatpush.msra.mxu0 0.0
  %1573 = vmatpush.msra.mxu0 0.0
  %1574 = vmatpush.msra.mxu0 0.0
  %1575 = vmatpush.msra.mxu0 0.0
  %1576 = vmatpush.msra.mxu0 0.0
  %1577 = vmatpush.msra.mxu0 %v1536
  %1578 = vmatpush.msra.mxu0 %v1534
  %1579 = vmatpush.msra.mxu0 %v1532
  %1580 = vmatpush.msra.mxu0 %v1530
  %1581 = vmatpush.msra.mxu0 %v1528
  %1582 = vmatpush.msra.mxu0 %v1526
  %1583 = vmatpush.msra.mxu0 %v1524
  %1584 = vmatpush.msra.mxu0 %v1522
  %1585 = vmatmul.f32.gmra.mxu0 %v1546
  %v1586 = vpop.f32.mrf.mxu0
  %v1587 = vadd.f32 0.0, %v1586
  %1588 = vmatmul.f32.gmra.mxu0 %v1549
  %v1589 = vpop.f32.mrf.mxu0
  %v1590 = vadd.f32 0.0, %v1589
  %1591 = vmatmul.f32.gmra.mxu0 %v1552
  %v1592 = vpop.f32.mrf.mxu0
  %v1593 = vadd.f32 0.0, %v1592
  %1594 = vmatmul.f32.gmra.mxu0 %v1555
  %v1595 = vpop.f32.mrf.mxu0
  %v1596 = vadd.f32 0.0, %v1595
  %1597 = vmatmul.f32.gmra.mxu0 %v1558
  %v1598 = vpop.f32.mrf.mxu0
  %v1599 = vadd.f32 0.0, %v1598
  %1600 = vmatmul.f32.gmra.mxu0 %v1561
  %v1601 = vpop.f32.mrf.mxu0
  %v1602 = vadd.f32 0.0, %v1601
  %1603 = vmatmul.f32.gmra.mxu0 %v1564
  %v1604 = vpop.f32.mrf.mxu0
  %v1605 = vadd.f32 0.0, %v1604
  %1606 = vmatmul.f32.gmra.mxu0 %v1567
  %v1607 = vpop.f32.mrf.mxu0
  %v1608 = vadd.f32 0.0, %v1607
  %1609 = vdwg.mxu0
  %1610 = vrot.lane.b32.xlu0 %v130, 56
  %v1611 = vpop.permute.xlu0 %1610
  %1612 = vrot.lane.b32.xlu0 %v133, 56
  %v1613 = vpop.permute.xlu0 %1612
  %1614 = vrot.lane.b32.xlu0 %v136, 56
  %v1615 = vpop.permute.xlu0 %1614
  %1616 = vrot.lane.b32.xlu0 %v139, 56
  %v1617 = vpop.permute.xlu0 %1616
  %1618 = vrot.lane.b32.xlu0 %v142, 56
  %v1619 = vpop.permute.xlu0 %1618
  %1620 = vrot.lane.b32.xlu0 %v145, 56
  %v1621 = vpop.permute.xlu0 %1620
  %1622 = vrot.lane.b32.xlu0 %v148, 56
  %v1623 = vpop.permute.xlu0 %1622
  %1624 = vrot.lane.b32.xlu0 %v151, 56
  %v1625 = vpop.permute.xlu0 %1624
  %v1635 = vsel %vm348, %v1513, 0
  %v1638 = vsel %vm348, %v1514, 0
  %v1641 = vsel %vm348, %v1515, 0
  %v1644 = vsel %vm348, %v1516, 0
  %v1647 = vsel %vm348, %v1517, 0
  %v1650 = vsel %vm348, %v1518, 0
  %v1653 = vsel %vm348, %v1519, 0
  %v1656 = vsel %vm348, %v1520, 0
  %1658 = vmatpush.msra.mxu0 0.0
  %1659 = vmatpush.msra.mxu0 0.0
  %1660 = vmatpush.msra.mxu0 0.0
  %1661 = vmatpush.msra.mxu0 0.0
  %1662 = vmatpush.msra.mxu0 0.0
  %1663 = vmatpush.msra.mxu0 0.0
  %1664 = vmatpush.msra.mxu0 0.0
  %1665 = vmatpush.msra.mxu0 0.0
  %1666 = vmatpush.msra.mxu0 %v1625
  %1667 = vmatpush.msra.mxu0 %v1623
  %1668 = vmatpush.msra.mxu0 %v1621
  %1669 = vmatpush.msra.mxu0 %v1619
  %1670 = vmatpush.msra.mxu0 %v1617
  %1671 = vmatpush.msra.mxu0 %v1615
  %1672 = vmatpush.msra.mxu0 %v1613
  %1673 = vmatpush.msra.mxu0 %v1611
  %1674 = vmatmul.f32.gmra.mxu0 %v1635
  %v1675 = vpop.f32.mrf.mxu0
  %v1676 = vadd.f32 0.0, %v1675
  %1677 = vmatmul.f32.gmra.mxu0 %v1638
  %v1678 = vpop.f32.mrf.mxu0
  %v1679 = vadd.f32 0.0, %v1678
  %1680 = vmatmul.f32.gmra.mxu0 %v1641
  %v1681 = vpop.f32.mrf.mxu0
  %v1682 = vadd.f32 0.0, %v1681
  %1683 = vmatmul.f32.gmra.mxu0 %v1644
  %v1684 = vpop.f32.mrf.mxu0
  %v1685 = vadd.f32 0.0, %v1684
  %1686 = vmatmul.f32.gmra.mxu0 %v1647
  %v1687 = vpop.f32.mrf.mxu0
  %v1688 = vadd.f32 0.0, %v1687
  %1689 = vmatmul.f32.gmra.mxu0 %v1650
  %v1690 = vpop.f32.mrf.mxu0
  %v1691 = vadd.f32 0.0, %v1690
  %1692 = vmatmul.f32.gmra.mxu0 %v1653
  %v1693 = vpop.f32.mrf.mxu0
  %v1694 = vadd.f32 0.0, %v1693
  %1695 = vmatmul.f32.gmra.mxu0 %v1656
  %v1696 = vpop.f32.mrf.mxu0
  %v1697 = vadd.f32 0.0, %v1696
  %1698 = vdwg.mxu0
  %1715 = vrot.lane.b32.xlu0 %v1587, 8
  %v1716 = vpop.permute.xlu0 %1715
  %1717 = vrot.lane.b32.xlu0 %v1590, 8
  %v1718 = vpop.permute.xlu0 %1717
  %1719 = vrot.lane.b32.xlu0 %v1593, 8
  %v1720 = vpop.permute.xlu0 %1719
  %1721 = vrot.lane.b32.xlu0 %v1596, 8
  %v1722 = vpop.permute.xlu0 %1721
  %1723 = vrot.lane.b32.xlu0 %v1599, 8
  %v1724 = vpop.permute.xlu0 %1723
  %1725 = vrot.lane.b32.xlu0 %v1602, 8
  %v1726 = vpop.permute.xlu0 %1725
  %1727 = vrot.lane.b32.xlu0 %v1605, 8
  %v1728 = vpop.permute.xlu0 %1727
  %1729 = vrot.lane.b32.xlu0 %v1608, 8
  %v1730 = vpop.permute.xlu0 %1729
  %1731 = vrot.lane.b32.xlu0 %v1676, 8
  %v1732 = vpop.permute.xlu0 %1731
  %1733 = vrot.lane.b32.xlu0 %v1679, 8
  %v1734 = vpop.permute.xlu0 %1733
  %1735 = vrot.lane.b32.xlu0 %v1682, 8
  %v1736 = vpop.permute.xlu0 %1735
  %1737 = vrot.lane.b32.xlu0 %v1685, 8
  %v1738 = vpop.permute.xlu0 %1737
  %1739 = vrot.lane.b32.xlu0 %v1688, 8
  %v1740 = vpop.permute.xlu0 %1739
  %1741 = vrot.lane.b32.xlu0 %v1691, 8
  %v1742 = vpop.permute.xlu0 %1741
  %1743 = vrot.lane.b32.xlu0 %v1694, 8
  %v1744 = vpop.permute.xlu0 %1743
  %1745 = vrot.lane.b32.xlu0 %v1697, 8
  %v1746 = vpop.permute.xlu0 %1745
  %vm1763 = vcmask 130112
  %1764 = vst.msk [vmem:[#allocation2] sm:$0xff] %vm1763, %v1716
  %1765 = vst.msk [vmem:[#allocation2 + $0x8] sm:$0xff] %vm1763, %v1718
  %1766 = vst.msk [vmem:[#allocation2 + $0x10] sm:$0xff] %vm1763, %v1720
  %1767 = vst.msk [vmem:[#allocation2 + $0x18] sm:$0xff] %vm1763, %v1722
  %1768 = vst.msk [vmem:[#allocation2 + $0x20] sm:$0xff] %vm1763, %v1724
  %1769 = vst.msk [vmem:[#allocation2 + $0x28] sm:$0xff] %vm1763, %v1726
  %1770 = vst.msk [vmem:[#allocation2 + $0x30] sm:$0xff] %vm1763, %v1728
  %1771 = vst.msk [vmem:[#allocation2 + $0x38] sm:$0xff] %vm1763, %v1730
  %1772 = vst.msk [vmem:[#allocation2 + $0x40] sm:$0xff] %vm1763, %v1732
  %1773 = vst.msk [vmem:[#allocation2 + $0x48] sm:$0xff] %vm1763, %v1734
  %1774 = vst.msk [vmem:[#allocation2 + $0x50] sm:$0xff] %vm1763, %v1736
  %1775 = vst.msk [vmem:[#allocation2 + $0x58] sm:$0xff] %vm1763, %v1738
  %1776 = vst.msk [vmem:[#allocation2 + $0x60] sm:$0xff] %vm1763, %v1740
  %1777 = vst.msk [vmem:[#allocation2 + $0x68] sm:$0xff] %vm1763, %v1742
  %1778 = vst.msk [vmem:[#allocation2 + $0x70] sm:$0xff] %vm1763, %v1744
  %1779 = vst.msk [vmem:[#allocation2 + $0x78] sm:$0xff] %vm1763, %v1746
  %1780 = vrot.lane.b32.xlu0 %v106, 112
  %v1781 = vpop.permute.xlu0 %1780
  %1782 = vrot.lane.b32.xlu0 %v109, 112
  %v1783 = vpop.permute.xlu0 %1782
  %1784 = vrot.lane.b32.xlu0 %v112, 112
  %v1785 = vpop.permute.xlu0 %1784
  %1786 = vrot.lane.b32.xlu0 %v115, 112
  %v1787 = vpop.permute.xlu0 %1786
  %1788 = vrot.lane.b32.xlu0 %v118, 112
  %v1789 = vpop.permute.xlu0 %1788
  %1790 = vrot.lane.b32.xlu0 %v121, 112
  %v1791 = vpop.permute.xlu0 %1790
  %1792 = vrot.lane.b32.xlu0 %v124, 112
  %v1793 = vpop.permute.xlu0 %1792
  %1794 = vrot.lane.b32.xlu0 %v127, 112
  %v1795 = vpop.permute.xlu0 %1794
  %1796 = vrot.lane.b32.xlu0 %v106, 80
  %v1797 = vpop.permute.xlu0 %1796
  %1798 = vrot.lane.b32.xlu0 %v109, 80
  %v1799 = vpop.permute.xlu0 %1798
  %1800 = vrot.lane.b32.xlu0 %v112, 80
  %v1801 = vpop.permute.xlu0 %1800
  %1802 = vrot.lane.b32.xlu0 %v115, 80
  %v1803 = vpop.permute.xlu0 %1802
  %1804 = vrot.lane.b32.xlu0 %v118, 80
  %v1805 = vpop.permute.xlu0 %1804
  %1806 = vrot.lane.b32.xlu0 %v121, 80
  %v1807 = vpop.permute.xlu0 %1806
  %1808 = vrot.lane.b32.xlu0 %v124, 80
  %v1809 = vpop.permute.xlu0 %1808
  %1810 = vrot.lane.b32.xlu0 %v127, 80
  %v1811 = vpop.permute.xlu0 %1810
  %v1812 = vsel %vm177, %v1781, 0
  %v1814 = vsel %vm177, %v1783, 0
  %v1816 = vsel %vm177, %v1785, 0
  %v1818 = vsel %vm177, %v1787, 0
  %v1820 = vsel %vm177, %v1789, 0
  %v1822 = vsel %vm177, %v1791, 0
  %v1824 = vsel %vm177, %v1793, 0
  %v1826 = vsel %vm177, %v1795, 0
  %v1828 = vsel %vm177, %v1797, 0
  %v1830 = vsel %vm177, %v1799, 0
  %v1832 = vsel %vm177, %v1801, 0
  %v1834 = vsel %vm177, %v1803, 0
  %v1836 = vsel %vm177, %v1805, 0
  %v1838 = vsel %vm177, %v1807, 0
  %v1840 = vsel %vm177, %v1809, 0
  %v1842 = vsel %vm177, %v1811, 0
  %1844 = vmatpush.xpose.msra.mxu0 0.0
  %1845 = vmatpush.xpose.msra.mxu0 0.0
  %1846 = vmatpush.xpose.msra.mxu0 0.0
  %1847 = vmatpush.xpose.msra.mxu0 0.0
  %1848 = vmatpush.xpose.msra.mxu0 0.0
  %1849 = vmatpush.xpose.msra.mxu0 0.0
  %1850 = vmatpush.xpose.msra.mxu0 0.0
  %1851 = vmatpush.xpose.msra.mxu0 0.0
  %1852 = vmatpush.xpose.msra.mxu0 %v1842
  %1853 = vmatpush.xpose.msra.mxu0 %v1840
  %1854 = vmatpush.xpose.msra.mxu0 %v1838
  %1855 = vmatpush.xpose.msra.mxu0 %v1836
  %1856 = vmatpush.xpose.msra.mxu0 %v1834
  %1857 = vmatpush.xpose.msra.mxu0 %v1832
  %1858 = vmatpush.xpose.msra.mxu0 %v1830
  %1859 = vmatpush.xpose.msra.mxu0 %v1828
  %1860 = vmatmul.f32.gmra.mxu0 %v1812
  %v1861 = vpop.f32.mrf.mxu0
  %v1862 = vadd.f32 0.0, %v1861
  %1863 = vmatmul.f32.gmra.mxu0 %v1814
  %v1864 = vpop.f32.mrf.mxu0
  %v1865 = vadd.f32 0.0, %v1864
  %1866 = vmatmul.f32.gmra.mxu0 %v1816
  %v1867 = vpop.f32.mrf.mxu0
  %v1868 = vadd.f32 0.0, %v1867
  %1869 = vmatmul.f32.gmra.mxu0 %v1818
  %v1870 = vpop.f32.mrf.mxu0
  %v1871 = vadd.f32 0.0, %v1870
  %1872 = vmatmul.f32.gmra.mxu0 %v1820
  %v1873 = vpop.f32.mrf.mxu0
  %v1874 = vadd.f32 0.0, %v1873
  %1875 = vmatmul.f32.gmra.mxu0 %v1822
  %v1876 = vpop.f32.mrf.mxu0
  %v1877 = vadd.f32 0.0, %v1876
  %1878 = vmatmul.f32.gmra.mxu0 %v1824
  %v1879 = vpop.f32.mrf.mxu0
  %v1880 = vadd.f32 0.0, %v1879
  %1881 = vmatmul.f32.gmra.mxu0 %v1826
  %v1882 = vpop.f32.mrf.mxu0
  %v1883 = vadd.f32 0.0, %v1882
  %1884 = vdwg.mxu0
  %1885 = vrot.lane.b32.xlu0 %v130, 112
  %v1886 = vpop.permute.xlu0 %1885
  %1887 = vrot.lane.b32.xlu0 %v133, 112
  %v1888 = vpop.permute.xlu0 %1887
  %1889 = vrot.lane.b32.xlu0 %v136, 112
  %v1890 = vpop.permute.xlu0 %1889
  %1891 = vrot.lane.b32.xlu0 %v139, 112
  %v1892 = vpop.permute.xlu0 %1891
  %1893 = vrot.lane.b32.xlu0 %v142, 112
  %v1894 = vpop.permute.xlu0 %1893
  %1895 = vrot.lane.b32.xlu0 %v145, 112
  %v1896 = vpop.permute.xlu0 %1895
  %1897 = vrot.lane.b32.xlu0 %v148, 112
  %v1898 = vpop.permute.xlu0 %1897
  %1899 = vrot.lane.b32.xlu0 %v151, 112
  %v1900 = vpop.permute.xlu0 %1899
  %1901 = vrot.lane.b32.xlu0 %v130, 80
  %v1902 = vpop.permute.xlu0 %1901
  %1903 = vrot.lane.b32.xlu0 %v133, 80
  %v1904 = vpop.permute.xlu0 %1903
  %1905 = vrot.lane.b32.xlu0 %v136, 80
  %v1906 = vpop.permute.xlu0 %1905
  %1907 = vrot.lane.b32.xlu0 %v139, 80
  %v1908 = vpop.permute.xlu0 %1907
  %1909 = vrot.lane.b32.xlu0 %v142, 80
  %v1910 = vpop.permute.xlu0 %1909
  %1911 = vrot.lane.b32.xlu0 %v145, 80
  %v1912 = vpop.permute.xlu0 %1911
  %1913 = vrot.lane.b32.xlu0 %v148, 80
  %v1914 = vpop.permute.xlu0 %1913
  %1915 = vrot.lane.b32.xlu0 %v151, 80
  %v1916 = vpop.permute.xlu0 %1915
  %v1917 = vsel %vm177, %v1886, 0
  %v1919 = vsel %vm177, %v1888, 0
  %v1921 = vsel %vm177, %v1890, 0
  %v1923 = vsel %vm177, %v1892, 0
  %v1925 = vsel %vm177, %v1894, 0
  %v1927 = vsel %vm177, %v1896, 0
  %v1929 = vsel %vm177, %v1898, 0
  %v1931 = vsel %vm177, %v1900, 0
  %v1933 = vsel %vm177, %v1902, 0
  %v1935 = vsel %vm177, %v1904, 0
  %v1937 = vsel %vm177, %v1906, 0
  %v1939 = vsel %vm177, %v1908, 0
  %v1941 = vsel %vm177, %v1910, 0
  %v1943 = vsel %vm177, %v1912, 0
  %v1945 = vsel %vm177, %v1914, 0
  %v1947 = vsel %vm177, %v1916, 0
  %1949 = vmatpush.xpose.msra.mxu0 0.0
  %1950 = vmatpush.xpose.msra.mxu0 0.0
  %1951 = vmatpush.xpose.msra.mxu0 0.0
  %1952 = vmatpush.xpose.msra.mxu0 0.0
  %1953 = vmatpush.xpose.msra.mxu0 0.0
  %1954 = vmatpush.xpose.msra.mxu0 0.0
  %1955 = vmatpush.xpose.msra.mxu0 0.0
  %1956 = vmatpush.xpose.msra.mxu0 0.0
  %1957 = vmatpush.xpose.msra.mxu0 %v1947
  %1958 = vmatpush.xpose.msra.mxu0 %v1945
  %1959 = vmatpush.xpose.msra.mxu0 %v1943
  %1960 = vmatpush.xpose.msra.mxu0 %v1941
  %1961 = vmatpush.xpose.msra.mxu0 %v1939
  %1962 = vmatpush.xpose.msra.mxu0 %v1937
  %1963 = vmatpush.xpose.msra.mxu0 %v1935
  %1964 = vmatpush.xpose.msra.mxu0 %v1933
  %1965 = vmatmul.f32.gmra.mxu0 %v1917
  %v1966 = vpop.f32.mrf.mxu0
  %v1967 = vadd.f32 0.0, %v1966
  %1968 = vmatmul.f32.gmra.mxu0 %v1919
  %v1969 = vpop.f32.mrf.mxu0
  %v1970 = vadd.f32 0.0, %v1969
  %1971 = vmatmul.f32.gmra.mxu0 %v1921
  %v1972 = vpop.f32.mrf.mxu0
  %v1973 = vadd.f32 0.0, %v1972
  %1974 = vmatmul.f32.gmra.mxu0 %v1923
  %v1975 = vpop.f32.mrf.mxu0
  %v1976 = vadd.f32 0.0, %v1975
  %1977 = vmatmul.f32.gmra.mxu0 %v1925
  %v1978 = vpop.f32.mrf.mxu0
  %v1979 = vadd.f32 0.0, %v1978
  %1980 = vmatmul.f32.gmra.mxu0 %v1927
  %v1981 = vpop.f32.mrf.mxu0
  %v1982 = vadd.f32 0.0, %v1981
  %1983 = vmatmul.f32.gmra.mxu0 %v1929
  %v1984 = vpop.f32.mrf.mxu0
  %v1985 = vadd.f32 0.0, %v1984
  %1986 = vmatmul.f32.gmra.mxu0 %v1931
  %v1987 = vpop.f32.mrf.mxu0
  %v1988 = vadd.f32 0.0, %v1987
  %1989 = vdwg.mxu0
  %v1990 = vsel %vm348, %v1862, -inf
  %1991 = vmax.xlane.f32.xlu0 %v1990
  %v1992 = vpop.xlane.xlu0 %1991
  %v1993 = vsel %vm348, %v1865, -inf
  %1994 = vmax.xlane.f32.xlu0 %v1993
  %v1995 = vpop.xlane.xlu0 %1994
  %v1996 = vsel %vm348, %v1868, -inf
  %1997 = vmax.xlane.f32.xlu0 %v1996
  %v1998 = vpop.xlane.xlu0 %1997
  %v1999 = vsel %vm348, %v1871, -inf
  %2000 = vmax.xlane.f32.xlu0 %v1999
  %v2001 = vpop.xlane.xlu0 %2000
  %v2002 = vsel %vm348, %v1874, -inf
  %2003 = vmax.xlane.f32.xlu0 %v2002
  %v2004 = vpop.xlane.xlu0 %2003
  %v2005 = vsel %vm348, %v1877, -inf
  %2006 = vmax.xlane.f32.xlu0 %v2005
  %v2007 = vpop.xlane.xlu0 %2006
  %v2008 = vsel %vm348, %v1880, -inf
  %2009 = vmax.xlane.f32.xlu0 %v2008
  %v2010 = vpop.xlane.xlu0 %2009
  %v2011 = vsel %vm348, %v1883, -inf
  %2012 = vmax.xlane.f32.xlu0 %v2011
  %v2013 = vpop.xlane.xlu0 %2012
  %v2014 = vsel %vm348, %v1967, -inf
  %2015 = vmax.xlane.f32.xlu0 %v2014
  %v2016 = vpop.xlane.xlu0 %2015
  %v2017 = vsel %vm348, %v1970, -inf
  %2018 = vmax.xlane.f32.xlu0 %v2017
  %v2019 = vpop.xlane.xlu0 %2018
  %v2020 = vsel %vm348, %v1973, -inf
  %2021 = vmax.xlane.f32.xlu0 %v2020
  %v2022 = vpop.xlane.xlu0 %2021
  %v2023 = vsel %vm348, %v1976, -inf
  %2024 = vmax.xlane.f32.xlu0 %v2023
  %v2025 = vpop.xlane.xlu0 %2024
  %v2026 = vsel %vm348, %v1979, -inf
  %2027 = vmax.xlane.f32.xlu0 %v2026
  %v2028 = vpop.xlane.xlu0 %2027
  %v2029 = vsel %vm348, %v1982, -inf
  %2030 = vmax.xlane.f32.xlu0 %v2029
  %v2031 = vpop.xlane.xlu0 %2030
  %v2032 = vsel %vm348, %v1985, -inf
  %2033 = vmax.xlane.f32.xlu0 %v2032
  %v2034 = vpop.xlane.xlu0 %2033
  %v2035 = vsel %vm348, %v1988, -inf
  %2036 = vmax.xlane.f32.xlu0 %v2035
  %v2037 = vpop.xlane.xlu0 %2036
  %v2038 = vsub.f32 %v1862, %v1992
  %v2039 = vsub.f32 %v1865, %v1995
  %v2040 = vsub.f32 %v1868, %v1998
  %v2041 = vsub.f32 %v1871, %v2001
  %v2042 = vsub.f32 %v1874, %v2004
  %v2043 = vsub.f32 %v1877, %v2007
  %v2044 = vsub.f32 %v1880, %v2010
  %v2045 = vsub.f32 %v1883, %v2013
  %v2046 = vsub.f32 %v1967, %v2016
  %v2047 = vsub.f32 %v1970, %v2019
  %v2048 = vsub.f32 %v1973, %v2022
  %v2049 = vsub.f32 %v1976, %v2025
  %v2050 = vsub.f32 %v1979, %v2028
  %v2051 = vsub.f32 %v1982, %v2031
  %v2052 = vsub.f32 %v1985, %v2034
  %v2053 = vsub.f32 %v1988, %v2037
  %v2054 = vmul.f32 %v2038, 1.442695
  %v2055 = vpow.pop %v2054
  %v2056 = vmul.f32 %v2039, 1.442695
  %v2057 = vpow.pop %v2056
  %v2058 = vmul.f32 %v2040, 1.442695
  %v2059 = vpow.pop %v2058
  %v2060 = vmul.f32 %v2041, 1.442695
  %v2061 = vpow.pop %v2060
  %v2062 = vmul.f32 %v2042, 1.442695
  %v2063 = vpow.pop %v2062
  %v2064 = vmul.f32 %v2043, 1.442695
  %v2065 = vpow.pop %v2064
  %v2066 = vmul.f32 %v2044, 1.442695
  %v2067 = vpow.pop %v2066
  %v2068 = vmul.f32 %v2045, 1.442695
  %v2069 = vpow.pop %v2068
  %v2070 = vmul.f32 %v2046, 1.442695
  %v2071 = vpow.pop %v2070
  %v2072 = vmul.f32 %v2047, 1.442695
  %v2073 = vpow.pop %v2072
  %v2074 = vmul.f32 %v2048, 1.442695
  %v2075 = vpow.pop %v2074
  %v2076 = vmul.f32 %v2049, 1.442695
  %v2077 = vpow.pop %v2076
  %v2078 = vmul.f32 %v2050, 1.442695
  %v2079 = vpow.pop %v2078
  %v2080 = vmul.f32 %v2051, 1.442695
  %v2081 = vpow.pop %v2080
  %v2082 = vmul.f32 %v2052, 1.442695
  %v2083 = vpow.pop %v2082
  %v2084 = vmul.f32 %v2053, 1.442695
  %v2085 = vpow.pop %v2084
  %v2086 = vsel %vm348, %v2055, 0.0
  %2087 = vadd.xlane.f32.xlu0 %v2086
  %v2088 = vpop.xlane.xlu0 %2087
  %v2089 = vsel %vm348, %v2057, 0.0
  %2090 = vadd.xlane.f32.xlu0 %v2089
  %v2091 = vpop.xlane.xlu0 %2090
  %v2092 = vsel %vm348, %v2059, 0.0
  %2093 = vadd.xlane.f32.xlu0 %v2092
  %v2094 = vpop.xlane.xlu0 %2093
  %v2095 = vsel %vm348, %v2061, 0.0
  %2096 = vadd.xlane.f32.xlu0 %v2095
  %v2097 = vpop.xlane.xlu0 %2096
  %v2098 = vsel %vm348, %v2063, 0.0
  %2099 = vadd.xlane.f32.xlu0 %v2098
  %v2100 = vpop.xlane.xlu0 %2099
  %v2101 = vsel %vm348, %v2065, 0.0
  %2102 = vadd.xlane.f32.xlu0 %v2101
  %v2103 = vpop.xlane.xlu0 %2102
  %v2104 = vsel %vm348, %v2067, 0.0
  %2105 = vadd.xlane.f32.xlu0 %v2104
  %v2106 = vpop.xlane.xlu0 %2105
  %v2107 = vsel %vm348, %v2069, 0.0
  %2108 = vadd.xlane.f32.xlu0 %v2107
  %v2109 = vpop.xlane.xlu0 %2108
  %v2110 = vsel %vm348, %v2071, 0.0
  %2111 = vadd.xlane.f32.xlu0 %v2110
  %v2112 = vpop.xlane.xlu0 %2111
  %v2113 = vsel %vm348, %v2073, 0.0
  %2114 = vadd.xlane.f32.xlu0 %v2113
  %v2115 = vpop.xlane.xlu0 %2114
  %v2116 = vsel %vm348, %v2075, 0.0
  %2117 = vadd.xlane.f32.xlu0 %v2116
  %v2118 = vpop.xlane.xlu0 %2117
  %v2119 = vsel %vm348, %v2077, 0.0
  %2120 = vadd.xlane.f32.xlu0 %v2119
  %v2121 = vpop.xlane.xlu0 %2120
  %v2122 = vsel %vm348, %v2079, 0.0
  %2123 = vadd.xlane.f32.xlu0 %v2122
  %v2124 = vpop.xlane.xlu0 %2123
  %v2125 = vsel %vm348, %v2081, 0.0
  %2126 = vadd.xlane.f32.xlu0 %v2125
  %v2127 = vpop.xlane.xlu0 %2126
  %v2128 = vsel %vm348, %v2083, 0.0
  %2129 = vadd.xlane.f32.xlu0 %v2128
  %v2130 = vpop.xlane.xlu0 %2129
  %v2131 = vsel %vm348, %v2085, 0.0
  %2132 = vadd.xlane.f32.xlu0 %v2131
  %v2133 = vpop.xlane.xlu0 %2132
  %v2134 = vrcp.pop %v2088
  %v2135 = vmul.f32 %v2088, %v2134
  %v2136 = vsub.f32 1.0, %v2135
  %v2137 = vmul.f32 %v2134, %v2136
  %v2138 = vadd.f32 %v2134, %v2137
  %vm2139 = vweird.f32 %v2088
  %vm2140 = vweird.f32 %v2134
  %vm2141 = vmor %vm2139, %vm2140
  %v2142 = vsel %vm2141, %v2134, %v2138
  %v2143 = vand.u32 2147483647, %v2088
  %vm2144 = vcmp.eq.f32.partialorder %v2143, 8.507059e+37
  %v2145 = vand.u32 %v2088, 2147483648
  %v2146 = vor.u32 1.1754944e-38, %v2145
  %v2147 = vsel %vm2144, %v2146, %v2142
  %v2148 = vrcp.pop %v2091
  %v2149 = vmul.f32 %v2091, %v2148
  %v2150 = vsub.f32 1.0, %v2149
  %v2151 = vmul.f32 %v2148, %v2150
  %v2152 = vadd.f32 %v2148, %v2151
  %vm2153 = vweird.f32 %v2091
  %vm2154 = vweird.f32 %v2148
  %vm2155 = vmor %vm2153, %vm2154
  %v2156 = vsel %vm2155, %v2148, %v2152
  %v2157 = vand.u32 2147483647, %v2091
  %vm2158 = vcmp.eq.f32.partialorder %v2157, 8.507059e+37
  %v2159 = vand.u32 %v2091, 2147483648
  %v2160 = vor.u32 1.1754944e-38, %v2159
  %v2161 = vsel %vm2158, %v2160, %v2156
  %v2162 = vrcp.pop %v2094
  %v2163 = vmul.f32 %v2094, %v2162
  %v2164 = vsub.f32 1.0, %v2163
  %v2165 = vmul.f32 %v2162, %v2164
  %v2166 = vadd.f32 %v2162, %v2165
  %vm2167 = vweird.f32 %v2094
  %vm2168 = vweird.f32 %v2162
  %vm2169 = vmor %vm2167, %vm2168
  %v2170 = vsel %vm2169, %v2162, %v2166
  %v2171 = vand.u32 2147483647, %v2094
  %vm2172 = vcmp.eq.f32.partialorder %v2171, 8.507059e+37
  %v2173 = vand.u32 %v2094, 2147483648
  %v2174 = vor.u32 1.1754944e-38, %v2173
  %v2175 = vsel %vm2172, %v2174, %v2170
  %v2176 = vrcp.pop %v2097
  %v2177 = vmul.f32 %v2097, %v2176
  %v2178 = vsub.f32 1.0, %v2177
  %v2179 = vmul.f32 %v2176, %v2178
  %v2180 = vadd.f32 %v2176, %v2179
  %vm2181 = vweird.f32 %v2097
  %vm2182 = vweird.f32 %v2176
  %vm2183 = vmor %vm2181, %vm2182
  %v2184 = vsel %vm2183, %v2176, %v2180
  %v2185 = vand.u32 2147483647, %v2097
  %vm2186 = vcmp.eq.f32.partialorder %v2185, 8.507059e+37
  %v2187 = vand.u32 %v2097, 2147483648
  %v2188 = vor.u32 1.1754944e-38, %v2187
  %v2189 = vsel %vm2186, %v2188, %v2184
  %v2190 = vrcp.pop %v2100
  %v2191 = vmul.f32 %v2100, %v2190
  %v2192 = vsub.f32 1.0, %v2191
  %v2193 = vmul.f32 %v2190, %v2192
  %v2194 = vadd.f32 %v2190, %v2193
  %vm2195 = vweird.f32 %v2100
  %vm2196 = vweird.f32 %v2190
  %vm2197 = vmor %vm2195, %vm2196
  %v2198 = vsel %vm2197, %v2190, %v2194
  %v2199 = vand.u32 2147483647, %v2100
  %vm2200 = vcmp.eq.f32.partialorder %v2199, 8.507059e+37
  %v2201 = vand.u32 %v2100, 2147483648
  %v2202 = vor.u32 1.1754944e-38, %v2201
  %v2203 = vsel %vm2200, %v2202, %v2198
  %v2204 = vrcp.pop %v2103
  %v2205 = vmul.f32 %v2103, %v2204
  %v2206 = vsub.f32 1.0, %v2205
  %v2207 = vmul.f32 %v2204, %v2206
  %v2208 = vadd.f32 %v2204, %v2207
  %vm2209 = vweird.f32 %v2103
  %vm2210 = vweird.f32 %v2204
  %vm2211 = vmor %vm2209, %vm2210
  %v2212 = vsel %vm2211, %v2204, %v2208
  %v2213 = vand.u32 2147483647, %v2103
  %vm2214 = vcmp.eq.f32.partialorder %v2213, 8.507059e+37
  %v2215 = vand.u32 %v2103, 2147483648
  %v2216 = vor.u32 1.1754944e-38, %v2215
  %v2217 = vsel %vm2214, %v2216, %v2212
  %v2218 = vrcp.pop %v2106
  %v2219 = vmul.f32 %v2106, %v2218
  %v2220 = vsub.f32 1.0, %v2219
  %v2221 = vmul.f32 %v2218, %v2220
  %v2222 = vadd.f32 %v2218, %v2221
  %vm2223 = vweird.f32 %v2106
  %vm2224 = vweird.f32 %v2218
  %vm2225 = vmor %vm2223, %vm2224
  %v2226 = vsel %vm2225, %v2218, %v2222
  %v2227 = vand.u32 2147483647, %v2106
  %vm2228 = vcmp.eq.f32.partialorder %v2227, 8.507059e+37
  %v2229 = vand.u32 %v2106, 2147483648
  %v2230 = vor.u32 1.1754944e-38, %v2229
  %v2231 = vsel %vm2228, %v2230, %v2226
  %v2232 = vrcp.pop %v2109
  %v2233 = vmul.f32 %v2109, %v2232
  %v2234 = vsub.f32 1.0, %v2233
  %v2235 = vmul.f32 %v2232, %v2234
  %v2236 = vadd.f32 %v2232, %v2235
  %vm2237 = vweird.f32 %v2109
  %vm2238 = vweird.f32 %v2232
  %vm2239 = vmor %vm2237, %vm2238
  %v2240 = vsel %vm2239, %v2232, %v2236
  %v2241 = vand.u32 2147483647, %v2109
  %vm2242 = vcmp.eq.f32.partialorder %v2241, 8.507059e+37
  %v2243 = vand.u32 %v2109, 2147483648
  %v2244 = vor.u32 1.1754944e-38, %v2243
  %v2245 = vsel %vm2242, %v2244, %v2240
  %v2246 = vrcp.pop %v2112
  %v2247 = vmul.f32 %v2112, %v2246
  %v2248 = vsub.f32 1.0, %v2247
  %v2249 = vmul.f32 %v2246, %v2248
  %v2250 = vadd.f32 %v2246, %v2249
  %vm2251 = vweird.f32 %v2112
  %vm2252 = vweird.f32 %v2246
  %vm2253 = vmor %vm2251, %vm2252
  %v2254 = vsel %vm2253, %v2246, %v2250
  %v2255 = vand.u32 2147483647, %v2112
  %vm2256 = vcmp.eq.f32.partialorder %v2255, 8.507059e+37
  %v2257 = vand.u32 %v2112, 2147483648
  %v2258 = vor.u32 1.1754944e-38, %v2257
  %v2259 = vsel %vm2256, %v2258, %v2254
  %v2260 = vrcp.pop %v2115
  %v2261 = vmul.f32 %v2115, %v2260
  %v2262 = vsub.f32 1.0, %v2261
  %v2263 = vmul.f32 %v2260, %v2262
  %v2264 = vadd.f32 %v2260, %v2263
  %vm2265 = vweird.f32 %v2115
  %vm2266 = vweird.f32 %v2260
  %vm2267 = vmor %vm2265, %vm2266
  %v2268 = vsel %vm2267, %v2260, %v2264
  %v2269 = vand.u32 2147483647, %v2115
  %vm2270 = vcmp.eq.f32.partialorder %v2269, 8.507059e+37
  %v2271 = vand.u32 %v2115, 2147483648
  %v2272 = vor.u32 1.1754944e-38, %v2271
  %v2273 = vsel %vm2270, %v2272, %v2268
  %v2274 = vrcp.pop %v2118
  %v2275 = vmul.f32 %v2118, %v2274
  %v2276 = vsub.f32 1.0, %v2275
  %v2277 = vmul.f32 %v2274, %v2276
  %v2278 = vadd.f32 %v2274, %v2277
  %vm2279 = vweird.f32 %v2118
  %vm2280 = vweird.f32 %v2274
  %vm2281 = vmor %vm2279, %vm2280
  %v2282 = vsel %vm2281, %v2274, %v2278
  %v2283 = vand.u32 2147483647, %v2118
  %vm2284 = vcmp.eq.f32.partialorder %v2283, 8.507059e+37
  %v2285 = vand.u32 %v2118, 2147483648
  %v2286 = vor.u32 1.1754944e-38, %v2285
  %v2287 = vsel %vm2284, %v2286, %v2282
  %v2288 = vrcp.pop %v2121
  %v2289 = vmul.f32 %v2121, %v2288
  %v2290 = vsub.f32 1.0, %v2289
  %v2291 = vmul.f32 %v2288, %v2290
  %v2292 = vadd.f32 %v2288, %v2291
  %vm2293 = vweird.f32 %v2121
  %vm2294 = vweird.f32 %v2288
  %vm2295 = vmor %vm2293, %vm2294
  %v2296 = vsel %vm2295, %v2288, %v2292
  %v2297 = vand.u32 2147483647, %v2121
  %vm2298 = vcmp.eq.f32.partialorder %v2297, 8.507059e+37
  %v2299 = vand.u32 %v2121, 2147483648
  %v2300 = vor.u32 1.1754944e-38, %v2299
  %v2301 = vsel %vm2298, %v2300, %v2296
  %v2302 = vrcp.pop %v2124
  %v2303 = vmul.f32 %v2124, %v2302
  %v2304 = vsub.f32 1.0, %v2303
  %v2305 = vmul.f32 %v2302, %v2304
  %v2306 = vadd.f32 %v2302, %v2305
  %vm2307 = vweird.f32 %v2124
  %vm2308 = vweird.f32 %v2302
  %vm2309 = vmor %vm2307, %vm2308
  %v2310 = vsel %vm2309, %v2302, %v2306
  %v2311 = vand.u32 2147483647, %v2124
  %vm2312 = vcmp.eq.f32.partialorder %v2311, 8.507059e+37
  %v2313 = vand.u32 %v2124, 2147483648
  %v2314 = vor.u32 1.1754944e-38, %v2313
  %v2315 = vsel %vm2312, %v2314, %v2310
  %v2316 = vrcp.pop %v2127
  %v2317 = vmul.f32 %v2127, %v2316
  %v2318 = vsub.f32 1.0, %v2317
  %v2319 = vmul.f32 %v2316, %v2318
  %v2320 = vadd.f32 %v2316, %v2319
  %vm2321 = vweird.f32 %v2127
  %vm2322 = vweird.f32 %v2316
  %vm2323 = vmor %vm2321, %vm2322
  %v2324 = vsel %vm2323, %v2316, %v2320
  %v2325 = vand.u32 2147483647, %v2127
  %vm2326 = vcmp.eq.f32.partialorder %v2325, 8.507059e+37
  %v2327 = vand.u32 %v2127, 2147483648
  %v2328 = vor.u32 1.1754944e-38, %v2327
  %v2329 = vsel %vm2326, %v2328, %v2324
  %v2330 = vrcp.pop %v2130
  %v2331 = vmul.f32 %v2130, %v2330
  %v2332 = vsub.f32 1.0, %v2331
  %v2333 = vmul.f32 %v2330, %v2332
  %v2334 = vadd.f32 %v2330, %v2333
  %vm2335 = vweird.f32 %v2130
  %vm2336 = vweird.f32 %v2330
  %vm2337 = vmor %vm2335, %vm2336
  %v2338 = vsel %vm2337, %v2330, %v2334
  %v2339 = vand.u32 2147483647, %v2130
  %vm2340 = vcmp.eq.f32.partialorder %v2339, 8.507059e+37
  %v2341 = vand.u32 %v2130, 2147483648
  %v2342 = vor.u32 1.1754944e-38, %v2341
  %v2343 = vsel %vm2340, %v2342, %v2338
  %v2344 = vrcp.pop %v2133
  %v2345 = vmul.f32 %v2133, %v2344
  %v2346 = vsub.f32 1.0, %v2345
  %v2347 = vmul.f32 %v2344, %v2346
  %v2348 = vadd.f32 %v2344, %v2347
  %vm2349 = vweird.f32 %v2133
  %vm2350 = vweird.f32 %v2344
  %vm2351 = vmor %vm2349, %vm2350
  %v2352 = vsel %vm2351, %v2344, %v2348
  %v2353 = vand.u32 2147483647, %v2133
  %vm2354 = vcmp.eq.f32.partialorder %v2353, 8.507059e+37
  %v2355 = vand.u32 %v2133, 2147483648
  %v2356 = vor.u32 1.1754944e-38, %v2355
  %v2357 = vsel %vm2354, %v2356, %v2352
  %v2358 = vmul.f32 %v2055, %v2147
  %v2359 = vmul.f32 %v2057, %v2161
  %v2360 = vmul.f32 %v2059, %v2175
  %v2361 = vmul.f32 %v2061, %v2189
  %v2362 = vmul.f32 %v2063, %v2203
  %v2363 = vmul.f32 %v2065, %v2217
  %v2364 = vmul.f32 %v2067, %v2231
  %v2365 = vmul.f32 %v2069, %v2245
  %v2366 = vmul.f32 %v2071, %v2259
  %v2367 = vmul.f32 %v2073, %v2273
  %v2368 = vmul.f32 %v2075, %v2287
  %v2369 = vmul.f32 %v2077, %v2301
  %v2370 = vmul.f32 %v2079, %v2315
  %v2371 = vmul.f32 %v2081, %v2329
  %v2372 = vmul.f32 %v2083, %v2343
  %v2373 = vmul.f32 %v2085, %v2357
  %2374 = vrot.lane.b32.xlu0 %v106, 48
  %v2375 = vpop.permute.xlu0 %2374
  %2376 = vrot.lane.b32.xlu0 %v109, 48
  %v2377 = vpop.permute.xlu0 %2376
  %2378 = vrot.lane.b32.xlu0 %v112, 48
  %v2379 = vpop.permute.xlu0 %2378
  %2380 = vrot.lane.b32.xlu0 %v115, 48
  %v2381 = vpop.permute.xlu0 %2380
  %2382 = vrot.lane.b32.xlu0 %v118, 48
  %v2383 = vpop.permute.xlu0 %2382
  %2384 = vrot.lane.b32.xlu0 %v121, 48
  %v2385 = vpop.permute.xlu0 %2384
  %2386 = vrot.lane.b32.xlu0 %v124, 48
  %v2387 = vpop.permute.xlu0 %2386
  %2388 = vrot.lane.b32.xlu0 %v127, 48
  %v2389 = vpop.permute.xlu0 %2388
  %v2399 = vsel %vm348, %v2358, 0
  %v2402 = vsel %vm348, %v2359, 0
  %v2405 = vsel %vm348, %v2360, 0
  %v2408 = vsel %vm348, %v2361, 0
  %v2411 = vsel %vm348, %v2362, 0
  %v2414 = vsel %vm348, %v2363, 0
  %v2417 = vsel %vm348, %v2364, 0
  %v2420 = vsel %vm348, %v2365, 0
  %2422 = vmatpush.msra.mxu0 0.0
  %2423 = vmatpush.msra.mxu0 0.0
  %2424 = vmatpush.msra.mxu0 0.0
  %2425 = vmatpush.msra.mxu0 0.0
  %2426 = vmatpush.msra.mxu0 0.0
  %2427 = vmatpush.msra.mxu0 0.0
  %2428 = vmatpush.msra.mxu0 0.0
  %2429 = vmatpush.msra.mxu0 0.0
  %2430 = vmatpush.msra.mxu0 %v2389
  %2431 = vmatpush.msra.mxu0 %v2387
  %2432 = vmatpush.msra.mxu0 %v2385
  %2433 = vmatpush.msra.mxu0 %v2383
  %2434 = vmatpush.msra.mxu0 %v2381
  %2435 = vmatpush.msra.mxu0 %v2379
  %2436 = vmatpush.msra.mxu0 %v2377
  %2437 = vmatpush.msra.mxu0 %v2375
  %2438 = vmatmul.f32.gmra.mxu0 %v2399
  %v2439 = vpop.f32.mrf.mxu0
  %v2440 = vadd.f32 0.0, %v2439
  %2441 = vmatmul.f32.gmra.mxu0 %v2402
  %v2442 = vpop.f32.mrf.mxu0
  %v2443 = vadd.f32 0.0, %v2442
  %2444 = vmatmul.f32.gmra.mxu0 %v2405
  %v2445 = vpop.f32.mrf.mxu0
  %v2446 = vadd.f32 0.0, %v2445
  %2447 = vmatmul.f32.gmra.mxu0 %v2408
  %v2448 = vpop.f32.mrf.mxu0
  %v2449 = vadd.f32 0.0, %v2448
  %2450 = vmatmul.f32.gmra.mxu0 %v2411
  %v2451 = vpop.f32.mrf.mxu0
  %v2452 = vadd.f32 0.0, %v2451
  %2453 = vmatmul.f32.gmra.mxu0 %v2414
  %v2454 = vpop.f32.mrf.mxu0
  %v2455 = vadd.f32 0.0, %v2454
  %2456 = vmatmul.f32.gmra.mxu0 %v2417
  %v2457 = vpop.f32.mrf.mxu0
  %v2458 = vadd.f32 0.0, %v2457
  %2459 = vmatmul.f32.gmra.mxu0 %v2420
  %v2460 = vpop.f32.mrf.mxu0
  %v2461 = vadd.f32 0.0, %v2460
  %2462 = vdwg.mxu0
  %2463 = vrot.lane.b32.xlu0 %v130, 48
  %v2464 = vpop.permute.xlu0 %2463
  %2465 = vrot.lane.b32.xlu0 %v133, 48
  %v2466 = vpop.permute.xlu0 %2465
  %2467 = vrot.lane.b32.xlu0 %v136, 48
  %v2468 = vpop.permute.xlu0 %2467
  %2469 = vrot.lane.b32.xlu0 %v139, 48
  %v2470 = vpop.permute.xlu0 %2469
  %2471 = vrot.lane.b32.xlu0 %v142, 48
  %v2472 = vpop.permute.xlu0 %2471
  %2473 = vrot.lane.b32.xlu0 %v145, 48
  %v2474 = vpop.permute.xlu0 %2473
  %2475 = vrot.lane.b32.xlu0 %v148, 48
  %v2476 = vpop.permute.xlu0 %2475
  %2477 = vrot.lane.b32.xlu0 %v151, 48
  %v2478 = vpop.permute.xlu0 %2477
  %v2488 = vsel %vm348, %v2366, 0
  %v2491 = vsel %vm348, %v2367, 0
  %v2494 = vsel %vm348, %v2368, 0
  %v2497 = vsel %vm348, %v2369, 0
  %v2500 = vsel %vm348, %v2370, 0
  %v2503 = vsel %vm348, %v2371, 0
  %v2506 = vsel %vm348, %v2372, 0
  %v2509 = vsel %vm348, %v2373, 0
  %2511 = vmatpush.msra.mxu0 0.0
  %2512 = vmatpush.msra.mxu0 0.0
  %2513 = vmatpush.msra.mxu0 0.0
  %2514 = vmatpush.msra.mxu0 0.0
  %2515 = vmatpush.msra.mxu0 0.0
  %2516 = vmatpush.msra.mxu0 0.0
  %2517 = vmatpush.msra.mxu0 0.0
  %2518 = vmatpush.msra.mxu0 0.0
  %2519 = vmatpush.msra.mxu0 %v2478
  %2520 = vmatpush.msra.mxu0 %v2476
  %2521 = vmatpush.msra.mxu0 %v2474
  %2522 = vmatpush.msra.mxu0 %v2472
  %2523 = vmatpush.msra.mxu0 %v2470
  %2524 = vmatpush.msra.mxu0 %v2468
  %2525 = vmatpush.msra.mxu0 %v2466
  %2526 = vmatpush.msra.mxu0 %v2464
  %2527 = vmatmul.f32.gmra.mxu0 %v2488
  %v2528 = vpop.f32.mrf.mxu0
  %v2529 = vadd.f32 0.0, %v2528
  %2530 = vmatmul.f32.gmra.mxu0 %v2491
  %v2531 = vpop.f32.mrf.mxu0
  %v2532 = vadd.f32 0.0, %v2531
  %2533 = vmatmul.f32.gmra.mxu0 %v2494
  %v2534 = vpop.f32.mrf.mxu0
  %v2535 = vadd.f32 0.0, %v2534
  %2536 = vmatmul.f32.gmra.mxu0 %v2497
  %v2537 = vpop.f32.mrf.mxu0
  %v2538 = vadd.f32 0.0, %v2537
  %2539 = vmatmul.f32.gmra.mxu0 %v2500
  %v2540 = vpop.f32.mrf.mxu0
  %v2541 = vadd.f32 0.0, %v2540
  %2542 = vmatmul.f32.gmra.mxu0 %v2503
  %v2543 = vpop.f32.mrf.mxu0
  %v2544 = vadd.f32 0.0, %v2543
  %2545 = vmatmul.f32.gmra.mxu0 %v2506
  %v2546 = vpop.f32.mrf.mxu0
  %v2547 = vadd.f32 0.0, %v2546
  %2548 = vmatmul.f32.gmra.mxu0 %v2509
  %v2549 = vpop.f32.mrf.mxu0
  %v2550 = vadd.f32 0.0, %v2549
  %2551 = vdwg.mxu0
  %2568 = vrot.lane.b32.xlu0 %v2440, 16
  %v2569 = vpop.permute.xlu0 %2568
  %2570 = vrot.lane.b32.xlu0 %v2443, 16
  %v2571 = vpop.permute.xlu0 %2570
  %2572 = vrot.lane.b32.xlu0 %v2446, 16
  %v2573 = vpop.permute.xlu0 %2572
  %2574 = vrot.lane.b32.xlu0 %v2449, 16
  %v2575 = vpop.permute.xlu0 %2574
  %2576 = vrot.lane.b32.xlu0 %v2452, 16
  %v2577 = vpop.permute.xlu0 %2576
  %2578 = vrot.lane.b32.xlu0 %v2455, 16
  %v2579 = vpop.permute.xlu0 %2578
  %2580 = vrot.lane.b32.xlu0 %v2458, 16
  %v2581 = vpop.permute.xlu0 %2580
  %2582 = vrot.lane.b32.xlu0 %v2461, 16
  %v2583 = vpop.permute.xlu0 %2582
  %2584 = vrot.lane.b32.xlu0 %v2529, 16
  %v2585 = vpop.permute.xlu0 %2584
  %2586 = vrot.lane.b32.xlu0 %v2532, 16
  %v2587 = vpop.permute.xlu0 %2586
  %2588 = vrot.lane.b32.xlu0 %v2535, 16
  %v2589 = vpop.permute.xlu0 %2588
  %2590 = vrot.lane.b32.xlu0 %v2538, 16
  %v2591 = vpop.permute.xlu0 %2590
  %2592 = vrot.lane.b32.xlu0 %v2541, 16
  %v2593 = vpop.permute.xlu0 %2592
  %2594 = vrot.lane.b32.xlu0 %v2544, 16
  %v2595 = vpop.permute.xlu0 %2594
  %2596 = vrot.lane.b32.xlu0 %v2547, 16
  %v2597 = vpop.permute.xlu0 %2596
  %2598 = vrot.lane.b32.xlu0 %v2550, 16
  %v2599 = vpop.permute.xlu0 %2598
  %vm2616 = vcmask 195712
  %2617 = vst.msk [vmem:[#allocation2] sm:$0xff] %vm2616, %v2569
  %2618 = vst.msk [vmem:[#allocation2 + $0x8] sm:$0xff] %vm2616, %v2571
  %2619 = vst.msk [vmem:[#allocation2 + $0x10] sm:$0xff] %vm2616, %v2573
  %2620 = vst.msk [vmem:[#allocation2 + $0x18] sm:$0xff] %vm2616, %v2575
  %2621 = vst.msk [vmem:[#allocation2 + $0x20] sm:$0xff] %vm2616, %v2577
  %2622 = vst.msk [vmem:[#allocation2 + $0x28] sm:$0xff] %vm2616, %v2579
  %2623 = vst.msk [vmem:[#allocation2 + $0x30] sm:$0xff] %vm2616, %v2581
  %2624 = vst.msk [vmem:[#allocation2 + $0x38] sm:$0xff] %vm2616, %v2583
  %2625 = vst.msk [vmem:[#allocation2 + $0x40] sm:$0xff] %vm2616, %v2585
  %2626 = vst.msk [vmem:[#allocation2 + $0x48] sm:$0xff] %vm2616, %v2587
  %2627 = vst.msk [vmem:[#allocation2 + $0x50] sm:$0xff] %vm2616, %v2589
  %2628 = vst.msk [vmem:[#allocation2 + $0x58] sm:$0xff] %vm2616, %v2591
  %2629 = vst.msk [vmem:[#allocation2 + $0x60] sm:$0xff] %vm2616, %v2593
  %2630 = vst.msk [vmem:[#allocation2 + $0x68] sm:$0xff] %vm2616, %v2595
  %2631 = vst.msk [vmem:[#allocation2 + $0x70] sm:$0xff] %vm2616, %v2597
  %2632 = vst.msk [vmem:[#allocation2 + $0x78] sm:$0xff] %vm2616, %v2599
  %2633 = vrot.lane.b32.xlu0 %v106, 104
  %v2634 = vpop.permute.xlu0 %2633
  %2635 = vrot.lane.b32.xlu0 %v109, 104
  %v2636 = vpop.permute.xlu0 %2635
  %2637 = vrot.lane.b32.xlu0 %v112, 104
  %v2638 = vpop.permute.xlu0 %2637
  %2639 = vrot.lane.b32.xlu0 %v115, 104
  %v2640 = vpop.permute.xlu0 %2639
  %2641 = vrot.lane.b32.xlu0 %v118, 104
  %v2642 = vpop.permute.xlu0 %2641
  %2643 = vrot.lane.b32.xlu0 %v121, 104
  %v2644 = vpop.permute.xlu0 %2643
  %2645 = vrot.lane.b32.xlu0 %v124, 104
  %v2646 = vpop.permute.xlu0 %2645
  %2647 = vrot.lane.b32.xlu0 %v127, 104
  %v2648 = vpop.permute.xlu0 %2647
  %2649 = vrot.lane.b32.xlu0 %v106, 72
  %v2650 = vpop.permute.xlu0 %2649
  %2651 = vrot.lane.b32.xlu0 %v109, 72
  %v2652 = vpop.permute.xlu0 %2651
  %2653 = vrot.lane.b32.xlu0 %v112, 72
  %v2654 = vpop.permute.xlu0 %2653
  %2655 = vrot.lane.b32.xlu0 %v115, 72
  %v2656 = vpop.permute.xlu0 %2655
  %2657 = vrot.lane.b32.xlu0 %v118, 72
  %v2658 = vpop.permute.xlu0 %2657
  %2659 = vrot.lane.b32.xlu0 %v121, 72
  %v2660 = vpop.permute.xlu0 %2659
  %2661 = vrot.lane.b32.xlu0 %v124, 72
  %v2662 = vpop.permute.xlu0 %2661
  %2663 = vrot.lane.b32.xlu0 %v127, 72
  %v2664 = vpop.permute.xlu0 %2663
  %v2665 = vsel %vm177, %v2634, 0
  %v2667 = vsel %vm177, %v2636, 0
  %v2669 = vsel %vm177, %v2638, 0
  %v2671 = vsel %vm177, %v2640, 0
  %v2673 = vsel %vm177, %v2642, 0
  %v2675 = vsel %vm177, %v2644, 0
  %v2677 = vsel %vm177, %v2646, 0
  %v2679 = vsel %vm177, %v2648, 0
  %v2681 = vsel %vm177, %v2650, 0
  %v2683 = vsel %vm177, %v2652, 0
  %v2685 = vsel %vm177, %v2654, 0
  %v2687 = vsel %vm177, %v2656, 0
  %v2689 = vsel %vm177, %v2658, 0
  %v2691 = vsel %vm177, %v2660, 0
  %v2693 = vsel %vm177, %v2662, 0
  %v2695 = vsel %vm177, %v2664, 0
  %2697 = vmatpush.xpose.msra.mxu0 0.0
  %2698 = vmatpush.xpose.msra.mxu0 0.0
  %2699 = vmatpush.xpose.msra.mxu0 0.0
  %2700 = vmatpush.xpose.msra.mxu0 0.0
  %2701 = vmatpush.xpose.msra.mxu0 0.0
  %2702 = vmatpush.xpose.msra.mxu0 0.0
  %2703 = vmatpush.xpose.msra.mxu0 0.0
  %2704 = vmatpush.xpose.msra.mxu0 0.0
  %2705 = vmatpush.xpose.msra.mxu0 %v2695
  %2706 = vmatpush.xpose.msra.mxu0 %v2693
  %2707 = vmatpush.xpose.msra.mxu0 %v2691
  %2708 = vmatpush.xpose.msra.mxu0 %v2689
  %2709 = vmatpush.xpose.msra.mxu0 %v2687
  %2710 = vmatpush.xpose.msra.mxu0 %v2685
  %2711 = vmatpush.xpose.msra.mxu0 %v2683
  %2712 = vmatpush.xpose.msra.mxu0 %v2681
  %2713 = vmatmul.f32.gmra.mxu0 %v2665
  %v2714 = vpop.f32.mrf.mxu0
  %v2715 = vadd.f32 0.0, %v2714
  %2716 = vmatmul.f32.gmra.mxu0 %v2667
  %v2717 = vpop.f32.mrf.mxu0
  %v2718 = vadd.f32 0.0, %v2717
  %2719 = vmatmul.f32.gmra.mxu0 %v2669
  %v2720 = vpop.f32.mrf.mxu0
  %v2721 = vadd.f32 0.0, %v2720
  %2722 = vmatmul.f32.gmra.mxu0 %v2671
  %v2723 = vpop.f32.mrf.mxu0
  %v2724 = vadd.f32 0.0, %v2723
  %2725 = vmatmul.f32.gmra.mxu0 %v2673
  %v2726 = vpop.f32.mrf.mxu0
  %v2727 = vadd.f32 0.0, %v2726
  %2728 = vmatmul.f32.gmra.mxu0 %v2675
  %v2729 = vpop.f32.mrf.mxu0
  %v2730 = vadd.f32 0.0, %v2729
  %2731 = vmatmul.f32.gmra.mxu0 %v2677
  %v2732 = vpop.f32.mrf.mxu0
  %v2733 = vadd.f32 0.0, %v2732
  %2734 = vmatmul.f32.gmra.mxu0 %v2679
  %v2735 = vpop.f32.mrf.mxu0
  %v2736 = vadd.f32 0.0, %v2735
  %2737 = vdwg.mxu0
  %2738 = vrot.lane.b32.xlu0 %v130, 104
  %v2739 = vpop.permute.xlu0 %2738
  %2740 = vrot.lane.b32.xlu0 %v133, 104
  %v2741 = vpop.permute.xlu0 %2740
  %2742 = vrot.lane.b32.xlu0 %v136, 104
  %v2743 = vpop.permute.xlu0 %2742
  %2744 = vrot.lane.b32.xlu0 %v139, 104
  %v2745 = vpop.permute.xlu0 %2744
  %2746 = vrot.lane.b32.xlu0 %v142, 104
  %v2747 = vpop.permute.xlu0 %2746
  %2748 = vrot.lane.b32.xlu0 %v145, 104
  %v2749 = vpop.permute.xlu0 %2748
  %2750 = vrot.lane.b32.xlu0 %v148, 104
  %v2751 = vpop.permute.xlu0 %2750
  %2752 = vrot.lane.b32.xlu0 %v151, 104
  %v2753 = vpop.permute.xlu0 %2752
  %2754 = vrot.lane.b32.xlu0 %v130, 72
  %v2755 = vpop.permute.xlu0 %2754
  %2756 = vrot.lane.b32.xlu0 %v133, 72
  %v2757 = vpop.permute.xlu0 %2756
  %2758 = vrot.lane.b32.xlu0 %v136, 72
  %v2759 = vpop.permute.xlu0 %2758
  %2760 = vrot.lane.b32.xlu0 %v139, 72
  %v2761 = vpop.permute.xlu0 %2760
  %2762 = vrot.lane.b32.xlu0 %v142, 72
  %v2763 = vpop.permute.xlu0 %2762
  %2764 = vrot.lane.b32.xlu0 %v145, 72
  %v2765 = vpop.permute.xlu0 %2764
  %2766 = vrot.lane.b32.xlu0 %v148, 72
  %v2767 = vpop.permute.xlu0 %2766
  %2768 = vrot.lane.b32.xlu0 %v151, 72
  %v2769 = vpop.permute.xlu0 %2768
  %v2770 = vsel %vm177, %v2739, 0
  %v2772 = vsel %vm177, %v2741, 0
  %v2774 = vsel %vm177, %v2743, 0
  %v2776 = vsel %vm177, %v2745, 0
  %v2778 = vsel %vm177, %v2747, 0
  %v2780 = vsel %vm177, %v2749, 0
  %v2782 = vsel %vm177, %v2751, 0
  %v2784 = vsel %vm177, %v2753, 0
  %v2786 = vsel %vm177, %v2755, 0
  %v2788 = vsel %vm177, %v2757, 0
  %v2790 = vsel %vm177, %v2759, 0
  %v2792 = vsel %vm177, %v2761, 0
  %v2794 = vsel %vm177, %v2763, 0
  %v2796 = vsel %vm177, %v2765, 0
  %v2798 = vsel %vm177, %v2767, 0
  %v2800 = vsel %vm177, %v2769, 0
  %2802 = vmatpush.xpose.msra.mxu0 0.0
  %2803 = vmatpush.xpose.msra.mxu0 0.0
  %2804 = vmatpush.xpose.msra.mxu0 0.0
  %2805 = vmatpush.xpose.msra.mxu0 0.0
  %2806 = vmatpush.xpose.msra.mxu0 0.0
  %2807 = vmatpush.xpose.msra.mxu0 0.0
  %2808 = vmatpush.xpose.msra.mxu0 0.0
  %2809 = vmatpush.xpose.msra.mxu0 0.0
  %2810 = vmatpush.xpose.msra.mxu0 %v2800
  %2811 = vmatpush.xpose.msra.mxu0 %v2798
  %2812 = vmatpush.xpose.msra.mxu0 %v2796
  %2813 = vmatpush.xpose.msra.mxu0 %v2794
  %2814 = vmatpush.xpose.msra.mxu0 %v2792
  %2815 = vmatpush.xpose.msra.mxu0 %v2790
  %2816 = vmatpush.xpose.msra.mxu0 %v2788
  %2817 = vmatpush.xpose.msra.mxu0 %v2786
  %2818 = vmatmul.f32.gmra.mxu0 %v2770
  %v2819 = vpop.f32.mrf.mxu0
  %v2820 = vadd.f32 0.0, %v2819
  %2821 = vmatmul.f32.gmra.mxu0 %v2772
  %v2822 = vpop.f32.mrf.mxu0
  %v2823 = vadd.f32 0.0, %v2822
  %2824 = vmatmul.f32.gmra.mxu0 %v2774
  %v2825 = vpop.f32.mrf.mxu0
  %v2826 = vadd.f32 0.0, %v2825
  %2827 = vmatmul.f32.gmra.mxu0 %v2776
  %v2828 = vpop.f32.mrf.mxu0
  %v2829 = vadd.f32 0.0, %v2828
  %2830 = vmatmul.f32.gmra.mxu0 %v2778
  %v2831 = vpop.f32.mrf.mxu0
  %v2832 = vadd.f32 0.0, %v2831
  %2833 = vmatmul.f32.gmra.mxu0 %v2780
  %v2834 = vpop.f32.mrf.mxu0
  %v2835 = vadd.f32 0.0, %v2834
  %2836 = vmatmul.f32.gmra.mxu0 %v2782
  %v2837 = vpop.f32.mrf.mxu0
  %v2838 = vadd.f32 0.0, %v2837
  %2839 = vmatmul.f32.gmra.mxu0 %v2784
  %v2840 = vpop.f32.mrf.mxu0
  %v2841 = vadd.f32 0.0, %v2840
  %2842 = vdwg.mxu0
  %v2843 = vsel %vm348, %v2715, -inf
  %2844 = vmax.xlane.f32.xlu0 %v2843
  %v2845 = vpop.xlane.xlu0 %2844
  %v2846 = vsel %vm348, %v2718, -inf
  %2847 = vmax.xlane.f32.xlu0 %v2846
  %v2848 = vpop.xlane.xlu0 %2847
  %v2849 = vsel %vm348, %v2721, -inf
  %2850 = vmax.xlane.f32.xlu0 %v2849
  %v2851 = vpop.xlane.xlu0 %2850
  %v2852 = vsel %vm348, %v2724, -inf
  %2853 = vmax.xlane.f32.xlu0 %v2852
  %v2854 = vpop.xlane.xlu0 %2853
  %v2855 = vsel %vm348, %v2727, -inf
  %2856 = vmax.xlane.f32.xlu0 %v2855
  %v2857 = vpop.xlane.xlu0 %2856
  %v2858 = vsel %vm348, %v2730, -inf
  %2859 = vmax.xlane.f32.xlu0 %v2858
  %v2860 = vpop.xlane.xlu0 %2859
  %v2861 = vsel %vm348, %v2733, -inf
  %2862 = vmax.xlane.f32.xlu0 %v2861
  %v2863 = vpop.xlane.xlu0 %2862
  %v2864 = vsel %vm348, %v2736, -inf
  %2865 = vmax.xlane.f32.xlu0 %v2864
  %v2866 = vpop.xlane.xlu0 %2865
  %v2867 = vsel %vm348, %v2820, -inf
  %2868 = vmax.xlane.f32.xlu0 %v2867
  %v2869 = vpop.xlane.xlu0 %2868
  %v2870 = vsel %vm348, %v2823, -inf
  %2871 = vmax.xlane.f32.xlu0 %v2870
  %v2872 = vpop.xlane.xlu0 %2871
  %v2873 = vsel %vm348, %v2826, -inf
  %2874 = vmax.xlane.f32.xlu0 %v2873
  %v2875 = vpop.xlane.xlu0 %2874
  %v2876 = vsel %vm348, %v2829, -inf
  %2877 = vmax.xlane.f32.xlu0 %v2876
  %v2878 = vpop.xlane.xlu0 %2877
  %v2879 = vsel %vm348, %v2832, -inf
  %2880 = vmax.xlane.f32.xlu0 %v2879
  %v2881 = vpop.xlane.xlu0 %2880
  %v2882 = vsel %vm348, %v2835, -inf
  %2883 = vmax.xlane.f32.xlu0 %v2882
  %v2884 = vpop.xlane.xlu0 %2883
  %v2885 = vsel %vm348, %v2838, -inf
  %2886 = vmax.xlane.f32.xlu0 %v2885
  %v2887 = vpop.xlane.xlu0 %2886
  %v2888 = vsel %vm348, %v2841, -inf
  %2889 = vmax.xlane.f32.xlu0 %v2888
  %v2890 = vpop.xlane.xlu0 %2889
  %v2891 = vsub.f32 %v2715, %v2845
  %v2892 = vsub.f32 %v2718, %v2848
  %v2893 = vsub.f32 %v2721, %v2851
  %v2894 = vsub.f32 %v2724, %v2854
  %v2895 = vsub.f32 %v2727, %v2857
  %v2896 = vsub.f32 %v2730, %v2860
  %v2897 = vsub.f32 %v2733, %v2863
  %v2898 = vsub.f32 %v2736, %v2866
  %v2899 = vsub.f32 %v2820, %v2869
  %v2900 = vsub.f32 %v2823, %v2872
  %v2901 = vsub.f32 %v2826, %v2875
  %v2902 = vsub.f32 %v2829, %v2878
  %v2903 = vsub.f32 %v2832, %v2881
  %v2904 = vsub.f32 %v2835, %v2884
  %v2905 = vsub.f32 %v2838, %v2887
  %v2906 = vsub.f32 %v2841, %v2890
  %v2907 = vmul.f32 %v2891, 1.442695
  %v2908 = vpow.pop %v2907
  %v2909 = vmul.f32 %v2892, 1.442695
  %v2910 = vpow.pop %v2909
  %v2911 = vmul.f32 %v2893, 1.442695
  %v2912 = vpow.pop %v2911
  %v2913 = vmul.f32 %v2894, 1.442695
  %v2914 = vpow.pop %v2913
  %v2915 = vmul.f32 %v2895, 1.442695
  %v2916 = vpow.pop %v2915
  %v2917 = vmul.f32 %v2896, 1.442695
  %v2918 = vpow.pop %v2917
  %v2919 = vmul.f32 %v2897, 1.442695
  %v2920 = vpow.pop %v2919
  %v2921 = vmul.f32 %v2898, 1.442695
  %v2922 = vpow.pop %v2921
  %v2923 = vmul.f32 %v2899, 1.442695
  %v2924 = vpow.pop %v2923
  %v2925 = vmul.f32 %v2900, 1.442695
  %v2926 = vpow.pop %v2925
  %v2927 = vmul.f32 %v2901, 1.442695
  %v2928 = vpow.pop %v2927
  %v2929 = vmul.f32 %v2902, 1.442695
  %v2930 = vpow.pop %v2929
  %v2931 = vmul.f32 %v2903, 1.442695
  %v2932 = vpow.pop %v2931
  %v2933 = vmul.f32 %v2904, 1.442695
  %v2934 = vpow.pop %v2933
  %v2935 = vmul.f32 %v2905, 1.442695
  %v2936 = vpow.pop %v2935
  %v2937 = vmul.f32 %v2906, 1.442695
  %v2938 = vpow.pop %v2937
  %v2939 = vsel %vm348, %v2908, 0.0
  %2940 = vadd.xlane.f32.xlu0 %v2939
  %v2941 = vpop.xlane.xlu0 %2940
  %v2942 = vsel %vm348, %v2910, 0.0
  %2943 = vadd.xlane.f32.xlu0 %v2942
  %v2944 = vpop.xlane.xlu0 %2943
  %v2945 = vsel %vm348, %v2912, 0.0
  %2946 = vadd.xlane.f32.xlu0 %v2945
  %v2947 = vpop.xlane.xlu0 %2946
  %v2948 = vsel %vm348, %v2914, 0.0
  %2949 = vadd.xlane.f32.xlu0 %v2948
  %v2950 = vpop.xlane.xlu0 %2949
  %v2951 = vsel %vm348, %v2916, 0.0
  %2952 = vadd.xlane.f32.xlu0 %v2951
  %v2953 = vpop.xlane.xlu0 %2952
  %v2954 = vsel %vm348, %v2918, 0.0
  %2955 = vadd.xlane.f32.xlu0 %v2954
  %v2956 = vpop.xlane.xlu0 %2955
  %v2957 = vsel %vm348, %v2920, 0.0
  %2958 = vadd.xlane.f32.xlu0 %v2957
  %v2959 = vpop.xlane.xlu0 %2958
  %v2960 = vsel %vm348, %v2922, 0.0
  %2961 = vadd.xlane.f32.xlu0 %v2960
  %v2962 = vpop.xlane.xlu0 %2961
  %v2963 = vsel %vm348, %v2924, 0.0
  %2964 = vadd.xlane.f32.xlu0 %v2963
  %v2965 = vpop.xlane.xlu0 %2964
  %v2966 = vsel %vm348, %v2926, 0.0
  %2967 = vadd.xlane.f32.xlu0 %v2966
  %v2968 = vpop.xlane.xlu0 %2967
  %v2969 = vsel %vm348, %v2928, 0.0
  %2970 = vadd.xlane.f32.xlu0 %v2969
  %v2971 = vpop.xlane.xlu0 %2970
  %v2972 = vsel %vm348, %v2930, 0.0
  %2973 = vadd.xlane.f32.xlu0 %v2972
  %v2974 = vpop.xlane.xlu0 %2973
  %v2975 = vsel %vm348, %v2932, 0.0
  %2976 = vadd.xlane.f32.xlu0 %v2975
  %v2977 = vpop.xlane.xlu0 %2976
  %v2978 = vsel %vm348, %v2934, 0.0
  %2979 = vadd.xlane.f32.xlu0 %v2978
  %v2980 = vpop.xlane.xlu0 %2979
  %v2981 = vsel %vm348, %v2936, 0.0
  %2982 = vadd.xlane.f32.xlu0 %v2981
  %v2983 = vpop.xlane.xlu0 %2982
  %v2984 = vsel %vm348, %v2938, 0.0
  %2985 = vadd.xlane.f32.xlu0 %v2984
  %v2986 = vpop.xlane.xlu0 %2985
  %v2987 = vrcp.pop %v2941
  %v2988 = vmul.f32 %v2941, %v2987
  %v2989 = vsub.f32 1.0, %v2988
  %v2990 = vmul.f32 %v2987, %v2989
  %v2991 = vadd.f32 %v2987, %v2990
  %vm2992 = vweird.f32 %v2941
  %vm2993 = vweird.f32 %v2987
  %vm2994 = vmor %vm2992, %vm2993
  %v2995 = vsel %vm2994, %v2987, %v2991
  %v2996 = vand.u32 2147483647, %v2941
  %vm2997 = vcmp.eq.f32.partialorder %v2996, 8.507059e+37
  %v2998 = vand.u32 %v2941, 2147483648
  %v2999 = vor.u32 1.1754944e-38, %v2998
  %v3000 = vsel %vm2997, %v2999, %v2995
  %v3001 = vrcp.pop %v2944
  %v3002 = vmul.f32 %v2944, %v3001
  %v3003 = vsub.f32 1.0, %v3002
  %v3004 = vmul.f32 %v3001, %v3003
  %v3005 = vadd.f32 %v3001, %v3004
  %vm3006 = vweird.f32 %v2944
  %vm3007 = vweird.f32 %v3001
  %vm3008 = vmor %vm3006, %vm3007
  %v3009 = vsel %vm3008, %v3001, %v3005
  %v3010 = vand.u32 2147483647, %v2944
  %vm3011 = vcmp.eq.f32.partialorder %v3010, 8.507059e+37
  %v3012 = vand.u32 %v2944, 2147483648
  %v3013 = vor.u32 1.1754944e-38, %v3012
  %v3014 = vsel %vm3011, %v3013, %v3009
  %v3015 = vrcp.pop %v2947
  %v3016 = vmul.f32 %v2947, %v3015
  %v3017 = vsub.f32 1.0, %v3016
  %v3018 = vmul.f32 %v3015, %v3017
  %v3019 = vadd.f32 %v3015, %v3018
  %vm3020 = vweird.f32 %v2947
  %vm3021 = vweird.f32 %v3015
  %vm3022 = vmor %vm3020, %vm3021
  %v3023 = vsel %vm3022, %v3015, %v3019
  %v3024 = vand.u32 2147483647, %v2947
  %vm3025 = vcmp.eq.f32.partialorder %v3024, 8.507059e+37
  %v3026 = vand.u32 %v2947, 2147483648
  %v3027 = vor.u32 1.1754944e-38, %v3026
  %v3028 = vsel %vm3025, %v3027, %v3023
  %v3029 = vrcp.pop %v2950
  %v3030 = vmul.f32 %v2950, %v3029
  %v3031 = vsub.f32 1.0, %v3030
  %v3032 = vmul.f32 %v3029, %v3031
  %v3033 = vadd.f32 %v3029, %v3032
  %vm3034 = vweird.f32 %v2950
  %vm3035 = vweird.f32 %v3029
  %vm3036 = vmor %vm3034, %vm3035
  %v3037 = vsel %vm3036, %v3029, %v3033
  %v3038 = vand.u32 2147483647, %v2950
  %vm3039 = vcmp.eq.f32.partialorder %v3038, 8.507059e+37
  %v3040 = vand.u32 %v2950, 2147483648
  %v3041 = vor.u32 1.1754944e-38, %v3040
  %v3042 = vsel %vm3039, %v3041, %v3037
  %v3043 = vrcp.pop %v2953
  %v3044 = vmul.f32 %v2953, %v3043
  %v3045 = vsub.f32 1.0, %v3044
  %v3046 = vmul.f32 %v3043, %v3045
  %v3047 = vadd.f32 %v3043, %v3046
  %vm3048 = vweird.f32 %v2953
  %vm3049 = vweird.f32 %v3043
  %vm3050 = vmor %vm3048, %vm3049
  %v3051 = vsel %vm3050, %v3043, %v3047
  %v3052 = vand.u32 2147483647, %v2953
  %vm3053 = vcmp.eq.f32.partialorder %v3052, 8.507059e+37
  %v3054 = vand.u32 %v2953, 2147483648
  %v3055 = vor.u32 1.1754944e-38, %v3054
  %v3056 = vsel %vm3053, %v3055, %v3051
  %v3057 = vrcp.pop %v2956
  %v3058 = vmul.f32 %v2956, %v3057
  %v3059 = vsub.f32 1.0, %v3058
  %v3060 = vmul.f32 %v3057, %v3059
  %v3061 = vadd.f32 %v3057, %v3060
  %vm3062 = vweird.f32 %v2956
  %vm3063 = vweird.f32 %v3057
  %vm3064 = vmor %vm3062, %vm3063
  %v3065 = vsel %vm3064, %v3057, %v3061
  %v3066 = vand.u32 2147483647, %v2956
  %vm3067 = vcmp.eq.f32.partialorder %v3066, 8.507059e+37
  %v3068 = vand.u32 %v2956, 2147483648
  %v3069 = vor.u32 1.1754944e-38, %v3068
  %v3070 = vsel %vm3067, %v3069, %v3065
  %v3071 = vrcp.pop %v2959
  %v3072 = vmul.f32 %v2959, %v3071
  %v3073 = vsub.f32 1.0, %v3072
  %v3074 = vmul.f32 %v3071, %v3073
  %v3075 = vadd.f32 %v3071, %v3074
  %vm3076 = vweird.f32 %v2959
  %vm3077 = vweird.f32 %v3071
  %vm3078 = vmor %vm3076, %vm3077
  %v3079 = vsel %vm3078, %v3071, %v3075
  %v3080 = vand.u32 2147483647, %v2959
  %vm3081 = vcmp.eq.f32.partialorder %v3080, 8.507059e+37
  %v3082 = vand.u32 %v2959, 2147483648
  %v3083 = vor.u32 1.1754944e-38, %v3082
  %v3084 = vsel %vm3081, %v3083, %v3079
  %v3085 = vrcp.pop %v2962
  %v3086 = vmul.f32 %v2962, %v3085
  %v3087 = vsub.f32 1.0, %v3086
  %v3088 = vmul.f32 %v3085, %v3087
  %v3089 = vadd.f32 %v3085, %v3088
  %vm3090 = vweird.f32 %v2962
  %vm3091 = vweird.f32 %v3085
  %vm3092 = vmor %vm3090, %vm3091
  %v3093 = vsel %vm3092, %v3085, %v3089
  %v3094 = vand.u32 2147483647, %v2962
  %vm3095 = vcmp.eq.f32.partialorder %v3094, 8.507059e+37
  %v3096 = vand.u32 %v2962, 2147483648
  %v3097 = vor.u32 1.1754944e-38, %v3096
  %v3098 = vsel %vm3095, %v3097, %v3093
  %v3099 = vrcp.pop %v2965
  %v3100 = vmul.f32 %v2965, %v3099
  %v3101 = vsub.f32 1.0, %v3100
  %v3102 = vmul.f32 %v3099, %v3101
  %v3103 = vadd.f32 %v3099, %v3102
  %vm3104 = vweird.f32 %v2965
  %vm3105 = vweird.f32 %v3099
  %vm3106 = vmor %vm3104, %vm3105
  %v3107 = vsel %vm3106, %v3099, %v3103
  %v3108 = vand.u32 2147483647, %v2965
  %vm3109 = vcmp.eq.f32.partialorder %v3108, 8.507059e+37
  %v3110 = vand.u32 %v2965, 2147483648
  %v3111 = vor.u32 1.1754944e-38, %v3110
  %v3112 = vsel %vm3109, %v3111, %v3107
  %v3113 = vrcp.pop %v2968
  %v3114 = vmul.f32 %v2968, %v3113
  %v3115 = vsub.f32 1.0, %v3114
  %v3116 = vmul.f32 %v3113, %v3115
  %v3117 = vadd.f32 %v3113, %v3116
  %vm3118 = vweird.f32 %v2968
  %vm3119 = vweird.f32 %v3113
  %vm3120 = vmor %vm3118, %vm3119
  %v3121 = vsel %vm3120, %v3113, %v3117
  %v3122 = vand.u32 2147483647, %v2968
  %vm3123 = vcmp.eq.f32.partialorder %v3122, 8.507059e+37
  %v3124 = vand.u32 %v2968, 2147483648
  %v3125 = vor.u32 1.1754944e-38, %v3124
  %v3126 = vsel %vm3123, %v3125, %v3121
  %v3127 = vrcp.pop %v2971
  %v3128 = vmul.f32 %v2971, %v3127
  %v3129 = vsub.f32 1.0, %v3128
  %v3130 = vmul.f32 %v3127, %v3129
  %v3131 = vadd.f32 %v3127, %v3130
  %vm3132 = vweird.f32 %v2971
  %vm3133 = vweird.f32 %v3127
  %vm3134 = vmor %vm3132, %vm3133
  %v3135 = vsel %vm3134, %v3127, %v3131
  %v3136 = vand.u32 2147483647, %v2971
  %vm3137 = vcmp.eq.f32.partialorder %v3136, 8.507059e+37
  %v3138 = vand.u32 %v2971, 2147483648
  %v3139 = vor.u32 1.1754944e-38, %v3138
  %v3140 = vsel %vm3137, %v3139, %v3135
  %v3141 = vrcp.pop %v2974
  %v3142 = vmul.f32 %v2974, %v3141
  %v3143 = vsub.f32 1.0, %v3142
  %v3144 = vmul.f32 %v3141, %v3143
  %v3145 = vadd.f32 %v3141, %v3144
  %vm3146 = vweird.f32 %v2974
  %vm3147 = vweird.f32 %v3141
  %vm3148 = vmor %vm3146, %vm3147
  %v3149 = vsel %vm3148, %v3141, %v3145
  %v3150 = vand.u32 2147483647, %v2974
  %vm3151 = vcmp.eq.f32.partialorder %v3150, 8.507059e+37
  %v3152 = vand.u32 %v2974, 2147483648
  %v3153 = vor.u32 1.1754944e-38, %v3152
  %v3154 = vsel %vm3151, %v3153, %v3149
  %v3155 = vrcp.pop %v2977
  %v3156 = vmul.f32 %v2977, %v3155
  %v3157 = vsub.f32 1.0, %v3156
  %v3158 = vmul.f32 %v3155, %v3157
  %v3159 = vadd.f32 %v3155, %v3158
  %vm3160 = vweird.f32 %v2977
  %vm3161 = vweird.f32 %v3155
  %vm3162 = vmor %vm3160, %vm3161
  %v3163 = vsel %vm3162, %v3155, %v3159
  %v3164 = vand.u32 2147483647, %v2977
  %vm3165 = vcmp.eq.f32.partialorder %v3164, 8.507059e+37
  %v3166 = vand.u32 %v2977, 2147483648
  %v3167 = vor.u32 1.1754944e-38, %v3166
  %v3168 = vsel %vm3165, %v3167, %v3163
  %v3169 = vrcp.pop %v2980
  %v3170 = vmul.f32 %v2980, %v3169
  %v3171 = vsub.f32 1.0, %v3170
  %v3172 = vmul.f32 %v3169, %v3171
  %v3173 = vadd.f32 %v3169, %v3172
  %vm3174 = vweird.f32 %v2980
  %vm3175 = vweird.f32 %v3169
  %vm3176 = vmor %vm3174, %vm3175
  %v3177 = vsel %vm3176, %v3169, %v3173
  %v3178 = vand.u32 2147483647, %v2980
  %vm3179 = vcmp.eq.f32.partialorder %v3178, 8.507059e+37
  %v3180 = vand.u32 %v2980, 2147483648
  %v3181 = vor.u32 1.1754944e-38, %v3180
  %v3182 = vsel %vm3179, %v3181, %v3177
  %v3183 = vrcp.pop %v2983
  %v3184 = vmul.f32 %v2983, %v3183
  %v3185 = vsub.f32 1.0, %v3184
  %v3186 = vmul.f32 %v3183, %v3185
  %v3187 = vadd.f32 %v3183, %v3186
  %vm3188 = vweird.f32 %v2983
  %vm3189 = vweird.f32 %v3183
  %vm3190 = vmor %vm3188, %vm3189
  %v3191 = vsel %vm3190, %v3183, %v3187
  %v3192 = vand.u32 2147483647, %v2983
  %vm3193 = vcmp.eq.f32.partialorder %v3192, 8.507059e+37
  %v3194 = vand.u32 %v2983, 2147483648
  %v3195 = vor.u32 1.1754944e-38, %v3194
  %v3196 = vsel %vm3193, %v3195, %v3191
  %v3197 = vrcp.pop %v2986
  %v3198 = vmul.f32 %v2986, %v3197
  %v3199 = vsub.f32 1.0, %v3198
  %v3200 = vmul.f32 %v3197, %v3199
  %v3201 = vadd.f32 %v3197, %v3200
  %vm3202 = vweird.f32 %v2986
  %vm3203 = vweird.f32 %v3197
  %vm3204 = vmor %vm3202, %vm3203
  %v3205 = vsel %vm3204, %v3197, %v3201
  %v3206 = vand.u32 2147483647, %v2986
  %vm3207 = vcmp.eq.f32.partialorder %v3206, 8.507059e+37
  %v3208 = vand.u32 %v2986, 2147483648
  %v3209 = vor.u32 1.1754944e-38, %v3208
  %v3210 = vsel %vm3207, %v3209, %v3205
  %v3211 = vmul.f32 %v2908, %v3000
  %v3212 = vmul.f32 %v2910, %v3014
  %v3213 = vmul.f32 %v2912, %v3028
  %v3214 = vmul.f32 %v2914, %v3042
  %v3215 = vmul.f32 %v2916, %v3056
  %v3216 = vmul.f32 %v2918, %v3070
  %v3217 = vmul.f32 %v2920, %v3084
  %v3218 = vmul.f32 %v2922, %v3098
  %v3219 = vmul.f32 %v2924, %v3112
  %v3220 = vmul.f32 %v2926, %v3126
  %v3221 = vmul.f32 %v2928, %v3140
  %v3222 = vmul.f32 %v2930, %v3154
  %v3223 = vmul.f32 %v2932, %v3168
  %v3224 = vmul.f32 %v2934, %v3182
  %v3225 = vmul.f32 %v2936, %v3196
  %v3226 = vmul.f32 %v2938, %v3210
  %3227 = vrot.lane.b32.xlu0 %v106, 40
  %v3228 = vpop.permute.xlu0 %3227
  %3229 = vrot.lane.b32.xlu0 %v109, 40
  %v3230 = vpop.permute.xlu0 %3229
  %3231 = vrot.lane.b32.xlu0 %v112, 40
  %v3232 = vpop.permute.xlu0 %3231
  %3233 = vrot.lane.b32.xlu0 %v115, 40
  %v3234 = vpop.permute.xlu0 %3233
  %3235 = vrot.lane.b32.xlu0 %v118, 40
  %v3236 = vpop.permute.xlu0 %3235
  %3237 = vrot.lane.b32.xlu0 %v121, 40
  %v3238 = vpop.permute.xlu0 %3237
  %3239 = vrot.lane.b32.xlu0 %v124, 40
  %v3240 = vpop.permute.xlu0 %3239
  %3241 = vrot.lane.b32.xlu0 %v127, 40
  %v3242 = vpop.permute.xlu0 %3241
  %v3252 = vsel %vm348, %v3211, 0
  %v3255 = vsel %vm348, %v3212, 0
  %v3258 = vsel %vm348, %v3213, 0
  %v3261 = vsel %vm348, %v3214, 0
  %v3264 = vsel %vm348, %v3215, 0
  %v3267 = vsel %vm348, %v3216, 0
  %v3270 = vsel %vm348, %v3217, 0
  %v3273 = vsel %vm348, %v3218, 0
  %3275 = vmatpush.msra.mxu0 0.0
  %3276 = vmatpush.msra.mxu0 0.0
  %3277 = vmatpush.msra.mxu0 0.0
  %3278 = vmatpush.msra.mxu0 0.0
  %3279 = vmatpush.msra.mxu0 0.0
  %3280 = vmatpush.msra.mxu0 0.0
  %3281 = vmatpush.msra.mxu0 0.0
  %3282 = vmatpush.msra.mxu0 0.0
  %3283 = vmatpush.msra.mxu0 %v3242
  %3284 = vmatpush.msra.mxu0 %v3240
  %3285 = vmatpush.msra.mxu0 %v3238
  %3286 = vmatpush.msra.mxu0 %v3236
  %3287 = vmatpush.msra.mxu0 %v3234
  %3288 = vmatpush.msra.mxu0 %v3232
  %3289 = vmatpush.msra.mxu0 %v3230
  %3290 = vmatpush.msra.mxu0 %v3228
  %3291 = vmatmul.f32.gmra.mxu0 %v3252
  %v3292 = vpop.f32.mrf.mxu0
  %v3293 = vadd.f32 0.0, %v3292
  %3294 = vmatmul.f32.gmra.mxu0 %v3255
  %v3295 = vpop.f32.mrf.mxu0
  %v3296 = vadd.f32 0.0, %v3295
  %3297 = vmatmul.f32.gmra.mxu0 %v3258
  %v3298 = vpop.f32.mrf.mxu0
  %v3299 = vadd.f32 0.0, %v3298
  %3300 = vmatmul.f32.gmra.mxu0 %v3261
  %v3301 = vpop.f32.mrf.mxu0
  %v3302 = vadd.f32 0.0, %v3301
  %3303 = vmatmul.f32.gmra.mxu0 %v3264
  %v3304 = vpop.f32.mrf.mxu0
  %v3305 = vadd.f32 0.0, %v3304
  %3306 = vmatmul.f32.gmra.mxu0 %v3267
  %v3307 = vpop.f32.mrf.mxu0
  %v3308 = vadd.f32 0.0, %v3307
  %3309 = vmatmul.f32.gmra.mxu0 %v3270
  %v3310 = vpop.f32.mrf.mxu0
  %v3311 = vadd.f32 0.0, %v3310
  %3312 = vmatmul.f32.gmra.mxu0 %v3273
  %v3313 = vpop.f32.mrf.mxu0
  %v3314 = vadd.f32 0.0, %v3313
  %3315 = vdwg.mxu0
  %3316 = vrot.lane.b32.xlu0 %v130, 40
  %v3317 = vpop.permute.xlu0 %3316
  %3318 = vrot.lane.b32.xlu0 %v133, 40
  %v3319 = vpop.permute.xlu0 %3318
  %3320 = vrot.lane.b32.xlu0 %v136, 40
  %v3321 = vpop.permute.xlu0 %3320
  %3322 = vrot.lane.b32.xlu0 %v139, 40
  %v3323 = vpop.permute.xlu0 %3322
  %3324 = vrot.lane.b32.xlu0 %v142, 40
  %v3325 = vpop.permute.xlu0 %3324
  %3326 = vrot.lane.b32.xlu0 %v145, 40
  %v3327 = vpop.permute.xlu0 %3326
  %3328 = vrot.lane.b32.xlu0 %v148, 40
  %v3329 = vpop.permute.xlu0 %3328
  %3330 = vrot.lane.b32.xlu0 %v151, 40
  %v3331 = vpop.permute.xlu0 %3330
  %v3341 = vsel %vm348, %v3219, 0
  %v3344 = vsel %vm348, %v3220, 0
  %v3347 = vsel %vm348, %v3221, 0
  %v3350 = vsel %vm348, %v3222, 0
  %v3353 = vsel %vm348, %v3223, 0
  %v3356 = vsel %vm348, %v3224, 0
  %v3359 = vsel %vm348, %v3225, 0
  %v3362 = vsel %vm348, %v3226, 0
  %3364 = vmatpush.msra.mxu0 0.0
  %3365 = vmatpush.msra.mxu0 0.0
  %3366 = vmatpush.msra.mxu0 0.0
  %3367 = vmatpush.msra.mxu0 0.0
  %3368 = vmatpush.msra.mxu0 0.0
  %3369 = vmatpush.msra.mxu0 0.0
  %3370 = vmatpush.msra.mxu0 0.0
  %3371 = vmatpush.msra.mxu0 0.0
  %3372 = vmatpush.msra.mxu0 %v3331
  %3373 = vmatpush.msra.mxu0 %v3329
  %3374 = vmatpush.msra.mxu0 %v3327
  %3375 = vmatpush.msra.mxu0 %v3325
  %3376 = vmatpush.msra.mxu0 %v3323
  %3377 = vmatpush.msra.mxu0 %v3321
  %3378 = vmatpush.msra.mxu0 %v3319
  %3379 = vmatpush.msra.mxu0 %v3317
  %3380 = vmatmul.f32.gmra.mxu0 %v3341
  %v3381 = vpop.f32.mrf.mxu0
  %v3382 = vadd.f32 0.0, %v3381
  %3383 = vmatmul.f32.gmra.mxu0 %v3344
  %v3384 = vpop.f32.mrf.mxu0
  %v3385 = vadd.f32 0.0, %v3384
  %3386 = vmatmul.f32.gmra.mxu0 %v3347
  %v3387 = vpop.f32.mrf.mxu0
  %v3388 = vadd.f32 0.0, %v3387
  %3389 = vmatmul.f32.gmra.mxu0 %v3350
  %v3390 = vpop.f32.mrf.mxu0
  %v3391 = vadd.f32 0.0, %v3390
  %3392 = vmatmul.f32.gmra.mxu0 %v3353
  %v3393 = vpop.f32.mrf.mxu0
  %v3394 = vadd.f32 0.0, %v3393
  %3395 = vmatmul.f32.gmra.mxu0 %v3356
  %v3396 = vpop.f32.mrf.mxu0
  %v3397 = vadd.f32 0.0, %v3396
  %3398 = vmatmul.f32.gmra.mxu0 %v3359
  %v3399 = vpop.f32.mrf.mxu0
  %v3400 = vadd.f32 0.0, %v3399
  %3401 = vmatmul.f32.gmra.mxu0 %v3362
  %v3402 = vpop.f32.mrf.mxu0
  %v3403 = vadd.f32 0.0, %v3402
  %3404 = vdwg.mxu0
  %3421 = vrot.lane.b32.xlu0 %v3293, 24
  %v3422 = vpop.permute.xlu0 %3421
  %3423 = vrot.lane.b32.xlu0 %v3296, 24
  %v3424 = vpop.permute.xlu0 %3423
  %3425 = vrot.lane.b32.xlu0 %v3299, 24
  %v3426 = vpop.permute.xlu0 %3425
  %3427 = vrot.lane.b32.xlu0 %v3302, 24
  %v3428 = vpop.permute.xlu0 %3427
  %3429 = vrot.lane.b32.xlu0 %v3305, 24
  %v3430 = vpop.permute.xlu0 %3429
  %3431 = vrot.lane.b32.xlu0 %v3308, 24
  %v3432 = vpop.permute.xlu0 %3431
  %3433 = vrot.lane.b32.xlu0 %v3311, 24
  %v3434 = vpop.permute.xlu0 %3433
  %3435 = vrot.lane.b32.xlu0 %v3314, 24
  %v3436 = vpop.permute.xlu0 %3435
  %3437 = vrot.lane.b32.xlu0 %v3382, 24
  %v3438 = vpop.permute.xlu0 %3437
  %3439 = vrot.lane.b32.xlu0 %v3385, 24
  %v3440 = vpop.permute.xlu0 %3439
  %3441 = vrot.lane.b32.xlu0 %v3388, 24
  %v3442 = vpop.permute.xlu0 %3441
  %3443 = vrot.lane.b32.xlu0 %v3391, 24
  %v3444 = vpop.permute.xlu0 %3443
  %3445 = vrot.lane.b32.xlu0 %v3394, 24
  %v3446 = vpop.permute.xlu0 %3445
  %3447 = vrot.lane.b32.xlu0 %v3397, 24
  %v3448 = vpop.permute.xlu0 %3447
  %3449 = vrot.lane.b32.xlu0 %v3400, 24
  %v3450 = vpop.permute.xlu0 %3449
  %3451 = vrot.lane.b32.xlu0 %v3403, 24
  %v3452 = vpop.permute.xlu0 %3451
  %vm3469 = vcmask 261312
  %3470 = vst.msk [vmem:[#allocation2] sm:$0xff] %vm3469, %v3422
  %3471 = vst.msk [vmem:[#allocation2 + $0x8] sm:$0xff] %vm3469, %v3424
  %3472 = vst.msk [vmem:[#allocation2 + $0x10] sm:$0xff] %vm3469, %v3426
  %3473 = vst.msk [vmem:[#allocation2 + $0x18] sm:$0xff] %vm3469, %v3428
  %3474 = vst.msk [vmem:[#allocation2 + $0x20] sm:$0xff] %vm3469, %v3430
  %3475 = vst.msk [vmem:[#allocation2 + $0x28] sm:$0xff] %vm3469, %v3432
  %3476 = vst.msk [vmem:[#allocation2 + $0x30] sm:$0xff] %vm3469, %v3434
  %3477 = vst.msk [vmem:[#allocation2 + $0x38] sm:$0xff] %vm3469, %v3436
  %3478 = vst.msk [vmem:[#allocation2 + $0x40] sm:$0xff] %vm3469, %v3438
  %3479 = vst.msk [vmem:[#allocation2 + $0x48] sm:$0xff] %vm3469, %v3440
  %3480 = vst.msk [vmem:[#allocation2 + $0x50] sm:$0xff] %vm3469, %v3442
  %3481 = vst.msk [vmem:[#allocation2 + $0x58] sm:$0xff] %vm3469, %v3444
  %3482 = vst.msk [vmem:[#allocation2 + $0x60] sm:$0xff] %vm3469, %v3446
  %3483 = vst.msk [vmem:[#allocation2 + $0x68] sm:$0xff] %vm3469, %v3448
  %3484 = vst.msk [vmem:[#allocation2 + $0x70] sm:$0xff] %vm3469, %v3450
  %3485 = vst.msk [vmem:[#allocation2 + $0x78] sm:$0xff] %vm3469, %v3452
  %v3486 = vld [vmem:[#allocation2] sm:$0xff]
  %v3487 = vld [vmem:[#allocation2 + $0x8] sm:$0xff]
  %v3488 = vld [vmem:[#allocation2 + $0x10] sm:$0xff]
  %v3489 = vld [vmem:[#allocation2 + $0x18] sm:$0xff]
  %v3490 = vld [vmem:[#allocation2 + $0x20] sm:$0xff]
  %v3491 = vld [vmem:[#allocation2 + $0x28] sm:$0xff]
  %v3492 = vld [vmem:[#allocation2 + $0x30] sm:$0xff]
  %v3493 = vld [vmem:[#allocation2 + $0x38] sm:$0xff]
  %v3494 = vld [vmem:[#allocation2 + $0x40] sm:$0xff]
  %v3495 = vld [vmem:[#allocation2 + $0x48] sm:$0xff]
  %v3496 = vld [vmem:[#allocation2 + $0x50] sm:$0xff]
  %v3497 = vld [vmem:[#allocation2 + $0x58] sm:$0xff]
  %v3498 = vld [vmem:[#allocation2 + $0x60] sm:$0xff]
  %v3499 = vld [vmem:[#allocation2 + $0x68] sm:$0xff]
  %v3500 = vld [vmem:[#allocation2 + $0x70] sm:$0xff]
  %v3501 = vld [vmem:[#allocation2 + $0x78] sm:$0xff]
  %v3502 = vld [vmem:[%s2] sm:$0xff]
  %v3503 = vld [vmem:[%s2 + $0x8] sm:$0xff]
  %v3504 = vld [vmem:[%s2 + $0x10] sm:$0xff]
  %v3505 = vld [vmem:[%s2 + $0x18] sm:$0xff]
  %v3506 = vperm.slane %v33, 1
  %v3508 = vsel %vm39, %v3486, 0
  %v3511 = vsel %vm39, %v3487, 0
  %v3514 = vsel %vm39, %v3488, 0
  %v3517 = vsel %vm39, %v3489, 0
  %v3520 = vsel %vm39, %v3490, 0
  %v3523 = vsel %vm39, %v3491, 0
  %v3526 = vsel %vm39, %v3492, 0
  %v3529 = vsel %vm39, %v3493, 0
  %v3532 = vsel %vm39, %v3494, 0
  %v3535 = vsel %vm39, %v3495, 0
  %v3538 = vsel %vm39, %v3496, 0
  %v3541 = vsel %vm39, %v3497, 0
  %v3544 = vsel %vm39, %v3498, 0
  %v3547 = vsel %vm39, %v3499, 0
  %v3550 = vsel %vm39, %v3500, 0
  %v3553 = vsel %vm39, %v3501, 0
  %3555 = vmatpush.msra.mxu0 0.0
  %3556 = vmatpush.msra.mxu0 0.0
  %3557 = vmatpush.msra.mxu0 0.0
  %3558 = vmatpush.msra.mxu0 0.0
  %3559 = vmatpush.msra.mxu0 0.0
  %3560 = vmatpush.msra.mxu0 0.0
  %3561 = vmatpush.msra.mxu0 0.0
  %3562 = vmatpush.msra.mxu0 0.0
  %3563 = vmatpush.msra.mxu0 0.0
  %3564 = vmatpush.msra.mxu0 0.0
  %3565 = vmatpush.msra.mxu0 0.0
  %3566 = vmatpush.msra.mxu0 0.0
  %3567 = vmatpush.msra.mxu0 %v3505
  %3568 = vmatpush.msra.mxu0 %v3504
  %3569 = vmatpush.msra.mxu0 %v3503
  %3570 = vmatpush.msra.mxu0 %v3502
  %3571 = vmatmul.f32.gmra.mxu0 %v3508
  %v3572 = vpop.f32.mrf.mxu0
  %v3573 = vadd.f32 %v3506, %v3572
  %3574 = vmatmul.f32.gmra.mxu0 %v3511
  %v3575 = vpop.f32.mrf.mxu0
  %v3576 = vadd.f32 %v3506, %v3575
  %3577 = vmatmul.f32.gmra.mxu0 %v3514
  %v3578 = vpop.f32.mrf.mxu0
  %v3579 = vadd.f32 %v3506, %v3578
  %3580 = vmatmul.f32.gmra.mxu0 %v3517
  %v3581 = vpop.f32.mrf.mxu0
  %v3582 = vadd.f32 %v3506, %v3581
  %3583 = vmatmul.f32.gmra.mxu0 %v3520
  %v3584 = vpop.f32.mrf.mxu0
  %v3585 = vadd.f32 %v3506, %v3584
  %3586 = vmatmul.f32.gmra.mxu0 %v3523
  %v3587 = vpop.f32.mrf.mxu0
  %v3588 = vadd.f32 %v3506, %v3587
  %3589 = vmatmul.f32.gmra.mxu0 %v3526
  %v3590 = vpop.f32.mrf.mxu0
  %v3591 = vadd.f32 %v3506, %v3590
  %3592 = vmatmul.f32.gmra.mxu0 %v3529
  %v3593 = vpop.f32.mrf.mxu0
  %v3594 = vadd.f32 %v3506, %v3593
  %3595 = vmatmul.f32.gmra.mxu0 %v3532
  %v3596 = vpop.f32.mrf.mxu0
  %v3597 = vadd.f32 %v3506, %v3596
  %3598 = vmatmul.f32.gmra.mxu0 %v3535
  %v3599 = vpop.f32.mrf.mxu0
  %v3600 = vadd.f32 %v3506, %v3599
  %3601 = vmatmul.f32.gmra.mxu0 %v3538
  %v3602 = vpop.f32.mrf.mxu0
  %v3603 = vadd.f32 %v3506, %v3602
  %3604 = vmatmul.f32.gmra.mxu0 %v3541
  %v3605 = vpop.f32.mrf.mxu0
  %v3606 = vadd.f32 %v3506, %v3605
  %3607 = vmatmul.f32.gmra.mxu0 %v3544
  %v3608 = vpop.f32.mrf.mxu0
  %v3609 = vadd.f32 %v3506, %v3608
  %3610 = vmatmul.f32.gmra.mxu0 %v3547
  %v3611 = vpop.f32.mrf.mxu0
  %v3612 = vadd.f32 %v3506, %v3611
  %3613 = vmatmul.f32.gmra.mxu0 %v3550
  %v3614 = vpop.f32.mrf.mxu0
  %v3615 = vadd.f32 %v3506, %v3614
  %3616 = vmatmul.f32.gmra.mxu0 %v3553
  %v3617 = vpop.f32.mrf.mxu0
  %v3618 = vadd.f32 %v3506, %v3617
  %3619 = vdwg.mxu0
  %v3620 = vadd.f32 %v3573, %v17
  %v3621 = vadd.f32 %v3576, %v18
  %v3622 = vadd.f32 %v3579, %v19
  %v3623 = vadd.f32 %v3582, %v20
  %v3624 = vadd.f32 %v3585, %v21
  %v3625 = vadd.f32 %v3588, %v22
  %v3626 = vadd.f32 %v3591, %v23
  %v3627 = vadd.f32 %v3594, %v24
  %v3628 = vadd.f32 %v3597, %v25
  %v3629 = vadd.f32 %v3600, %v26
  %v3630 = vadd.f32 %v3603, %v27
  %v3631 = vadd.f32 %v3606, %v28
  %v3632 = vadd.f32 %v3609, %v29
  %v3633 = vadd.f32 %v3612, %v30
  %v3634 = vadd.f32 %v3615, %v31
  %v3635 = vadd.f32 %v3618, %v32
  %v3636 = vsel %vm39, %v3620, 0.0
  %3637 = vadd.xlane.f32.xlu0 %v3636
  %v3638 = vpop.xlane.xlu0 %3637
  %v3639 = vsel %vm39, %v3621, 0.0
  %3640 = vadd.xlane.f32.xlu0 %v3639
  %v3641 = vpop.xlane.xlu0 %3640
  %v3642 = vsel %vm39, %v3622, 0.0
  %3643 = vadd.xlane.f32.xlu0 %v3642
  %v3644 = vpop.xlane.xlu0 %3643
  %v3645 = vsel %vm39, %v3623, 0.0
  %3646 = vadd.xlane.f32.xlu0 %v3645
  %v3647 = vpop.xlane.xlu0 %3646
  %v3648 = vsel %vm39, %v3624, 0.0
  %3649 = vadd.xlane.f32.xlu0 %v3648
  %v3650 = vpop.xlane.xlu0 %3649
  %v3651 = vsel %vm39, %v3625, 0.0
  %3652 = vadd.xlane.f32.xlu0 %v3651
  %v3653 = vpop.xlane.xlu0 %3652
  %v3654 = vsel %vm39, %v3626, 0.0
  %3655 = vadd.xlane.f32.xlu0 %v3654
  %v3656 = vpop.xlane.xlu0 %3655
  %v3657 = vsel %vm39, %v3627, 0.0
  %3658 = vadd.xlane.f32.xlu0 %v3657
  %v3659 = vpop.xlane.xlu0 %3658
  %v3660 = vsel %vm39, %v3628, 0.0
  %3661 = vadd.xlane.f32.xlu0 %v3660
  %v3662 = vpop.xlane.xlu0 %3661
  %v3663 = vsel %vm39, %v3629, 0.0
  %3664 = vadd.xlane.f32.xlu0 %v3663
  %v3665 = vpop.xlane.xlu0 %3664
  %v3666 = vsel %vm39, %v3630, 0.0
  %3667 = vadd.xlane.f32.xlu0 %v3666
  %v3668 = vpop.xlane.xlu0 %3667
  %v3669 = vsel %vm39, %v3631, 0.0
  %3670 = vadd.xlane.f32.xlu0 %v3669
  %v3671 = vpop.xlane.xlu0 %3670
  %v3672 = vsel %vm39, %v3632, 0.0
  %3673 = vadd.xlane.f32.xlu0 %v3672
  %v3674 = vpop.xlane.xlu0 %3673
  %v3675 = vsel %vm39, %v3633, 0.0
  %3676 = vadd.xlane.f32.xlu0 %v3675
  %v3677 = vpop.xlane.xlu0 %3676
  %v3678 = vsel %vm39, %v3634, 0.0
  %3679 = vadd.xlane.f32.xlu0 %v3678
  %v3680 = vpop.xlane.xlu0 %3679
  %v3681 = vsel %vm39, %v3635, 0.0
  %3682 = vadd.xlane.f32.xlu0 %v3681
  %v3683 = vpop.xlane.xlu0 %3682
  %v3684 = vrcp.pop 32.0
  %v3685 = vmul.f32 32.0, %v3684
  %v3686 = vsub.f32 1.0, %v3685
  %v3687 = vmul.f32 %v3684, %v3686
  %v3688 = vadd.f32 %v3684, %v3687
  %vm3689 = vweird.f32 %v3684
  %v3690 = vsel %vm3689, %v3684, %v3688
  %v3691 = vmul.f32 %v3638, %v3690
  %v3692 = vmul.f32 %v3641, %v3690
  %v3693 = vmul.f32 %v3644, %v3690
  %v3694 = vmul.f32 %v3647, %v3690
  %v3695 = vmul.f32 %v3650, %v3690
  %v3696 = vmul.f32 %v3653, %v3690
  %v3697 = vmul.f32 %v3656, %v3690
  %v3698 = vmul.f32 %v3659, %v3690
  %v3699 = vmul.f32 %v3662, %v3690
  %v3700 = vmul.f32 %v3665, %v3690
  %v3701 = vmul.f32 %v3668, %v3690
  %v3702 = vmul.f32 %v3671, %v3690
  %v3703 = vmul.f32 %v3674, %v3690
  %v3704 = vmul.f32 %v3677, %v3690
  %v3705 = vmul.f32 %v3680, %v3690
  %v3706 = vmul.f32 %v3683, %v3690
  %v3707 = vsub.f32 %v3620, %v3691
  %v3708 = vsub.f32 %v3621, %v3692
  %v3709 = vsub.f32 %v3622, %v3693
  %v3710 = vsub.f32 %v3623, %v3694
  %v3711 = vsub.f32 %v3624, %v3695
  %v3712 = vsub.f32 %v3625, %v3696
  %v3713 = vsub.f32 %v3626, %v3697
  %v3714 = vsub.f32 %v3627, %v3698
  %v3715 = vsub.f32 %v3628, %v3699
  %v3716 = vsub.f32 %v3629, %v3700
  %v3717 = vsub.f32 %v3630, %v3701
  %v3718 = vsub.f32 %v3631, %v3702
  %v3719 = vsub.f32 %v3632, %v3703
  %v3720 = vsub.f32 %v3633, %v3704
  %v3721 = vsub.f32 %v3634, %v3705
  %v3722 = vsub.f32 %v3635, %v3706
  %v3723 = vmul.f32 %v3707, %v3707
  %v3724 = vmul.f32 %v3708, %v3708
  %v3725 = vmul.f32 %v3709, %v3709
  %v3726 = vmul.f32 %v3710, %v3710
  %v3727 = vmul.f32 %v3711, %v3711
  %v3728 = vmul.f32 %v3712, %v3712
  %v3729 = vmul.f32 %v3713, %v3713
  %v3730 = vmul.f32 %v3714, %v3714
  %v3731 = vmul.f32 %v3715, %v3715
  %v3732 = vmul.f32 %v3716, %v3716
  %v3733 = vmul.f32 %v3717, %v3717
  %v3734 = vmul.f32 %v3718, %v3718
  %v3735 = vmul.f32 %v3719, %v3719
  %v3736 = vmul.f32 %v3720, %v3720
  %v3737 = vmul.f32 %v3721, %v3721
  %v3738 = vmul.f32 %v3722, %v3722
  %v3739 = vsel %vm39, %v3723, 0.0
  %3740 = vadd.xlane.f32.xlu0 %v3739
  %v3741 = vpop.xlane.xlu0 %3740
  %v3742 = vsel %vm39, %v3724, 0.0
  %3743 = vadd.xlane.f32.xlu0 %v3742
  %v3744 = vpop.xlane.xlu0 %3743
  %v3745 = vsel %vm39, %v3725, 0.0
  %3746 = vadd.xlane.f32.xlu0 %v3745
  %v3747 = vpop.xlane.xlu0 %3746
  %v3748 = vsel %vm39, %v3726, 0.0
  %3749 = vadd.xlane.f32.xlu0 %v3748
  %v3750 = vpop.xlane.xlu0 %3749
  %v3751 = vsel %vm39, %v3727, 0.0
  %3752 = vadd.xlane.f32.xlu0 %v3751
  %v3753 = vpop.xlane.xlu0 %3752
  %v3754 = vsel %vm39, %v3728, 0.0
  %3755 = vadd.xlane.f32.xlu0 %v3754
  %v3756 = vpop.xlane.xlu0 %3755
  %v3757 = vsel %vm39, %v3729, 0.0
  %3758 = vadd.xlane.f32.xlu0 %v3757
  %v3759 = vpop.xlane.xlu0 %3758
  %v3760 = vsel %vm39, %v3730, 0.0
  %3761 = vadd.xlane.f32.xlu0 %v3760
  %v3762 = vpop.xlane.xlu0 %3761
  %v3763 = vsel %vm39, %v3731, 0.0
  %3764 = vadd.xlane.f32.xlu0 %v3763
  %v3765 = vpop.xlane.xlu0 %3764
  %v3766 = vsel %vm39, %v3732, 0.0
  %3767 = vadd.xlane.f32.xlu0 %v3766
  %v3768 = vpop.xlane.xlu0 %3767
  %v3769 = vsel %vm39, %v3733, 0.0
  %3770 = vadd.xlane.f32.xlu0 %v3769
  %v3771 = vpop.xlane.xlu0 %3770
  %v3772 = vsel %vm39, %v3734, 0.0
  %3773 = vadd.xlane.f32.xlu0 %v3772
  %v3774 = vpop.xlane.xlu0 %3773
  %v3775 = vsel %vm39, %v3735, 0.0
  %3776 = vadd.xlane.f32.xlu0 %v3775
  %v3777 = vpop.xlane.xlu0 %3776
  %v3778 = vsel %vm39, %v3736, 0.0
  %3779 = vadd.xlane.f32.xlu0 %v3778
  %v3780 = vpop.xlane.xlu0 %3779
  %v3781 = vsel %vm39, %v3737, 0.0
  %3782 = vadd.xlane.f32.xlu0 %v3781
  %v3783 = vpop.xlane.xlu0 %3782
  %v3784 = vsel %vm39, %v3738, 0.0
  %3785 = vadd.xlane.f32.xlu0 %v3784
  %v3786 = vpop.xlane.xlu0 %3785
  %v3787 = vmul.f32 %v3741, %v3690
  %v3788 = vmul.f32 %v3744, %v3690
  %v3789 = vmul.f32 %v3747, %v3690
  %v3790 = vmul.f32 %v3750, %v3690
  %v3791 = vmul.f32 %v3753, %v3690
  %v3792 = vmul.f32 %v3756, %v3690
  %v3793 = vmul.f32 %v3759, %v3690
  %v3794 = vmul.f32 %v3762, %v3690
  %v3795 = vmul.f32 %v3765, %v3690
  %v3796 = vmul.f32 %v3768, %v3690
  %v3797 = vmul.f32 %v3771, %v3690
  %v3798 = vmul.f32 %v3774, %v3690
  %v3799 = vmul.f32 %v3777, %v3690
  %v3800 = vmul.f32 %v3780, %v3690
  %v3801 = vmul.f32 %v3783, %v3690
  %v3802 = vmul.f32 %v3786, %v3690
  %v3803 = vadd.f32 %v3787, 1e-05
  %v3804 = vadd.f32 %v3788, 1e-05
  %v3805 = vadd.f32 %v3789, 1e-05
  %v3806 = vadd.f32 %v3790, 1e-05
  %v3807 = vadd.f32 %v3791, 1e-05
  %v3808 = vadd.f32 %v3792, 1e-05
  %v3809 = vadd.f32 %v3793, 1e-05
  %v3810 = vadd.f32 %v3794, 1e-05
  %v3811 = vadd.f32 %v3795, 1e-05
  %v3812 = vadd.f32 %v3796, 1e-05
  %v3813 = vadd.f32 %v3797, 1e-05
  %v3814 = vadd.f32 %v3798, 1e-05
  %v3815 = vadd.f32 %v3799, 1e-05
  %v3816 = vadd.f32 %v3800, 1e-05
  %v3817 = vadd.f32 %v3801, 1e-05
  %v3818 = vadd.f32 %v3802, 1e-05
  %v3819 = vrsqrt.pop %v3803
  %v3820 = vmul.f32 %v3819, %v3803
  %v3821 = vmul.f32 %v3820, %v3819
  %v3822 = vmul.f32 0.5, %v3821
  %v3823 = vsub.f32 1.5, %v3822
  %v3824 = vmul.f32 %v3819, %v3823
  %vm3825 = vweird.f32 %v3803
  %vm3826 = vweird.f32 %v3819
  %vm3827 = vmor %vm3825, %vm3826
  %v3828 = vsel %vm3827, %v3819, %v3824
  %v3829 = vrsqrt.pop %v3804
  %v3830 = vmul.f32 %v3829, %v3804
  %v3831 = vmul.f32 %v3830, %v3829
  %v3832 = vmul.f32 0.5, %v3831
  %v3833 = vsub.f32 1.5, %v3832
  %v3834 = vmul.f32 %v3829, %v3833
  %vm3835 = vweird.f32 %v3804
  %vm3836 = vweird.f32 %v3829
  %vm3837 = vmor %vm3835, %vm3836
  %v3838 = vsel %vm3837, %v3829, %v3834
  %v3839 = vrsqrt.pop %v3805
  %v3840 = vmul.f32 %v3839, %v3805
  %v3841 = vmul.f32 %v3840, %v3839
  %v3842 = vmul.f32 0.5, %v3841
  %v3843 = vsub.f32 1.5, %v3842
  %v3844 = vmul.f32 %v3839, %v3843
  %vm3845 = vweird.f32 %v3805
  %vm3846 = vweird.f32 %v3839
  %vm3847 = vmor %vm3845, %vm3846
  %v3848 = vsel %vm3847, %v3839, %v3844
  %v3849 = vrsqrt.pop %v3806
  %v3850 = vmul.f32 %v3849, %v3806
  %v3851 = vmul.f32 %v3850, %v3849
  %v3852 = vmul.f32 0.5, %v3851
  %v3853 = vsub.f32 1.5, %v3852
  %v3854 = vmul.f32 %v3849, %v3853
  %vm3855 = vweird.f32 %v3806
  %vm3856 = vweird.f32 %v3849
  %vm3857 = vmor %vm3855, %vm3856
  %v3858 = vsel %vm3857, %v3849, %v3854
  %v3859 = vrsqrt.pop %v3807
  %v3860 = vmul.f32 %v3859, %v3807
  %v3861 = vmul.f32 %v3860, %v3859
  %v3862 = vmul.f32 0.5, %v3861
  %v3863 = vsub.f32 1.5, %v3862
  %v3864 = vmul.f32 %v3859, %v3863
  %vm3865 = vweird.f32 %v3807
  %vm3866 = vweird.f32 %v3859
  %vm3867 = vmor %vm3865, %vm3866
  %v3868 = vsel %vm3867, %v3859, %v3864
  %v3869 = vrsqrt.pop %v3808
  %v3870 = vmul.f32 %v3869, %v3808
  %v3871 = vmul.f32 %v3870, %v3869
  %v3872 = vmul.f32 0.5, %v3871
  %v3873 = vsub.f32 1.5, %v3872
  %v3874 = vmul.f32 %v3869, %v3873
  %vm3875 = vweird.f32 %v3808
  %vm3876 = vweird.f32 %v3869
  %vm3877 = vmor %vm3875, %vm3876
  %v3878 = vsel %vm3877, %v3869, %v3874
  %v3879 = vrsqrt.pop %v3809
  %v3880 = vmul.f32 %v3879, %v3809
  %v3881 = vmul.f32 %v3880, %v3879
  %v3882 = vmul.f32 0.5, %v3881
  %v3883 = vsub.f32 1.5, %v3882
  %v3884 = vmul.f32 %v3879, %v3883
  %vm3885 = vweird.f32 %v3809
  %vm3886 = vweird.f32 %v3879
  %vm3887 = vmor %vm3885, %vm3886
  %v3888 = vsel %vm3887, %v3879, %v3884
  %v3889 = vrsqrt.pop %v3810
  %v3890 = vmul.f32 %v3889, %v3810
  %v3891 = vmul.f32 %v3890, %v3889
  %v3892 = vmul.f32 0.5, %v3891
  %v3893 = vsub.f32 1.5, %v3892
  %v3894 = vmul.f32 %v3889, %v3893
  %vm3895 = vweird.f32 %v3810
  %vm3896 = vweird.f32 %v3889
  %vm3897 = vmor %vm3895, %vm3896
  %v3898 = vsel %vm3897, %v3889, %v3894
  %v3899 = vrsqrt.pop %v3811
  %v3900 = vmul.f32 %v3899, %v3811
  %v3901 = vmul.f32 %v3900, %v3899
  %v3902 = vmul.f32 0.5, %v3901
  %v3903 = vsub.f32 1.5, %v3902
  %v3904 = vmul.f32 %v3899, %v3903
  %vm3905 = vweird.f32 %v3811
  %vm3906 = vweird.f32 %v3899
  %vm3907 = vmor %vm3905, %vm3906
  %v3908 = vsel %vm3907, %v3899, %v3904
  %v3909 = vrsqrt.pop %v3812
  %v3910 = vmul.f32 %v3909, %v3812
  %v3911 = vmul.f32 %v3910, %v3909
  %v3912 = vmul.f32 0.5, %v3911
  %v3913 = vsub.f32 1.5, %v3912
  %v3914 = vmul.f32 %v3909, %v3913
  %vm3915 = vweird.f32 %v3812
  %vm3916 = vweird.f32 %v3909
  %vm3917 = vmor %vm3915, %vm3916
  %v3918 = vsel %vm3917, %v3909, %v3914
  %v3919 = vrsqrt.pop %v3813
  %v3920 = vmul.f32 %v3919, %v3813
  %v3921 = vmul.f32 %v3920, %v3919
  %v3922 = vmul.f32 0.5, %v3921
  %v3923 = vsub.f32 1.5, %v3922
  %v3924 = vmul.f32 %v3919, %v3923
  %vm3925 = vweird.f32 %v3813
  %vm3926 = vweird.f32 %v3919
  %vm3927 = vmor %vm3925, %vm3926
  %v3928 = vsel %vm3927, %v3919, %v3924
  %v3929 = vrsqrt.pop %v3814
  %v3930 = vmul.f32 %v3929, %v3814
  %v3931 = vmul.f32 %v3930, %v3929
  %v3932 = vmul.f32 0.5, %v3931
  %v3933 = vsub.f32 1.5, %v3932
  %v3934 = vmul.f32 %v3929, %v3933
  %vm3935 = vweird.f32 %v3814
  %vm3936 = vweird.f32 %v3929
  %vm3937 = vmor %vm3935, %vm3936
  %v3938 = vsel %vm3937, %v3929, %v3934
  %v3939 = vrsqrt.pop %v3815
  %v3940 = vmul.f32 %v3939, %v3815
  %v3941 = vmul.f32 %v3940, %v3939
  %v3942 = vmul.f32 0.5, %v3941
  %v3943 = vsub.f32 1.5, %v3942
  %v3944 = vmul.f32 %v3939, %v3943
  %vm3945 = vweird.f32 %v3815
  %vm3946 = vweird.f32 %v3939
  %vm3947 = vmor %vm3945, %vm3946
  %v3948 = vsel %vm3947, %v3939, %v3944
  %v3949 = vrsqrt.pop %v3816
  %v3950 = vmul.f32 %v3949, %v3816
  %v3951 = vmul.f32 %v3950, %v3949
  %v3952 = vmul.f32 0.5, %v3951
  %v3953 = vsub.f32 1.5, %v3952
  %v3954 = vmul.f32 %v3949, %v3953
  %vm3955 = vweird.f32 %v3816
  %vm3956 = vweird.f32 %v3949
  %vm3957 = vmor %vm3955, %vm3956
  %v3958 = vsel %vm3957, %v3949, %v3954
  %v3959 = vrsqrt.pop %v3817
  %v3960 = vmul.f32 %v3959, %v3817
  %v3961 = vmul.f32 %v3960, %v3959
  %v3962 = vmul.f32 0.5, %v3961
  %v3963 = vsub.f32 1.5, %v3962
  %v3964 = vmul.f32 %v3959, %v3963
  %vm3965 = vweird.f32 %v3817
  %vm3966 = vweird.f32 %v3959
  %vm3967 = vmor %vm3965, %vm3966
  %v3968 = vsel %vm3967, %v3959, %v3964
  %v3969 = vrsqrt.pop %v3818
  %v3970 = vmul.f32 %v3969, %v3818
  %v3971 = vmul.f32 %v3970, %v3969
  %v3972 = vmul.f32 0.5, %v3971
  %v3973 = vsub.f32 1.5, %v3972
  %v3974 = vmul.f32 %v3969, %v3973
  %vm3975 = vweird.f32 %v3818
  %vm3976 = vweird.f32 %v3969
  %vm3977 = vmor %vm3975, %vm3976
  %v3978 = vsel %vm3977, %v3969, %v3974
  %v3979 = vmul.f32 %v3707, %v3828
  %v3980 = vmul.f32 %v3708, %v3838
  %v3981 = vmul.f32 %v3709, %v3848
  %v3982 = vmul.f32 %v3710, %v3858
  %v3983 = vmul.f32 %v3711, %v3868
  %v3984 = vmul.f32 %v3712, %v3878
  %v3985 = vmul.f32 %v3713, %v3888
  %v3986 = vmul.f32 %v3714, %v3898
  %v3987 = vmul.f32 %v3715, %v3908
  %v3988 = vmul.f32 %v3716, %v3918
  %v3989 = vmul.f32 %v3717, %v3928
  %v3990 = vmul.f32 %v3718, %v3938
  %v3991 = vmul.f32 %v3719, %v3948
  %v3992 = vmul.f32 %v3720, %v3958
  %v3993 = vmul.f32 %v3721, %v3968
  %v3994 = vmul.f32 %v3722, %v3978
  %v3995 = vperm.slane %v33, 2
  %v3996 = vmul.f32 %v3979, %v3995
  %v3997 = vmul.f32 %v3980, %v3995
  %v3998 = vmul.f32 %v3981, %v3995
  %v3999 = vmul.f32 %v3982, %v3995
  %v4000 = vmul.f32 %v3983, %v3995
  %v4001 = vmul.f32 %v3984, %v3995
  %v4002 = vmul.f32 %v3985, %v3995
  %v4003 = vmul.f32 %v3986, %v3995
  %v4004 = vmul.f32 %v3987, %v3995
  %v4005 = vmul.f32 %v3988, %v3995
  %v4006 = vmul.f32 %v3989, %v3995
  %v4007 = vmul.f32 %v3990, %v3995
  %v4008 = vmul.f32 %v3991, %v3995
  %v4009 = vmul.f32 %v3992, %v3995
  %v4010 = vmul.f32 %v3993, %v3995
  %v4011 = vmul.f32 %v3994, %v3995
  %v4012 = vperm.slane %v33, 3
  %v4013 = vadd.f32 %v3996, %v4012
  %v4014 = vadd.f32 %v3997, %v4012
  %v4015 = vadd.f32 %v3998, %v4012
  %v4016 = vadd.f32 %v3999, %v4012
  %v4017 = vadd.f32 %v4000, %v4012
  %v4018 = vadd.f32 %v4001, %v4012
  %v4019 = vadd.f32 %v4002, %v4012
  %v4020 = vadd.f32 %v4003, %v4012
  %v4021 = vadd.f32 %v4004, %v4012
  %v4022 = vadd.f32 %v4005, %v4012
  %v4023 = vadd.f32 %v4006, %v4012
  %v4024 = vadd.f32 %v4007, %v4012
  %v4025 = vadd.f32 %v4008, %v4012
  %v4026 = vadd.f32 %v4009, %v4012
  %v4027 = vadd.f32 %v4010, %v4012
  %v4028 = vadd.f32 %v4011, %v4012
  %4029 = vst.msk [vmem:[%s4] sm:$0xff] %vm39, %v4013
  %4030 = vst.msk [vmem:[%s4 + $0x8] sm:$0xff] %vm39, %v4014
  %4031 = vst.msk [vmem:[%s4 + $0x10] sm:$0xff] %vm39, %v4015
  %4032 = vst.msk [vmem:[%s4 + $0x18] sm:$0xff] %vm39, %v4016
  %4033 = vst.msk [vmem:[%s4 + $0x20] sm:$0xff] %vm39, %v4017
  %4034 = vst.msk [vmem:[%s4 + $0x28] sm:$0xff] %vm39, %v4018
  %4035 = vst.msk [vmem:[%s4 + $0x30] sm:$0xff] %vm39, %v4019
  %4036 = vst.msk [vmem:[%s4 + $0x38] sm:$0xff] %vm39, %v4020
  %4037 = vst.msk [vmem:[%s4 + $0x40] sm:$0xff] %vm39, %v4021
  %4038 = vst.msk [vmem:[%s4 + $0x48] sm:$0xff] %vm39, %v4022
  %4039 = vst.msk [vmem:[%s4 + $0x50] sm:$0xff] %vm39, %v4023
  %4040 = vst.msk [vmem:[%s4 + $0x58] sm:$0xff] %vm39, %v4024
  %4041 = vst.msk [vmem:[%s4 + $0x60] sm:$0xff] %vm39, %v4025
  %4042 = vst.msk [vmem:[%s4 + $0x68] sm:$0xff] %vm39, %v4026
  %4043 = vst.msk [vmem:[%s4 + $0x70] sm:$0xff] %vm39, %v4027
  %4044 = vst.msk [vmem:[%s4 + $0x78] sm:$0xff] %vm39, %v4028
  // Predicated region
  $region18: #{tpu_custom_call.1} parent=0 // pred_check
    _
  $region19: #{tpu_custom_call.1} parent=0 // pred_check_branch
    %4046 = sbr.rel (0) target = $region21
  $region20: #{tpu_custom_call.1} parent=0 // pred_region
    _
  $region21: #{tpu_custom_call.1} parent=0 // pred_fallthru
    _
  // Predicated region
  $region22: #{tpu_custom_call.1} parent=0 // pred_check
    _
  $region23: #{tpu_custom_call.1} parent=0 // pred_check_branch
    %4048 = sbr.rel (0) target = $region25
  $region24: #{tpu_custom_call.1} parent=0 // pred_region
    _
  $region25: #{tpu_custom_call.1} parent=0 // pred_fallthru
    _

</llo_original>
